<compile_context>
chip_gen: v5e
topology: v5e:2x2
jax: 0.10.0
libtpu: 0.0.40
codegen_flags: <defaults>
</compile_context>

<pallas_src>
import functools

import numpy as np
import jax
import jax.numpy as jnp
from jax import lax
from jax.experimental import pallas as pl
from jax.experimental.pallas import tpu as pltpu

KH = KW = 3      # conv1 kernel size
C_OUT = 12       # conv1 output channels
POOL = 3         # MaxPool2d kernel == stride
H1, H2 = 32, 64  # lin1 / lin2 widths


def _tree_reduce(op, xs):
    """Balanced (tree) reduction: dependency chain ~log2(len(xs))."""
    xs = list(xs)
    while len(xs) > 1:
        nxt = [op(xs[i], xs[i + 1]) for i in range(0, len(xs) - 1, 2)]
        if len(xs) % 2:
            nxt.append(xs[-1])
        xs = nxt
    return xs[0]


def _slab_layout(h, w, hp, wp, act):
    """Row offsets (multiples of 8) and lane width of the packed constant slab."""
    u_off = POOL + KH - 1              # 5 distinct row offsets used by conv+pool
    cw = KW * POOL * wp                # csel lane width (72)
    r8 = lambda v: ((v + 7) // 8) * 8
    off, r = {}, 0
    off["rsel"] = r; r = r8(r + u_off * hp)
    off["csel"] = r; r = r8(r + w)
    off["rep"] = r;  r = r8(r + hp)
    off["w1"] = r;   r = r8(r + H1)
    off["w2"] = r;   r = r8(r + H2)
    off["w3"] = r;   r = r + act
    lanes = max(h, cw, C_OUT * hp, wp + 1, H1 + 1, H2 + 1)
    return off, r, lanes


# -----------------------------------------------------------------------------
# Fused kernel: conv1 + max-pool + lin1/relu + lin2/relu + lin3 + softmax(dim=1)
# -----------------------------------------------------------------------------
def actor_fused_kernel(wconv_ref, img_ref, slab_ref, out_ref, *, hp, wp, act, offs):
    # wconv_ref : (C_OUT*10,) f32 in SMEM  -- [9 conv weights, bias] per channel
    # img_ref   : (1, H, W)                -- raw image for this batch element
    # slab_ref  : (rows, lanes) f32        -- packed constants (rsel/csel/rep/MLP)
    # out_ref   : (1, act, C_OUT*hp)       -- softmax result, 96-lane rows
    o_rsel, o_csel, o_rep, o_w1, o_w2, o_w3 = offs
    _, h, w = img_ref.shape
    u_off = POOL + KH - 1
    nt = KH * KW
    stride = nt + 1
    cw = KW * POOL * wp
    nl = C_OUT * hp

    img = img_ref[0]                                             # (H, W)
    rsel = slab_ref[o_rsel:o_rsel + u_off * hp, 0:h]             # (40, H) one-hot
    csel = slab_ref[o_csel:o_csel + w, 0:cw]                     # (W, 72) one-hot

    # (1) Gather every sample the 9 conv taps need with two EXACT one-hot matmuls:
    #     cols[u*hp+pi, kj*POOL*wp + dj*wp + pj] = img[POOL*pi+u, POOL*pj+dj+kj]
    t0 = jnp.dot(img, csel, preferred_element_type=jnp.float32)   # (H, 72)
    cols = jnp.dot(rsel, t0, preferred_element_type=jnp.float32)  # (40, 72)

    # (2) 9 taps (each (3*hp, 3*wp)=(24,24)) materialized once; per-channel conv on
    #     the VPU (scalar scale-accumulate) + immediate 3x3/3 max-pool + bias, so
    #     only one 3-vreg accumulator is live at a time  (review items #1, #4).
    taps = [cols[ki * hp:(ki + POOL) * hp, kj * POOL * wp:(kj + 1) * POOL * wp]
            for ki in range(KH) for kj in range(KW)]
    pooled_blocks = []
    for c in range(C_OUT):
        base = c * stride
        acc = wconv_ref[base] * taps[0]
        for t in range(1, nt):
            acc = acc + wconv_ref[base + t] * taps[t]
        m = jnp.maximum(jnp.maximum(acc[:, 0:wp], acc[:, wp:2 * wp]),
                        acc[:, 2 * wp:3 * wp])                    # (3*hp, wp)
        m = jnp.maximum(jnp.maximum(m[0:hp], m[hp:2 * hp]), m[2 * hp:3 * hp])
        pooled_blocks.append(m + wconv_ref[base + nt])            # bias commutes w/ max
    pooled = jnp.concatenate(pooled_blocks, axis=0)               # (C_OUT*hp, wp)

    # (3) MLP with the 96-wide (c*hp+pi) axis on lanes (review item #2).
    w1t = slab_ref[o_w1:o_w1 + H1, 0:wp];  b1 = slab_ref[o_w1:o_w1 + H1, wp:wp + 1]
    w2t = slab_ref[o_w2:o_w2 + H2, 0:H1];  b2 = slab_ref[o_w2:o_w2 + H2, H1:H1 + 1]
    w3t = slab_ref[o_w3:o_w3 + act, 0:H2]; b3 = slab_ref[o_w3:o_w3 + act, H2:H2 + 1]
    h1t = jnp.maximum(jnp.dot(w1t, pooled.T, preferred_element_type=jnp.float32) + b1, 0.0)
    h2t = jnp.maximum(jnp.dot(w2t, h1t, preferred_element_type=jnp.float32) + b2, 0.0)
    logits = jnp.dot(w3t, h2t, preferred_element_type=jnp.float32) + b3   # (act, 96)

    # (4) softmax over the 12 conv channels (contiguous lane blocks of hp).
    #     Tree reductions over the 12 blocks; exact one-hot matmul replicates the
    #     (act, hp) max / 1-sum back across channels (review item #8).
    rep = slab_ref[o_rep:o_rep + hp, 0:nl]                        # (hp, 96) one-hot
    mx = _tree_reduce(jnp.maximum,
                      [logits[:, c * hp:(c + 1) * hp] for c in range(C_OUT)])
    e = jnp.exp(logits - jnp.dot(mx, rep, preferred_element_type=jnp.float32))
    s = _tree_reduce(jnp.add, [e[:, c * hp:(c + 1) * hp] for c in range(C_OUT)])
    # exact divide (approx reciprocal ~2^-12 would endanger the 1e-4 tolerance)
    out_ref[0] = e * jnp.dot(1.0 / s, rep, preferred_element_type=jnp.float32)


# -----------------------------------------------------------------------------
# Forward pass (single pallas_call)
# -----------------------------------------------------------------------------
def actor_forward(x, params):
    n, cin, h, w = x.shape
    assert cin == 1
    hp, wp = (h - KH + 1) // POOL, (w - KW + 1) // POOL
    assert POOL * hp == h - KH + 1 and POOL * wp == w - KW + 1
    act = params["w3"].shape[1]
    off, rows, lanes = _slab_layout(h, w, hp, wp, act)
    offs = (off["rsel"], off["csel"], off["rep"], off["w1"], off["w2"], off["w3"])
    slab, wsmem = params["slab"], params["wsmem"]
    assert slab.shape == (rows, lanes)

    img = x.reshape(n, h, w)                     # channel dim is 1: metadata-only

    # honest cost estimate (review item #9): no kron inflation any more
    u_off = POOL + KH - 1
    cw = KW * POOL * wp
    sel_flops = 2 * h * w * cw + 2 * (u_off * hp) * h * cw
    conv_flops = 2 * C_OUT * KH * KW * (POOL * hp) * (POOL * wp)
    mlp_flops = 2 * C_OUT * hp * (wp * H1 + H1 * H2 + H2 * act)
    soft_flops = 4 * act * hp * (C_OUT * hp)
    flops = n * (sel_flops + conv_flops + mlp_flops + soft_flops)
    transc = n * act * C_OUT * hp
    bytes_accessed = 4 * (x.size + slab.size + wsmem.size + n * act * C_OUT * hp)

    out = pl.pallas_call(
        functools.partial(actor_fused_kernel, hp=hp, wp=wp, act=act, offs=offs),
        out_shape=jax.ShapeDtypeStruct((n, act, C_OUT * hp), jnp.float32),
        grid_spec=pltpu.PrefetchScalarGridSpec(
            num_scalar_prefetch=1,                      # conv weights+bias -> SMEM
            grid=(n,),
            in_specs=[
                pl.BlockSpec((1, h, w), lambda i, wref: (i, 0, 0)),
                pl.BlockSpec((rows, lanes), lambda i, wref: (0, 0)),
            ],
            out_specs=pl.BlockSpec((1, act, C_OUT * hp), lambda i, wref: (i, 0, 0)),
        ),
        compiler_params=pltpu.CompilerParams(dimension_semantics=("parallel",)),
        cost_estimate=pl.CostEstimate(flops=flops, transcendentals=transc,
                                      bytes_accessed=bytes_accessed),
    )(wsmem, img, slab)

    # lane-dense kernel output (n, act, C_OUT*hp) -> torch layout (n, C_OUT, hp, act)
    return out.reshape(n, act, C_OUT, hp).transpose(0, 2, 3, 1)


# -----------------------------------------------------------------------------
# Deterministic synthetic parameters (+ packed kernel-side constants)
# -----------------------------------------------------------------------------
def init_params(key, h, w, action_size):
    hp, wp = (h - KH + 1) // POOL, (w - KW + 1) // POOL
    assert POOL * hp == h - KH + 1 and POOL * wp == w - KW + 1
    flatten_size = wp                 # last dim after conv+pool feeds lin1
    ks = jax.random.split(key, 8)
    wconv = jax.random.normal(ks[0], (C_OUT, 1, KH, KW), jnp.float32) * (2.0 / 9.0) ** 0.5
    bconv = jax.random.normal(ks[1], (C_OUT,), jnp.float32) * 0.1
    w1 = jax.random.normal(ks[2], (flatten_size, H1), jnp.float32) * (1.0 / flatten_size) ** 0.5
    b1 = jax.random.normal(ks[3], (H1,), jnp.float32) * 0.1
    w2 = jax.random.normal(ks[4], (H1, H2), jnp.float32) * (1.0 / H1) ** 0.5
    b2 = jax.random.normal(ks[5], (H2,), jnp.float32) * 0.1
    w3 = jax.random.normal(ks[6], (H2, action_size), jnp.float32) * (1.0 / H2) ** 0.5
    b3 = jax.random.normal(ks[7], (action_size,), jnp.float32) * 0.1

    params = {"wconv": wconv, "bconv": bconv, "w1": w1, "b1": b1,
              "w2": w2, "b2": b2, "w3": w3, "b3": b3}

    # ---- single packed constant slab (review item #7) ----
    off, rows, lanes = _slab_layout(h, w, hp, wp, action_size)
    slab = np.zeros((rows, lanes), np.float32)
    u_off = POOL + KH - 1
    for u in range(u_off):                       # rsel: one-hot stride-POOL row picks
        for pi in range(hp):
            slab[off["rsel"] + u * hp + pi, POOL * pi + u] = 1.0
    for kj in range(KW):                         # csel: one-hot column picks per tap
        for dj in range(POOL):
            for pj in range(wp):
                slab[off["csel"] + POOL * pj + dj + kj, kj * POOL * wp + dj * wp + pj] = 1.0
    for c in range(C_OUT):                       # rep: channel replicator (hp -> C*hp)
        for k in range(hp):
            slab[off["rep"] + k, c * hp + k] = 1.0
    slab[off["w1"]:off["w1"] + H1, :wp] = np.asarray(w1).T
    slab[off["w1"]:off["w1"] + H1, wp] = np.asarray(b1)
    slab[off["w2"]:off["w2"] + H2, :H1] = np.asarray(w2).T
    slab[off["w2"]:off["w2"] + H2, H1] = np.asarray(b2)
    slab[off["w3"]:off["w3"] + action_size, :H2] = np.asarray(w3).T
    slab[off["w3"]:off["w3"] + action_size, H2] = np.asarray(b3)
    params["slab"] = jnp.asarray(slab)

    # conv weights + bias as flat SMEM scalars: [w0..w8, bias] per channel
    nt = KH * KW
    wflat = np.zeros((C_OUT * (nt + 1),), np.float32)
    wcn = np.asarray(wconv).reshape(C_OUT, nt)
    bcn = np.asarray(bconv)
    for c in range(C_OUT):
        wflat[c * (nt + 1): c * (nt + 1) + nt] = wcn[c]
        wflat[c * (nt + 1) + nt] = bcn[c]
    params["wsmem"] = jnp.asarray(wflat)
    return params


# -----------------------------------------------------------------------------
# Pure-JAX reference reproducing torch semantics (for verification)
# -----------------------------------------------------------------------------
def reference_forward(x, params):
    conv = lax.conv_general_dilated(
        x, params["wconv"], window_strides=(1, 1), padding="VALID",
        dimension_numbers=("NCHW", "OIHW", "NCHW"))
    conv = conv + params["bconv"].reshape(1, C_OUT, 1, 1)
    pooled = lax.reduce_window(
        conv, -jnp.inf, lax.max,
        window_dimensions=(1, 1, POOL, POOL),
        window_strides=(1, 1, POOL, POOL), padding="VALID")
    h1 = jax.nn.relu(pooled @ params["w1"] + params["b1"])
    h2 = jax.nn.relu(h1 @ params["w2"] + params["b2"])
    logits = h2 @ params["w3"] + params["b3"]
    # torch f.softmax with no dim on a 4-D tensor uses dim=1 (the 12 conv channels)
    return jax.nn.softmax(logits, axis=1)


if __name__ == "__main__":
    N, H_IMG, W_IMG = 2, 26, 26
    ACTION = 6
    HP = (H_IMG - KH + 1) // POOL        # 8
    WP = (W_IMG - KW + 1) // POOL        # 8 (= flatten_size feeding lin1)

    key = jax.random.PRNGKey(0)
    kx, kp = jax.random.split(key)
    x = jax.random.normal(kx, (N, 1, H_IMG, W_IMG), jnp.float32)
    params = init_params(kp, H_IMG, W_IMG, ACTION)

    out = jax.block_until_ready(actor_forward(x, params))
    ref = jax.block_until_ready(reference_forward(x, params))

    assert out.shape == (N, C_OUT, HP, ACTION), out.shape
    err = float(jnp.max(jnp.abs(out - ref)))
    assert bool(jnp.allclose(out, ref, atol=1e-4, rtol=1e-4)), err
    print("KERNEL_OK")
</pallas_src>

<mosaic_0001>
module attributes {stable_mosaic.version = 11 : i64} {
  func.func @actor_fused_kernel(%arg0: i32, %arg1: memref<120xf32, #tpu.memory_space<smem>>, %arg2: memref<1x26x26xf32, #tpu.memory_space<vmem>>, %arg3: memref<182x96xf32, #tpu.memory_space<vmem>>, %arg4: memref<1x6x96xf32, #tpu.memory_space<vmem>>) attributes {dimension_semantics = [#tpu.dimension_semantics<parallel>], iteration_bounds = array<i64: 2>, scalar_prefetch = 1 : i64, scratch_operands = 0 : i64, tpu.core_type = #tpu.core_type<tc>, window_params = [{transform_indices = @transform_0, window_bounds = array<i64: 1, 26, 26>}, {pipeline_mode = #tpu.pipeline_mode<synchronous>, transform_indices = @transform_1, window_bounds = array<i64: 182, 96>}, {transform_indices = @transform_2, window_bounds = array<i64: 1, 6, 96>}]} {
    %c0 = arith.constant 0 : index
    %c0_0 = arith.constant 0 : index
    %c0_1 = arith.constant 0 : index
    %0 = vector.load %arg2[%c0, %c0_0, %c0_1] : memref<1x26x26xf32, #tpu.memory_space<vmem>>, vector<1x26x26xf32>
    %1 = vector.shape_cast %0 : vector<1x26x26xf32> to vector<26x26xf32>
    %c0_2 = arith.constant 0 : index
    %c0_3 = arith.constant 0 : index
    %2 = vector.load %arg3[%c0_2, %c0_3] : memref<182x96xf32, #tpu.memory_space<vmem>>, vector<40x26xf32>
    %c40 = arith.constant 40 : index
    %c0_4 = arith.constant 0 : index
    %3 = vector.load %arg3[%c40, %c0_4] : memref<182x96xf32, #tpu.memory_space<vmem>>, vector<26x72xf32>
    %cst = arith.constant dense<0.000000e+00> : vector<26x72xf32>
    %4 = tpu.matmul %1, %3, %cst {dimension_numbers = #tpu.dot_dimension_numbers<[1], [0], [0], [1], [0, 0, 1, 1], [], []>} : vector<26x26xf32>, vector<26x72xf32>, vector<26x72xf32> -> vector<26x72xf32>
    %cst_5 = arith.constant dense<0.000000e+00> : vector<40x72xf32>
    %5 = tpu.matmul %2, %4, %cst_5 {dimension_numbers = #tpu.dot_dimension_numbers<[1], [0], [0], [1], [0, 0, 1, 1], [], []>} : vector<40x26xf32>, vector<26x72xf32>, vector<40x72xf32> -> vector<40x72xf32>
    %6 = vector.extract_strided_slice %5 {offsets = [0, 0], sizes = [24, 24], strides = [1, 1]} : vector<40x72xf32> to vector<24x24xf32>
    %7 = vector.extract_strided_slice %5 {offsets = [0, 24], sizes = [24, 24], strides = [1, 1]} : vector<40x72xf32> to vector<24x24xf32>
    %8 = vector.extract_strided_slice %5 {offsets = [0, 48], sizes = [24, 24], strides = [1, 1]} : vector<40x72xf32> to vector<24x24xf32>
    %9 = vector.extract_strided_slice %5 {offsets = [8, 0], sizes = [24, 24], strides = [1, 1]} : vector<40x72xf32> to vector<24x24xf32>
    %10 = vector.extract_strided_slice %5 {offsets = [8, 24], sizes = [24, 24], strides = [1, 1]} : vector<40x72xf32> to vector<24x24xf32>
    %11 = vector.extract_strided_slice %5 {offsets = [8, 48], sizes = [24, 24], strides = [1, 1]} : vector<40x72xf32> to vector<24x24xf32>
    %12 = vector.extract_strided_slice %5 {offsets = [16, 0], sizes = [24, 24], strides = [1, 1]} : vector<40x72xf32> to vector<24x24xf32>
    %13 = vector.extract_strided_slice %5 {offsets = [16, 24], sizes = [24, 24], strides = [1, 1]} : vector<40x72xf32> to vector<24x24xf32>
    %14 = vector.extract_strided_slice %5 {offsets = [16, 48], sizes = [24, 24], strides = [1, 1]} : vector<40x72xf32> to vector<24x24xf32>
    %c0_6 = arith.constant 0 : index
    %15 = memref.load %arg1[%c0_6] : memref<120xf32, #tpu.memory_space<smem>>
    %16 = vector.broadcast %15 : f32 to vector<24x24xf32>
    %17 = arith.mulf %16, %6 : vector<24x24xf32>
    %c1 = arith.constant 1 : index
    %18 = memref.load %arg1[%c1] : memref<120xf32, #tpu.memory_space<smem>>
    %19 = vector.broadcast %18 : f32 to vector<24x24xf32>
    %20 = arith.mulf %19, %7 : vector<24x24xf32>
    %21 = arith.addf %17, %20 : vector<24x24xf32>
    %c2 = arith.constant 2 : index
    %22 = memref.load %arg1[%c2] : memref<120xf32, #tpu.memory_space<smem>>
    %23 = vector.broadcast %22 : f32 to vector<24x24xf32>
    %24 = arith.mulf %23, %8 : vector<24x24xf32>
    %25 = arith.addf %21, %24 : vector<24x24xf32>
    %c3 = arith.constant 3 : index
    %26 = memref.load %arg1[%c3] : memref<120xf32, #tpu.memory_space<smem>>
    %27 = vector.broadcast %26 : f32 to vector<24x24xf32>
    %28 = arith.mulf %27, %9 : vector<24x24xf32>
    %29 = arith.addf %25, %28 : vector<24x24xf32>
    %c4 = arith.constant 4 : index
    %30 = memref.load %arg1[%c4] : memref<120xf32, #tpu.memory_space<smem>>
    %31 = vector.broadcast %30 : f32 to vector<24x24xf32>
    %32 = arith.mulf %31, %10 : vector<24x24xf32>
    %33 = arith.addf %29, %32 : vector<24x24xf32>
    %c5 = arith.constant 5 : index
    %34 = memref.load %arg1[%c5] : memref<120xf32, #tpu.memory_space<smem>>
    %35 = vector.broadcast %34 : f32 to vector<24x24xf32>
    %36 = arith.mulf %35, %11 : vector<24x24xf32>
    %37 = arith.addf %33, %36 : vector<24x24xf32>
    %c6 = arith.constant 6 : index
    %38 = memref.load %arg1[%c6] : memref<120xf32, #tpu.memory_space<smem>>
    %39 = vector.broadcast %38 : f32 to vector<24x24xf32>
    %40 = arith.mulf %39, %12 : vector<24x24xf32>
    %41 = arith.addf %37, %40 : vector<24x24xf32>
    %c7 = arith.constant 7 : index
    %42 = memref.load %arg1[%c7] : memref<120xf32, #tpu.memory_space<smem>>
    %43 = vector.broadcast %42 : f32 to vector<24x24xf32>
    %44 = arith.mulf %43, %13 : vector<24x24xf32>
    %45 = arith.addf %41, %44 : vector<24x24xf32>
    %c8 = arith.constant 8 : index
    %46 = memref.load %arg1[%c8] : memref<120xf32, #tpu.memory_space<smem>>
    %47 = vector.broadcast %46 : f32 to vector<24x24xf32>
    %48 = arith.mulf %47, %14 : vector<24x24xf32>
    %49 = arith.addf %45, %48 : vector<24x24xf32>
    %50 = vector.extract_strided_slice %49 {offsets = [0, 0], sizes = [24, 8], strides = [1, 1]} : vector<24x24xf32> to vector<24x8xf32>
    %51 = vector.extract_strided_slice %49 {offsets = [0, 8], sizes = [24, 8], strides = [1, 1]} : vector<24x24xf32> to vector<24x8xf32>
    %52 = arith.maximumf %50, %51 : vector<24x8xf32>
    %53 = vector.extract_strided_slice %49 {offsets = [0, 16], sizes = [24, 8], strides = [1, 1]} : vector<24x24xf32> to vector<24x8xf32>
    %54 = arith.maximumf %52, %53 : vector<24x8xf32>
    %55 = vector.extract_strided_slice %54 {offsets = [0, 0], sizes = [8, 8], strides = [1, 1]} : vector<24x8xf32> to vector<8x8xf32>
    %56 = vector.extract_strided_slice %54 {offsets = [8, 0], sizes = [8, 8], strides = [1, 1]} : vector<24x8xf32> to vector<8x8xf32>
    %57 = arith.maximumf %55, %56 : vector<8x8xf32>
    %58 = vector.extract_strided_slice %54 {offsets = [16, 0], sizes = [8, 8], strides = [1, 1]} : vector<24x8xf32> to vector<8x8xf32>
    %59 = arith.maximumf %57, %58 : vector<8x8xf32>
    %c9 = arith.constant 9 : index
    %60 = memref.load %arg1[%c9] : memref<120xf32, #tpu.memory_space<smem>>
    %61 = vector.broadcast %60 : f32 to vector<8x8xf32>
    %62 = arith.addf %59, %61 : vector<8x8xf32>
    %c10 = arith.constant 10 : index
    %63 = memref.load %arg1[%c10] : memref<120xf32, #tpu.memory_space<smem>>
    %64 = vector.broadcast %63 : f32 to vector<24x24xf32>
    %65 = arith.mulf %64, %6 : vector<24x24xf32>
    %c11 = arith.constant 11 : index
    %66 = memref.load %arg1[%c11] : memref<120xf32, #tpu.memory_space<smem>>
    %67 = vector.broadcast %66 : f32 to vector<24x24xf32>
    %68 = arith.mulf %67, %7 : vector<24x24xf32>
    %69 = arith.addf %65, %68 : vector<24x24xf32>
    %c12 = arith.constant 12 : index
    %70 = memref.load %arg1[%c12] : memref<120xf32, #tpu.memory_space<smem>>
    %71 = vector.broadcast %70 : f32 to vector<24x24xf32>
    %72 = arith.mulf %71, %8 : vector<24x24xf32>
    %73 = arith.addf %69, %72 : vector<24x24xf32>
    %c13 = arith.constant 13 : index
    %74 = memref.load %arg1[%c13] : memref<120xf32, #tpu.memory_space<smem>>
    %75 = vector.broadcast %74 : f32 to vector<24x24xf32>
    %76 = arith.mulf %75, %9 : vector<24x24xf32>
    %77 = arith.addf %73, %76 : vector<24x24xf32>
    %c14 = arith.constant 14 : index
    %78 = memref.load %arg1[%c14] : memref<120xf32, #tpu.memory_space<smem>>
    %79 = vector.broadcast %78 : f32 to vector<24x24xf32>
    %80 = arith.mulf %79, %10 : vector<24x24xf32>
    %81 = arith.addf %77, %80 : vector<24x24xf32>
    %c15 = arith.constant 15 : index
    %82 = memref.load %arg1[%c15] : memref<120xf32, #tpu.memory_space<smem>>
    %83 = vector.broadcast %82 : f32 to vector<24x24xf32>
    %84 = arith.mulf %83, %11 : vector<24x24xf32>
    %85 = arith.addf %81, %84 : vector<24x24xf32>
    %c16 = arith.constant 16 : index
    %86 = memref.load %arg1[%c16] : memref<120xf32, #tpu.memory_space<smem>>
    %87 = vector.broadcast %86 : f32 to vector<24x24xf32>
    %88 = arith.mulf %87, %12 : vector<24x24xf32>
    %89 = arith.addf %85, %88 : vector<24x24xf32>
    %c17 = arith.constant 17 : index
    %90 = memref.load %arg1[%c17] : memref<120xf32, #tpu.memory_space<smem>>
    %91 = vector.broadcast %90 : f32 to vector<24x24xf32>
    %92 = arith.mulf %91, %13 : vector<24x24xf32>
    %93 = arith.addf %89, %92 : vector<24x24xf32>
    %c18 = arith.constant 18 : index
    %94 = memref.load %arg1[%c18] : memref<120xf32, #tpu.memory_space<smem>>
    %95 = vector.broadcast %94 : f32 to vector<24x24xf32>
    %96 = arith.mulf %95, %14 : vector<24x24xf32>
    %97 = arith.addf %93, %96 : vector<24x24xf32>
    %98 = vector.extract_strided_slice %97 {offsets = [0, 0], sizes = [24, 8], strides = [1, 1]} : vector<24x24xf32> to vector<24x8xf32>
    %99 = vector.extract_strided_slice %97 {offsets = [0, 8], sizes = [24, 8], strides = [1, 1]} : vector<24x24xf32> to vector<24x8xf32>
    %100 = arith.maximumf %98, %99 : vector<24x8xf32>
    %101 = vector.extract_strided_slice %97 {offsets = [0, 16], sizes = [24, 8], strides = [1, 1]} : vector<24x24xf32> to vector<24x8xf32>
    %102 = arith.maximumf %100, %101 : vector<24x8xf32>
    %103 = vector.extract_strided_slice %102 {offsets = [0, 0], sizes = [8, 8], strides = [1, 1]} : vector<24x8xf32> to vector<8x8xf32>
    %104 = vector.extract_strided_slice %102 {offsets = [8, 0], sizes = [8, 8], strides = [1, 1]} : vector<24x8xf32> to vector<8x8xf32>
    %105 = arith.maximumf %103, %104 : vector<8x8xf32>
    %106 = vector.extract_strided_slice %102 {offsets = [16, 0], sizes = [8, 8], strides = [1, 1]} : vector<24x8xf32> to vector<8x8xf32>
    %107 = arith.maximumf %105, %106 : vector<8x8xf32>
    %c19 = arith.constant 19 : index
    %108 = memref.load %arg1[%c19] : memref<120xf32, #tpu.memory_space<smem>>
    %109 = vector.broadcast %108 : f32 to vector<8x8xf32>
    %110 = arith.addf %107, %109 : vector<8x8xf32>
    %c20 = arith.constant 20 : index
    %111 = memref.load %arg1[%c20] : memref<120xf32, #tpu.memory_space<smem>>
    %112 = vector.broadcast %111 : f32 to vector<24x24xf32>
    %113 = arith.mulf %112, %6 : vector<24x24xf32>
    %c21 = arith.constant 21 : index
    %114 = memref.load %arg1[%c21] : memref<120xf32, #tpu.memory_space<smem>>
    %115 = vector.broadcast %114 : f32 to vector<24x24xf32>
    %116 = arith.mulf %115, %7 : vector<24x24xf32>
    %117 = arith.addf %113, %116 : vector<24x24xf32>
    %c22 = arith.constant 22 : index
    %118 = memref.load %arg1[%c22] : memref<120xf32, #tpu.memory_space<smem>>
    %119 = vector.broadcast %118 : f32 to vector<24x24xf32>
    %120 = arith.mulf %119, %8 : vector<24x24xf32>
    %121 = arith.addf %117, %120 : vector<24x24xf32>
    %c23 = arith.constant 23 : index
    %122 = memref.load %arg1[%c23] : memref<120xf32, #tpu.memory_space<smem>>
    %123 = vector.broadcast %122 : f32 to vector<24x24xf32>
    %124 = arith.mulf %123, %9 : vector<24x24xf32>
    %125 = arith.addf %121, %124 : vector<24x24xf32>
    %c24 = arith.constant 24 : index
    %126 = memref.load %arg1[%c24] : memref<120xf32, #tpu.memory_space<smem>>
    %127 = vector.broadcast %126 : f32 to vector<24x24xf32>
    %128 = arith.mulf %127, %10 : vector<24x24xf32>
    %129 = arith.addf %125, %128 : vector<24x24xf32>
    %c25 = arith.constant 25 : index
    %130 = memref.load %arg1[%c25] : memref<120xf32, #tpu.memory_space<smem>>
    %131 = vector.broadcast %130 : f32 to vector<24x24xf32>
    %132 = arith.mulf %131, %11 : vector<24x24xf32>
    %133 = arith.addf %129, %132 : vector<24x24xf32>
    %c26 = arith.constant 26 : index
    %134 = memref.load %arg1[%c26] : memref<120xf32, #tpu.memory_space<smem>>
    %135 = vector.broadcast %134 : f32 to vector<24x24xf32>
    %136 = arith.mulf %135, %12 : vector<24x24xf32>
    %137 = arith.addf %133, %136 : vector<24x24xf32>
    %c27 = arith.constant 27 : index
    %138 = memref.load %arg1[%c27] : memref<120xf32, #tpu.memory_space<smem>>
    %139 = vector.broadcast %138 : f32 to vector<24x24xf32>
    %140 = arith.mulf %139, %13 : vector<24x24xf32>
    %141 = arith.addf %137, %140 : vector<24x24xf32>
    %c28 = arith.constant 28 : index
    %142 = memref.load %arg1[%c28] : memref<120xf32, #tpu.memory_space<smem>>
    %143 = vector.broadcast %142 : f32 to vector<24x24xf32>
    %144 = arith.mulf %143, %14 : vector<24x24xf32>
    %145 = arith.addf %141, %144 : vector<24x24xf32>
    %146 = vector.extract_strided_slice %145 {offsets = [0, 0], sizes = [24, 8], strides = [1, 1]} : vector<24x24xf32> to vector<24x8xf32>
    %147 = vector.extract_strided_slice %145 {offsets = [0, 8], sizes = [24, 8], strides = [1, 1]} : vector<24x24xf32> to vector<24x8xf32>
    %148 = arith.maximumf %146, %147 : vector<24x8xf32>
    %149 = vector.extract_strided_slice %145 {offsets = [0, 16], sizes = [24, 8], strides = [1, 1]} : vector<24x24xf32> to vector<24x8xf32>
    %150 = arith.maximumf %148, %149 : vector<24x8xf32>
    %151 = vector.extract_strided_slice %150 {offsets = [0, 0], sizes = [8, 8], strides = [1, 1]} : vector<24x8xf32> to vector<8x8xf32>
    %152 = vector.extract_strided_slice %150 {offsets = [8, 0], sizes = [8, 8], strides = [1, 1]} : vector<24x8xf32> to vector<8x8xf32>
    %153 = arith.maximumf %151, %152 : vector<8x8xf32>
    %154 = vector.extract_strided_slice %150 {offsets = [16, 0], sizes = [8, 8], strides = [1, 1]} : vector<24x8xf32> to vector<8x8xf32>
    %155 = arith.maximumf %153, %154 : vector<8x8xf32>
    %c29 = arith.constant 29 : index
    %156 = memref.load %arg1[%c29] : memref<120xf32, #tpu.memory_space<smem>>
    %157 = vector.broadcast %156 : f32 to vector<8x8xf32>
    %158 = arith.addf %155, %157 : vector<8x8xf32>
    %c30 = arith.constant 30 : index
    %159 = memref.load %arg1[%c30] : memref<120xf32, #tpu.memory_space<smem>>
    %160 = vector.broadcast %159 : f32 to vector<24x24xf32>
    %161 = arith.mulf %160, %6 : vector<24x24xf32>
    %c31 = arith.constant 31 : index
    %162 = memref.load %arg1[%c31] : memref<120xf32, #tpu.memory_space<smem>>
    %163 = vector.broadcast %162 : f32 to vector<24x24xf32>
    %164 = arith.mulf %163, %7 : vector<24x24xf32>
    %165 = arith.addf %161, %164 : vector<24x24xf32>
    %c32 = arith.constant 32 : index
    %166 = memref.load %arg1[%c32] : memref<120xf32, #tpu.memory_space<smem>>
    %167 = vector.broadcast %166 : f32 to vector<24x24xf32>
    %168 = arith.mulf %167, %8 : vector<24x24xf32>
    %169 = arith.addf %165, %168 : vector<24x24xf32>
    %c33 = arith.constant 33 : index
    %170 = memref.load %arg1[%c33] : memref<120xf32, #tpu.memory_space<smem>>
    %171 = vector.broadcast %170 : f32 to vector<24x24xf32>
    %172 = arith.mulf %171, %9 : vector<24x24xf32>
    %173 = arith.addf %169, %172 : vector<24x24xf32>
    %c34 = arith.constant 34 : index
    %174 = memref.load %arg1[%c34] : memref<120xf32, #tpu.memory_space<smem>>
    %175 = vector.broadcast %174 : f32 to vector<24x24xf32>
    %176 = arith.mulf %175, %10 : vector<24x24xf32>
    %177 = arith.addf %173, %176 : vector<24x24xf32>
    %c35 = arith.constant 35 : index
    %178 = memref.load %arg1[%c35] : memref<120xf32, #tpu.memory_space<smem>>
    %179 = vector.broadcast %178 : f32 to vector<24x24xf32>
    %180 = arith.mulf %179, %11 : vector<24x24xf32>
    %181 = arith.addf %177, %180 : vector<24x24xf32>
    %c36 = arith.constant 36 : index
    %182 = memref.load %arg1[%c36] : memref<120xf32, #tpu.memory_space<smem>>
    %183 = vector.broadcast %182 : f32 to vector<24x24xf32>
    %184 = arith.mulf %183, %12 : vector<24x24xf32>
    %185 = arith.addf %181, %184 : vector<24x24xf32>
    %c37 = arith.constant 37 : index
    %186 = memref.load %arg1[%c37] : memref<120xf32, #tpu.memory_space<smem>>
    %187 = vector.broadcast %186 : f32 to vector<24x24xf32>
    %188 = arith.mulf %187, %13 : vector<24x24xf32>
    %189 = arith.addf %185, %188 : vector<24x24xf32>
    %c38 = arith.constant 38 : index
    %190 = memref.load %arg1[%c38] : memref<120xf32, #tpu.memory_space<smem>>
    %191 = vector.broadcast %190 : f32 to vector<24x24xf32>
    %192 = arith.mulf %191, %14 : vector<24x24xf32>
    %193 = arith.addf %189, %192 : vector<24x24xf32>
    %194 = vector.extract_strided_slice %193 {offsets = [0, 0], sizes = [24, 8], strides = [1, 1]} : vector<24x24xf32> to vector<24x8xf32>
    %195 = vector.extract_strided_slice %193 {offsets = [0, 8], sizes = [24, 8], strides = [1, 1]} : vector<24x24xf32> to vector<24x8xf32>
    %196 = arith.maximumf %194, %195 : vector<24x8xf32>
    %197 = vector.extract_strided_slice %193 {offsets = [0, 16], sizes = [24, 8], strides = [1, 1]} : vector<24x24xf32> to vector<24x8xf32>
    %198 = arith.maximumf %196, %197 : vector<24x8xf32>
    %199 = vector.extract_strided_slice %198 {offsets = [0, 0], sizes = [8, 8], strides = [1, 1]} : vector<24x8xf32> to vector<8x8xf32>
    %200 = vector.extract_strided_slice %198 {offsets = [8, 0], sizes = [8, 8], strides = [1, 1]} : vector<24x8xf32> to vector<8x8xf32>
    %201 = arith.maximumf %199, %200 : vector<8x8xf32>
    %202 = vector.extract_strided_slice %198 {offsets = [16, 0], sizes = [8, 8], strides = [1, 1]} : vector<24x8xf32> to vector<8x8xf32>
    %203 = arith.maximumf %201, %202 : vector<8x8xf32>
    %c39 = arith.constant 39 : index
    %204 = memref.load %arg1[%c39] : memref<120xf32, #tpu.memory_space<smem>>
    %205 = vector.broadcast %204 : f32 to vector<8x8xf32>
    %206 = arith.addf %203, %205 : vector<8x8xf32>
    %c40_7 = arith.constant 40 : index
    %207 = memref.load %arg1[%c40_7] : memref<120xf32, #tpu.memory_space<smem>>
    %208 = vector.broadcast %207 : f32 to vector<24x24xf32>
    %209 = arith.mulf %208, %6 : vector<24x24xf32>
    %c41 = arith.constant 41 : index
    %210 = memref.load %arg1[%c41] : memref<120xf32, #tpu.memory_space<smem>>
    %211 = vector.broadcast %210 : f32 to vector<24x24xf32>
    %212 = arith.mulf %211, %7 : vector<24x24xf32>
    %213 = arith.addf %209, %212 : vector<24x24xf32>
    %c42 = arith.constant 42 : index
    %214 = memref.load %arg1[%c42] : memref<120xf32, #tpu.memory_space<smem>>
    %215 = vector.broadcast %214 : f32 to vector<24x24xf32>
    %216 = arith.mulf %215, %8 : vector<24x24xf32>
    %217 = arith.addf %213, %216 : vector<24x24xf32>
    %c43 = arith.constant 43 : index
    %218 = memref.load %arg1[%c43] : memref<120xf32, #tpu.memory_space<smem>>
    %219 = vector.broadcast %218 : f32 to vector<24x24xf32>
    %220 = arith.mulf %219, %9 : vector<24x24xf32>
    %221 = arith.addf %217, %220 : vector<24x24xf32>
    %c44 = arith.constant 44 : index
    %222 = memref.load %arg1[%c44] : memref<120xf32, #tpu.memory_space<smem>>
    %223 = vector.broadcast %222 : f32 to vector<24x24xf32>
    %224 = arith.mulf %223, %10 : vector<24x24xf32>
    %225 = arith.addf %221, %224 : vector<24x24xf32>
    %c45 = arith.constant 45 : index
    %226 = memref.load %arg1[%c45] : memref<120xf32, #tpu.memory_space<smem>>
    %227 = vector.broadcast %226 : f32 to vector<24x24xf32>
    %228 = arith.mulf %227, %11 : vector<24x24xf32>
    %229 = arith.addf %225, %228 : vector<24x24xf32>
    %c46 = arith.constant 46 : index
    %230 = memref.load %arg1[%c46] : memref<120xf32, #tpu.memory_space<smem>>
    %231 = vector.broadcast %230 : f32 to vector<24x24xf32>
    %232 = arith.mulf %231, %12 : vector<24x24xf32>
    %233 = arith.addf %229, %232 : vector<24x24xf32>
    %c47 = arith.constant 47 : index
    %234 = memref.load %arg1[%c47] : memref<120xf32, #tpu.memory_space<smem>>
    %235 = vector.broadcast %234 : f32 to vector<24x24xf32>
    %236 = arith.mulf %235, %13 : vector<24x24xf32>
    %237 = arith.addf %233, %236 : vector<24x24xf32>
    %c48 = arith.constant 48 : index
    %238 = memref.load %arg1[%c48] : memref<120xf32, #tpu.memory_space<smem>>
    %239 = vector.broadcast %238 : f32 to vector<24x24xf32>
    %240 = arith.mulf %239, %14 : vector<24x24xf32>
    %241 = arith.addf %237, %240 : vector<24x24xf32>
    %242 = vector.extract_strided_slice %241 {offsets = [0, 0], sizes = [24, 8], strides = [1, 1]} : vector<24x24xf32> to vector<24x8xf32>
    %243 = vector.extract_strided_slice %241 {offsets = [0, 8], sizes = [24, 8], strides = [1, 1]} : vector<24x24xf32> to vector<24x8xf32>
    %244 = arith.maximumf %242, %243 : vector<24x8xf32>
    %245 = vector.extract_strided_slice %241 {offsets = [0, 16], sizes = [24, 8], strides = [1, 1]} : vector<24x24xf32> to vector<24x8xf32>
    %246 = arith.maximumf %244, %245 : vector<24x8xf32>
    %247 = vector.extract_strided_slice %246 {offsets = [0, 0], sizes = [8, 8], strides = [1, 1]} : vector<24x8xf32> to vector<8x8xf32>
    %248 = vector.extract_strided_slice %246 {offsets = [8, 0], sizes = [8, 8], strides = [1, 1]} : vector<24x8xf32> to vector<8x8xf32>
    %249 = arith.maximumf %247, %248 : vector<8x8xf32>
    %250 = vector.extract_strided_slice %246 {offsets = [16, 0], sizes = [8, 8], strides = [1, 1]} : vector<24x8xf32> to vector<8x8xf32>
    %251 = arith.maximumf %249, %250 : vector<8x8xf32>
    %c49 = arith.constant 49 : index
    %252 = memref.load %arg1[%c49] : memref<120xf32, #tpu.memory_space<smem>>
    %253 = vector.broadcast %252 : f32 to vector<8x8xf32>
    %254 = arith.addf %251, %253 : vector<8x8xf32>
    %c50 = arith.constant 50 : index
    %255 = memref.load %arg1[%c50] : memref<120xf32, #tpu.memory_space<smem>>
    %256 = vector.broadcast %255 : f32 to vector<24x24xf32>
    %257 = arith.mulf %256, %6 : vector<24x24xf32>
    %c51 = arith.constant 51 : index
    %258 = memref.load %arg1[%c51] : memref<120xf32, #tpu.memory_space<smem>>
    %259 = vector.broadcast %258 : f32 to vector<24x24xf32>
    %260 = arith.mulf %259, %7 : vector<24x24xf32>
    %261 = arith.addf %257, %260 : vector<24x24xf32>
    %c52 = arith.constant 52 : index
    %262 = memref.load %arg1[%c52] : memref<120xf32, #tpu.memory_space<smem>>
    %263 = vector.broadcast %262 : f32 to vector<24x24xf32>
    %264 = arith.mulf %263, %8 : vector<24x24xf32>
    %265 = arith.addf %261, %264 : vector<24x24xf32>
    %c53 = arith.constant 53 : index
    %266 = memref.load %arg1[%c53] : memref<120xf32, #tpu.memory_space<smem>>
    %267 = vector.broadcast %266 : f32 to vector<24x24xf32>
    %268 = arith.mulf %267, %9 : vector<24x24xf32>
    %269 = arith.addf %265, %268 : vector<24x24xf32>
    %c54 = arith.constant 54 : index
    %270 = memref.load %arg1[%c54] : memref<120xf32, #tpu.memory_space<smem>>
    %271 = vector.broadcast %270 : f32 to vector<24x24xf32>
    %272 = arith.mulf %271, %10 : vector<24x24xf32>
    %273 = arith.addf %269, %272 : vector<24x24xf32>
    %c55 = arith.constant 55 : index
    %274 = memref.load %arg1[%c55] : memref<120xf32, #tpu.memory_space<smem>>
    %275 = vector.broadcast %274 : f32 to vector<24x24xf32>
    %276 = arith.mulf %275, %11 : vector<24x24xf32>
    %277 = arith.addf %273, %276 : vector<24x24xf32>
    %c56 = arith.constant 56 : index
    %278 = memref.load %arg1[%c56] : memref<120xf32, #tpu.memory_space<smem>>
    %279 = vector.broadcast %278 : f32 to vector<24x24xf32>
    %280 = arith.mulf %279, %12 : vector<24x24xf32>
    %281 = arith.addf %277, %280 : vector<24x24xf32>
    %c57 = arith.constant 57 : index
    %282 = memref.load %arg1[%c57] : memref<120xf32, #tpu.memory_space<smem>>
    %283 = vector.broadcast %282 : f32 to vector<24x24xf32>
    %284 = arith.mulf %283, %13 : vector<24x24xf32>
    %285 = arith.addf %281, %284 : vector<24x24xf32>
    %c58 = arith.constant 58 : index
    %286 = memref.load %arg1[%c58] : memref<120xf32, #tpu.memory_space<smem>>
    %287 = vector.broadcast %286 : f32 to vector<24x24xf32>
    %288 = arith.mulf %287, %14 : vector<24x24xf32>
    %289 = arith.addf %285, %288 : vector<24x24xf32>
    %290 = vector.extract_strided_slice %289 {offsets = [0, 0], sizes = [24, 8], strides = [1, 1]} : vector<24x24xf32> to vector<24x8xf32>
    %291 = vector.extract_strided_slice %289 {offsets = [0, 8], sizes = [24, 8], strides = [1, 1]} : vector<24x24xf32> to vector<24x8xf32>
    %292 = arith.maximumf %290, %291 : vector<24x8xf32>
    %293 = vector.extract_strided_slice %289 {offsets = [0, 16], sizes = [24, 8], strides = [1, 1]} : vector<24x24xf32> to vector<24x8xf32>
    %294 = arith.maximumf %292, %293 : vector<24x8xf32>
    %295 = vector.extract_strided_slice %294 {offsets = [0, 0], sizes = [8, 8], strides = [1, 1]} : vector<24x8xf32> to vector<8x8xf32>
    %296 = vector.extract_strided_slice %294 {offsets = [8, 0], sizes = [8, 8], strides = [1, 1]} : vector<24x8xf32> to vector<8x8xf32>
    %297 = arith.maximumf %295, %296 : vector<8x8xf32>
    %298 = vector.extract_strided_slice %294 {offsets = [16, 0], sizes = [8, 8], strides = [1, 1]} : vector<24x8xf32> to vector<8x8xf32>
    %299 = arith.maximumf %297, %298 : vector<8x8xf32>
    %c59 = arith.constant 59 : index
    %300 = memref.load %arg1[%c59] : memref<120xf32, #tpu.memory_space<smem>>
    %301 = vector.broadcast %300 : f32 to vector<8x8xf32>
    %302 = arith.addf %299, %301 : vector<8x8xf32>
    %c60 = arith.constant 60 : index
    %303 = memref.load %arg1[%c60] : memref<120xf32, #tpu.memory_space<smem>>
    %304 = vector.broadcast %303 : f32 to vector<24x24xf32>
    %305 = arith.mulf %304, %6 : vector<24x24xf32>
    %c61 = arith.constant 61 : index
    %306 = memref.load %arg1[%c61] : memref<120xf32, #tpu.memory_space<smem>>
    %307 = vector.broadcast %306 : f32 to vector<24x24xf32>
    %308 = arith.mulf %307, %7 : vector<24x24xf32>
    %309 = arith.addf %305, %308 : vector<24x24xf32>
    %c62 = arith.constant 62 : index
    %310 = memref.load %arg1[%c62] : memref<120xf32, #tpu.memory_space<smem>>
    %311 = vector.broadcast %310 : f32 to vector<24x24xf32>
    %312 = arith.mulf %311, %8 : vector<24x24xf32>
    %313 = arith.addf %309, %312 : vector<24x24xf32>
    %c63 = arith.constant 63 : index
    %314 = memref.load %arg1[%c63] : memref<120xf32, #tpu.memory_space<smem>>
    %315 = vector.broadcast %314 : f32 to vector<24x24xf32>
    %316 = arith.mulf %315, %9 : vector<24x24xf32>
    %317 = arith.addf %313, %316 : vector<24x24xf32>
    %c64 = arith.constant 64 : index
    %318 = memref.load %arg1[%c64] : memref<120xf32, #tpu.memory_space<smem>>
    %319 = vector.broadcast %318 : f32 to vector<24x24xf32>
    %320 = arith.mulf %319, %10 : vector<24x24xf32>
    %321 = arith.addf %317, %320 : vector<24x24xf32>
    %c65 = arith.constant 65 : index
    %322 = memref.load %arg1[%c65] : memref<120xf32, #tpu.memory_space<smem>>
    %323 = vector.broadcast %322 : f32 to vector<24x24xf32>
    %324 = arith.mulf %323, %11 : vector<24x24xf32>
    %325 = arith.addf %321, %324 : vector<24x24xf32>
    %c66 = arith.constant 66 : index
    %326 = memref.load %arg1[%c66] : memref<120xf32, #tpu.memory_space<smem>>
    %327 = vector.broadcast %326 : f32 to vector<24x24xf32>
    %328 = arith.mulf %327, %12 : vector<24x24xf32>
    %329 = arith.addf %325, %328 : vector<24x24xf32>
    %c67 = arith.constant 67 : index
    %330 = memref.load %arg1[%c67] : memref<120xf32, #tpu.memory_space<smem>>
    %331 = vector.broadcast %330 : f32 to vector<24x24xf32>
    %332 = arith.mulf %331, %13 : vector<24x24xf32>
    %333 = arith.addf %329, %332 : vector<24x24xf32>
    %c68 = arith.constant 68 : index
    %334 = memref.load %arg1[%c68] : memref<120xf32, #tpu.memory_space<smem>>
    %335 = vector.broadcast %334 : f32 to vector<24x24xf32>
    %336 = arith.mulf %335, %14 : vector<24x24xf32>
    %337 = arith.addf %333, %336 : vector<24x24xf32>
    %338 = vector.extract_strided_slice %337 {offsets = [0, 0], sizes = [24, 8], strides = [1, 1]} : vector<24x24xf32> to vector<24x8xf32>
    %339 = vector.extract_strided_slice %337 {offsets = [0, 8], sizes = [24, 8], strides = [1, 1]} : vector<24x24xf32> to vector<24x8xf32>
    %340 = arith.maximumf %338, %339 : vector<24x8xf32>
    %341 = vector.extract_strided_slice %337 {offsets = [0, 16], sizes = [24, 8], strides = [1, 1]} : vector<24x24xf32> to vector<24x8xf32>
    %342 = arith.maximumf %340, %341 : vector<24x8xf32>
    %343 = vector.extract_strided_slice %342 {offsets = [0, 0], sizes = [8, 8], strides = [1, 1]} : vector<24x8xf32> to vector<8x8xf32>
    %344 = vector.extract_strided_slice %342 {offsets = [8, 0], sizes = [8, 8], strides = [1, 1]} : vector<24x8xf32> to vector<8x8xf32>
    %345 = arith.maximumf %343, %344 : vector<8x8xf32>
    %346 = vector.extract_strided_slice %342 {offsets = [16, 0], sizes = [8, 8], strides = [1, 1]} : vector<24x8xf32> to vector<8x8xf32>
    %347 = arith.maximumf %345, %346 : vector<8x8xf32>
    %c69 = arith.constant 69 : index
    %348 = memref.load %arg1[%c69] : memref<120xf32, #tpu.memory_space<smem>>
    %349 = vector.broadcast %348 : f32 to vector<8x8xf32>
    %350 = arith.addf %347, %349 : vector<8x8xf32>
    %c70 = arith.constant 70 : index
    %351 = memref.load %arg1[%c70] : memref<120xf32, #tpu.memory_space<smem>>
    %352 = vector.broadcast %351 : f32 to vector<24x24xf32>
    %353 = arith.mulf %352, %6 : vector<24x24xf32>
    %c71 = arith.constant 71 : index
    %354 = memref.load %arg1[%c71] : memref<120xf32, #tpu.memory_space<smem>>
    %355 = vector.broadcast %354 : f32 to vector<24x24xf32>
    %356 = arith.mulf %355, %7 : vector<24x24xf32>
    %357 = arith.addf %353, %356 : vector<24x24xf32>
    %c72 = arith.constant 72 : index
    %358 = memref.load %arg1[%c72] : memref<120xf32, #tpu.memory_space<smem>>
    %359 = vector.broadcast %358 : f32 to vector<24x24xf32>
    %360 = arith.mulf %359, %8 : vector<24x24xf32>
    %361 = arith.addf %357, %360 : vector<24x24xf32>
    %c73 = arith.constant 73 : index
    %362 = memref.load %arg1[%c73] : memref<120xf32, #tpu.memory_space<smem>>
    %363 = vector.broadcast %362 : f32 to vector<24x24xf32>
    %364 = arith.mulf %363, %9 : vector<24x24xf32>
    %365 = arith.addf %361, %364 : vector<24x24xf32>
    %c74 = arith.constant 74 : index
    %366 = memref.load %arg1[%c74] : memref<120xf32, #tpu.memory_space<smem>>
    %367 = vector.broadcast %366 : f32 to vector<24x24xf32>
    %368 = arith.mulf %367, %10 : vector<24x24xf32>
    %369 = arith.addf %365, %368 : vector<24x24xf32>
    %c75 = arith.constant 75 : index
    %370 = memref.load %arg1[%c75] : memref<120xf32, #tpu.memory_space<smem>>
    %371 = vector.broadcast %370 : f32 to vector<24x24xf32>
    %372 = arith.mulf %371, %11 : vector<24x24xf32>
    %373 = arith.addf %369, %372 : vector<24x24xf32>
    %c76 = arith.constant 76 : index
    %374 = memref.load %arg1[%c76] : memref<120xf32, #tpu.memory_space<smem>>
    %375 = vector.broadcast %374 : f32 to vector<24x24xf32>
    %376 = arith.mulf %375, %12 : vector<24x24xf32>
    %377 = arith.addf %373, %376 : vector<24x24xf32>
    %c77 = arith.constant 77 : index
    %378 = memref.load %arg1[%c77] : memref<120xf32, #tpu.memory_space<smem>>
    %379 = vector.broadcast %378 : f32 to vector<24x24xf32>
    %380 = arith.mulf %379, %13 : vector<24x24xf32>
    %381 = arith.addf %377, %380 : vector<24x24xf32>
    %c78 = arith.constant 78 : index
    %382 = memref.load %arg1[%c78] : memref<120xf32, #tpu.memory_space<smem>>
    %383 = vector.broadcast %382 : f32 to vector<24x24xf32>
    %384 = arith.mulf %383, %14 : vector<24x24xf32>
    %385 = arith.addf %381, %384 : vector<24x24xf32>
    %386 = vector.extract_strided_slice %385 {offsets = [0, 0], sizes = [24, 8], strides = [1, 1]} : vector<24x24xf32> to vector<24x8xf32>
    %387 = vector.extract_strided_slice %385 {offsets = [0, 8], sizes = [24, 8], strides = [1, 1]} : vector<24x24xf32> to vector<24x8xf32>
    %388 = arith.maximumf %386, %387 : vector<24x8xf32>
    %389 = vector.extract_strided_slice %385 {offsets = [0, 16], sizes = [24, 8], strides = [1, 1]} : vector<24x24xf32> to vector<24x8xf32>
    %390 = arith.maximumf %388, %389 : vector<24x8xf32>
    %391 = vector.extract_strided_slice %390 {offsets = [0, 0], sizes = [8, 8], strides = [1, 1]} : vector<24x8xf32> to vector<8x8xf32>
    %392 = vector.extract_strided_slice %390 {offsets = [8, 0], sizes = [8, 8], strides = [1, 1]} : vector<24x8xf32> to vector<8x8xf32>
    %393 = arith.maximumf %391, %392 : vector<8x8xf32>
    %394 = vector.extract_strided_slice %390 {offsets = [16, 0], sizes = [8, 8], strides = [1, 1]} : vector<24x8xf32> to vector<8x8xf32>
    %395 = arith.maximumf %393, %394 : vector<8x8xf32>
    %c79 = arith.constant 79 : index
    %396 = memref.load %arg1[%c79] : memref<120xf32, #tpu.memory_space<smem>>
    %397 = vector.broadcast %396 : f32 to vector<8x8xf32>
    %398 = arith.addf %395, %397 : vector<8x8xf32>
    %c80 = arith.constant 80 : index
    %399 = memref.load %arg1[%c80] : memref<120xf32, #tpu.memory_space<smem>>
    %400 = vector.broadcast %399 : f32 to vector<24x24xf32>
    %401 = arith.mulf %400, %6 : vector<24x24xf32>
    %c81 = arith.constant 81 : index
    %402 = memref.load %arg1[%c81] : memref<120xf32, #tpu.memory_space<smem>>
    %403 = vector.broadcast %402 : f32 to vector<24x24xf32>
    %404 = arith.mulf %403, %7 : vector<24x24xf32>
    %405 = arith.addf %401, %404 : vector<24x24xf32>
    %c82 = arith.constant 82 : index
    %406 = memref.load %arg1[%c82] : memref<120xf32, #tpu.memory_space<smem>>
    %407 = vector.broadcast %406 : f32 to vector<24x24xf32>
    %408 = arith.mulf %407, %8 : vector<24x24xf32>
    %409 = arith.addf %405, %408 : vector<24x24xf32>
    %c83 = arith.constant 83 : index
    %410 = memref.load %arg1[%c83] : memref<120xf32, #tpu.memory_space<smem>>
    %411 = vector.broadcast %410 : f32 to vector<24x24xf32>
    %412 = arith.mulf %411, %9 : vector<24x24xf32>
    %413 = arith.addf %409, %412 : vector<24x24xf32>
    %c84 = arith.constant 84 : index
    %414 = memref.load %arg1[%c84] : memref<120xf32, #tpu.memory_space<smem>>
    %415 = vector.broadcast %414 : f32 to vector<24x24xf32>
    %416 = arith.mulf %415, %10 : vector<24x24xf32>
    %417 = arith.addf %413, %416 : vector<24x24xf32>
    %c85 = arith.constant 85 : index
    %418 = memref.load %arg1[%c85] : memref<120xf32, #tpu.memory_space<smem>>
    %419 = vector.broadcast %418 : f32 to vector<24x24xf32>
    %420 = arith.mulf %419, %11 : vector<24x24xf32>
    %421 = arith.addf %417, %420 : vector<24x24xf32>
    %c86 = arith.constant 86 : index
    %422 = memref.load %arg1[%c86] : memref<120xf32, #tpu.memory_space<smem>>
    %423 = vector.broadcast %422 : f32 to vector<24x24xf32>
    %424 = arith.mulf %423, %12 : vector<24x24xf32>
    %425 = arith.addf %421, %424 : vector<24x24xf32>
    %c87 = arith.constant 87 : index
    %426 = memref.load %arg1[%c87] : memref<120xf32, #tpu.memory_space<smem>>
    %427 = vector.broadcast %426 : f32 to vector<24x24xf32>
    %428 = arith.mulf %427, %13 : vector<24x24xf32>
    %429 = arith.addf %425, %428 : vector<24x24xf32>
    %c88 = arith.constant 88 : index
    %430 = memref.load %arg1[%c88] : memref<120xf32, #tpu.memory_space<smem>>
    %431 = vector.broadcast %430 : f32 to vector<24x24xf32>
    %432 = arith.mulf %431, %14 : vector<24x24xf32>
    %433 = arith.addf %429, %432 : vector<24x24xf32>
    %434 = vector.extract_strided_slice %433 {offsets = [0, 0], sizes = [24, 8], strides = [1, 1]} : vector<24x24xf32> to vector<24x8xf32>
    %435 = vector.extract_strided_slice %433 {offsets = [0, 8], sizes = [24, 8], strides = [1, 1]} : vector<24x24xf32> to vector<24x8xf32>
    %436 = arith.maximumf %434, %435 : vector<24x8xf32>
    %437 = vector.extract_strided_slice %433 {offsets = [0, 16], sizes = [24, 8], strides = [1, 1]} : vector<24x24xf32> to vector<24x8xf32>
    %438 = arith.maximumf %436, %437 : vector<24x8xf32>
    %439 = vector.extract_strided_slice %438 {offsets = [0, 0], sizes = [8, 8], strides = [1, 1]} : vector<24x8xf32> to vector<8x8xf32>
    %440 = vector.extract_strided_slice %438 {offsets = [8, 0], sizes = [8, 8], strides = [1, 1]} : vector<24x8xf32> to vector<8x8xf32>
    %441 = arith.maximumf %439, %440 : vector<8x8xf32>
    %442 = vector.extract_strided_slice %438 {offsets = [16, 0], sizes = [8, 8], strides = [1, 1]} : vector<24x8xf32> to vector<8x8xf32>
    %443 = arith.maximumf %441, %442 : vector<8x8xf32>
    %c89 = arith.constant 89 : index
    %444 = memref.load %arg1[%c89] : memref<120xf32, #tpu.memory_space<smem>>
    %445 = vector.broadcast %444 : f32 to vector<8x8xf32>
    %446 = arith.addf %443, %445 : vector<8x8xf32>
    %c90 = arith.constant 90 : index
    %447 = memref.load %arg1[%c90] : memref<120xf32, #tpu.memory_space<smem>>
    %448 = vector.broadcast %447 : f32 to vector<24x24xf32>
    %449 = arith.mulf %448, %6 : vector<24x24xf32>
    %c91 = arith.constant 91 : index
    %450 = memref.load %arg1[%c91] : memref<120xf32, #tpu.memory_space<smem>>
    %451 = vector.broadcast %450 : f32 to vector<24x24xf32>
    %452 = arith.mulf %451, %7 : vector<24x24xf32>
    %453 = arith.addf %449, %452 : vector<24x24xf32>
    %c92 = arith.constant 92 : index
    %454 = memref.load %arg1[%c92] : memref<120xf32, #tpu.memory_space<smem>>
    %455 = vector.broadcast %454 : f32 to vector<24x24xf32>
    %456 = arith.mulf %455, %8 : vector<24x24xf32>
    %457 = arith.addf %453, %456 : vector<24x24xf32>
    %c93 = arith.constant 93 : index
    %458 = memref.load %arg1[%c93] : memref<120xf32, #tpu.memory_space<smem>>
    %459 = vector.broadcast %458 : f32 to vector<24x24xf32>
    %460 = arith.mulf %459, %9 : vector<24x24xf32>
    %461 = arith.addf %457, %460 : vector<24x24xf32>
    %c94 = arith.constant 94 : index
    %462 = memref.load %arg1[%c94] : memref<120xf32, #tpu.memory_space<smem>>
    %463 = vector.broadcast %462 : f32 to vector<24x24xf32>
    %464 = arith.mulf %463, %10 : vector<24x24xf32>
    %465 = arith.addf %461, %464 : vector<24x24xf32>
    %c95 = arith.constant 95 : index
    %466 = memref.load %arg1[%c95] : memref<120xf32, #tpu.memory_space<smem>>
    %467 = vector.broadcast %466 : f32 to vector<24x24xf32>
    %468 = arith.mulf %467, %11 : vector<24x24xf32>
    %469 = arith.addf %465, %468 : vector<24x24xf32>
    %c96 = arith.constant 96 : index
    %470 = memref.load %arg1[%c96] : memref<120xf32, #tpu.memory_space<smem>>
    %471 = vector.broadcast %470 : f32 to vector<24x24xf32>
    %472 = arith.mulf %471, %12 : vector<24x24xf32>
    %473 = arith.addf %469, %472 : vector<24x24xf32>
    %c97 = arith.constant 97 : index
    %474 = memref.load %arg1[%c97] : memref<120xf32, #tpu.memory_space<smem>>
    %475 = vector.broadcast %474 : f32 to vector<24x24xf32>
    %476 = arith.mulf %475, %13 : vector<24x24xf32>
    %477 = arith.addf %473, %476 : vector<24x24xf32>
    %c98 = arith.constant 98 : index
    %478 = memref.load %arg1[%c98] : memref<120xf32, #tpu.memory_space<smem>>
    %479 = vector.broadcast %478 : f32 to vector<24x24xf32>
    %480 = arith.mulf %479, %14 : vector<24x24xf32>
    %481 = arith.addf %477, %480 : vector<24x24xf32>
    %482 = vector.extract_strided_slice %481 {offsets = [0, 0], sizes = [24, 8], strides = [1, 1]} : vector<24x24xf32> to vector<24x8xf32>
    %483 = vector.extract_strided_slice %481 {offsets = [0, 8], sizes = [24, 8], strides = [1, 1]} : vector<24x24xf32> to vector<24x8xf32>
    %484 = arith.maximumf %482, %483 : vector<24x8xf32>
    %485 = vector.extract_strided_slice %481 {offsets = [0, 16], sizes = [24, 8], strides = [1, 1]} : vector<24x24xf32> to vector<24x8xf32>
    %486 = arith.maximumf %484, %485 : vector<24x8xf32>
    %487 = vector.extract_strided_slice %486 {offsets = [0, 0], sizes = [8, 8], strides = [1, 1]} : vector<24x8xf32> to vector<8x8xf32>
    %488 = vector.extract_strided_slice %486 {offsets = [8, 0], sizes = [8, 8], strides = [1, 1]} : vector<24x8xf32> to vector<8x8xf32>
    %489 = arith.maximumf %487, %488 : vector<8x8xf32>
    %490 = vector.extract_strided_slice %486 {offsets = [16, 0], sizes = [8, 8], strides = [1, 1]} : vector<24x8xf32> to vector<8x8xf32>
    %491 = arith.maximumf %489, %490 : vector<8x8xf32>
    %c99 = arith.constant 99 : index
    %492 = memref.load %arg1[%c99] : memref<120xf32, #tpu.memory_space<smem>>
    %493 = vector.broadcast %492 : f32 to vector<8x8xf32>
    %494 = arith.addf %491, %493 : vector<8x8xf32>
    %c100 = arith.constant 100 : index
    %495 = memref.load %arg1[%c100] : memref<120xf32, #tpu.memory_space<smem>>
    %496 = vector.broadcast %495 : f32 to vector<24x24xf32>
    %497 = arith.mulf %496, %6 : vector<24x24xf32>
    %c101 = arith.constant 101 : index
    %498 = memref.load %arg1[%c101] : memref<120xf32, #tpu.memory_space<smem>>
    %499 = vector.broadcast %498 : f32 to vector<24x24xf32>
    %500 = arith.mulf %499, %7 : vector<24x24xf32>
    %501 = arith.addf %497, %500 : vector<24x24xf32>
    %c102 = arith.constant 102 : index
    %502 = memref.load %arg1[%c102] : memref<120xf32, #tpu.memory_space<smem>>
    %503 = vector.broadcast %502 : f32 to vector<24x24xf32>
    %504 = arith.mulf %503, %8 : vector<24x24xf32>
    %505 = arith.addf %501, %504 : vector<24x24xf32>
    %c103 = arith.constant 103 : index
    %506 = memref.load %arg1[%c103] : memref<120xf32, #tpu.memory_space<smem>>
    %507 = vector.broadcast %506 : f32 to vector<24x24xf32>
    %508 = arith.mulf %507, %9 : vector<24x24xf32>
    %509 = arith.addf %505, %508 : vector<24x24xf32>
    %c104 = arith.constant 104 : index
    %510 = memref.load %arg1[%c104] : memref<120xf32, #tpu.memory_space<smem>>
    %511 = vector.broadcast %510 : f32 to vector<24x24xf32>
    %512 = arith.mulf %511, %10 : vector<24x24xf32>
    %513 = arith.addf %509, %512 : vector<24x24xf32>
    %c105 = arith.constant 105 : index
    %514 = memref.load %arg1[%c105] : memref<120xf32, #tpu.memory_space<smem>>
    %515 = vector.broadcast %514 : f32 to vector<24x24xf32>
    %516 = arith.mulf %515, %11 : vector<24x24xf32>
    %517 = arith.addf %513, %516 : vector<24x24xf32>
    %c106 = arith.constant 106 : index
    %518 = memref.load %arg1[%c106] : memref<120xf32, #tpu.memory_space<smem>>
    %519 = vector.broadcast %518 : f32 to vector<24x24xf32>
    %520 = arith.mulf %519, %12 : vector<24x24xf32>
    %521 = arith.addf %517, %520 : vector<24x24xf32>
    %c107 = arith.constant 107 : index
    %522 = memref.load %arg1[%c107] : memref<120xf32, #tpu.memory_space<smem>>
    %523 = vector.broadcast %522 : f32 to vector<24x24xf32>
    %524 = arith.mulf %523, %13 : vector<24x24xf32>
    %525 = arith.addf %521, %524 : vector<24x24xf32>
    %c108 = arith.constant 108 : index
    %526 = memref.load %arg1[%c108] : memref<120xf32, #tpu.memory_space<smem>>
    %527 = vector.broadcast %526 : f32 to vector<24x24xf32>
    %528 = arith.mulf %527, %14 : vector<24x24xf32>
    %529 = arith.addf %525, %528 : vector<24x24xf32>
    %530 = vector.extract_strided_slice %529 {offsets = [0, 0], sizes = [24, 8], strides = [1, 1]} : vector<24x24xf32> to vector<24x8xf32>
    %531 = vector.extract_strided_slice %529 {offsets = [0, 8], sizes = [24, 8], strides = [1, 1]} : vector<24x24xf32> to vector<24x8xf32>
    %532 = arith.maximumf %530, %531 : vector<24x8xf32>
    %533 = vector.extract_strided_slice %529 {offsets = [0, 16], sizes = [24, 8], strides = [1, 1]} : vector<24x24xf32> to vector<24x8xf32>
    %534 = arith.maximumf %532, %533 : vector<24x8xf32>
    %535 = vector.extract_strided_slice %534 {offsets = [0, 0], sizes = [8, 8], strides = [1, 1]} : vector<24x8xf32> to vector<8x8xf32>
    %536 = vector.extract_strided_slice %534 {offsets = [8, 0], sizes = [8, 8], strides = [1, 1]} : vector<24x8xf32> to vector<8x8xf32>
    %537 = arith.maximumf %535, %536 : vector<8x8xf32>
    %538 = vector.extract_strided_slice %534 {offsets = [16, 0], sizes = [8, 8], strides = [1, 1]} : vector<24x8xf32> to vector<8x8xf32>
    %539 = arith.maximumf %537, %538 : vector<8x8xf32>
    %c109 = arith.constant 109 : index
    %540 = memref.load %arg1[%c109] : memref<120xf32, #tpu.memory_space<smem>>
    %541 = vector.broadcast %540 : f32 to vector<8x8xf32>
    %542 = arith.addf %539, %541 : vector<8x8xf32>
    %c110 = arith.constant 110 : index
    %543 = memref.load %arg1[%c110] : memref<120xf32, #tpu.memory_space<smem>>
    %544 = vector.broadcast %543 : f32 to vector<24x24xf32>
    %545 = arith.mulf %544, %6 : vector<24x24xf32>
    %c111 = arith.constant 111 : index
    %546 = memref.load %arg1[%c111] : memref<120xf32, #tpu.memory_space<smem>>
    %547 = vector.broadcast %546 : f32 to vector<24x24xf32>
    %548 = arith.mulf %547, %7 : vector<24x24xf32>
    %549 = arith.addf %545, %548 : vector<24x24xf32>
    %c112 = arith.constant 112 : index
    %550 = memref.load %arg1[%c112] : memref<120xf32, #tpu.memory_space<smem>>
    %551 = vector.broadcast %550 : f32 to vector<24x24xf32>
    %552 = arith.mulf %551, %8 : vector<24x24xf32>
    %553 = arith.addf %549, %552 : vector<24x24xf32>
    %c113 = arith.constant 113 : index
    %554 = memref.load %arg1[%c113] : memref<120xf32, #tpu.memory_space<smem>>
    %555 = vector.broadcast %554 : f32 to vector<24x24xf32>
    %556 = arith.mulf %555, %9 : vector<24x24xf32>
    %557 = arith.addf %553, %556 : vector<24x24xf32>
    %c114 = arith.constant 114 : index
    %558 = memref.load %arg1[%c114] : memref<120xf32, #tpu.memory_space<smem>>
    %559 = vector.broadcast %558 : f32 to vector<24x24xf32>
    %560 = arith.mulf %559, %10 : vector<24x24xf32>
    %561 = arith.addf %557, %560 : vector<24x24xf32>
    %c115 = arith.constant 115 : index
    %562 = memref.load %arg1[%c115] : memref<120xf32, #tpu.memory_space<smem>>
    %563 = vector.broadcast %562 : f32 to vector<24x24xf32>
    %564 = arith.mulf %563, %11 : vector<24x24xf32>
    %565 = arith.addf %561, %564 : vector<24x24xf32>
    %c116 = arith.constant 116 : index
    %566 = memref.load %arg1[%c116] : memref<120xf32, #tpu.memory_space<smem>>
    %567 = vector.broadcast %566 : f32 to vector<24x24xf32>
    %568 = arith.mulf %567, %12 : vector<24x24xf32>
    %569 = arith.addf %565, %568 : vector<24x24xf32>
    %c117 = arith.constant 117 : index
    %570 = memref.load %arg1[%c117] : memref<120xf32, #tpu.memory_space<smem>>
    %571 = vector.broadcast %570 : f32 to vector<24x24xf32>
    %572 = arith.mulf %571, %13 : vector<24x24xf32>
    %573 = arith.addf %569, %572 : vector<24x24xf32>
    %c118 = arith.constant 118 : index
    %574 = memref.load %arg1[%c118] : memref<120xf32, #tpu.memory_space<smem>>
    %575 = vector.broadcast %574 : f32 to vector<24x24xf32>
    %576 = arith.mulf %575, %14 : vector<24x24xf32>
    %577 = arith.addf %573, %576 : vector<24x24xf32>
    %578 = vector.extract_strided_slice %577 {offsets = [0, 0], sizes = [24, 8], strides = [1, 1]} : vector<24x24xf32> to vector<24x8xf32>
    %579 = vector.extract_strided_slice %577 {offsets = [0, 8], sizes = [24, 8], strides = [1, 1]} : vector<24x24xf32> to vector<24x8xf32>
    %580 = arith.maximumf %578, %579 : vector<24x8xf32>
    %581 = vector.extract_strided_slice %577 {offsets = [0, 16], sizes = [24, 8], strides = [1, 1]} : vector<24x24xf32> to vector<24x8xf32>
    %582 = arith.maximumf %580, %581 : vector<24x8xf32>
    %583 = vector.extract_strided_slice %582 {offsets = [0, 0], sizes = [8, 8], strides = [1, 1]} : vector<24x8xf32> to vector<8x8xf32>
    %584 = vector.extract_strided_slice %582 {offsets = [8, 0], sizes = [8, 8], strides = [1, 1]} : vector<24x8xf32> to vector<8x8xf32>
    %585 = arith.maximumf %583, %584 : vector<8x8xf32>
    %586 = vector.extract_strided_slice %582 {offsets = [16, 0], sizes = [8, 8], strides = [1, 1]} : vector<24x8xf32> to vector<8x8xf32>
    %587 = arith.maximumf %585, %586 : vector<8x8xf32>
    %c119 = arith.constant 119 : index
    %588 = memref.load %arg1[%c119] : memref<120xf32, #tpu.memory_space<smem>>
    %589 = vector.broadcast %588 : f32 to vector<8x8xf32>
    %590 = arith.addf %587, %589 : vector<8x8xf32>
    %591 = tpu.concatenate %62, %110, %158, %206, %254, %302, %350, %398, %446, %494, %542, %590 in 0 : vector<8x8xf32>, vector<8x8xf32>, vector<8x8xf32>, vector<8x8xf32>, vector<8x8xf32>, vector<8x8xf32>, vector<8x8xf32>, vector<8x8xf32>, vector<8x8xf32>, vector<8x8xf32>, vector<8x8xf32>, vector<8x8xf32> -> vector<96x8xf32>
    %c80_8 = arith.constant 80 : index
    %c0_9 = arith.constant 0 : index
    %592 = vector.load %arg3[%c80_8, %c0_9] : memref<182x96xf32, #tpu.memory_space<vmem>>, vector<32x8xf32>
    %c80_10 = arith.constant 80 : index
    %c8_11 = arith.constant 8 : index
    %593 = vector.load %arg3[%c80_10, %c8_11] : memref<182x96xf32, #tpu.memory_space<vmem>>, vector<32x1xf32>
    %c112_12 = arith.constant 112 : index
    %c0_13 = arith.constant 0 : index
    %594 = vector.load %arg3[%c112_12, %c0_13] : memref<182x96xf32, #tpu.memory_space<vmem>>, vector<64x32xf32>
    %c112_14 = arith.constant 112 : index
    %c32_15 = arith.constant 32 : index
    %595 = vector.load %arg3[%c112_14, %c32_15] : memref<182x96xf32, #tpu.memory_space<vmem>>, vector<64x1xf32>
    %c176 = arith.constant 176 : index
    %c0_16 = arith.constant 0 : index
    %596 = vector.load %arg3[%c176, %c0_16] : memref<182x96xf32, #tpu.memory_space<vmem>>, vector<6x64xf32>
    %c176_17 = arith.constant 176 : index
    %c64_18 = arith.constant 64 : index
    %597 = vector.load %arg3[%c176_17, %c64_18] : memref<182x96xf32, #tpu.memory_space<vmem>>, vector<6x1xf32>
    %598 = tpu.transpose %591, [1, 0] : vector<96x8xf32> -> vector<8x96xf32>
    %cst_19 = arith.constant dense<0.000000e+00> : vector<32x96xf32>
    %599 = tpu.matmul %592, %598, %cst_19 {dimension_numbers = #tpu.dot_dimension_numbers<[1], [0], [0], [1], [0, 0, 1, 1], [], []>} : vector<32x8xf32>, vector<8x96xf32>, vector<32x96xf32> -> vector<32x96xf32>
    %600 = vector.broadcast %593 : vector<32x1xf32> to vector<32x96xf32>
    %601 = arith.addf %599, %600 : vector<32x96xf32>
    %cst_20 = arith.constant 0.000000e+00 : f32
    %602 = vector.broadcast %cst_20 : f32 to vector<32x96xf32>
    %603 = arith.maximumf %601, %602 : vector<32x96xf32>
    %cst_21 = arith.constant dense<0.000000e+00> : vector<64x96xf32>
    %604 = tpu.matmul %594, %603, %cst_21 {dimension_numbers = #tpu.dot_dimension_numbers<[1], [0], [0], [1], [0, 0, 1, 1], [], []>} : vector<64x32xf32>, vector<32x96xf32>, vector<64x96xf32> -> vector<64x96xf32>
    %605 = vector.broadcast %595 : vector<64x1xf32> to vector<64x96xf32>
    %606 = arith.addf %604, %605 : vector<64x96xf32>
    %cst_22 = arith.constant 0.000000e+00 : f32
    %607 = vector.broadcast %cst_22 : f32 to vector<64x96xf32>
    %608 = arith.maximumf %606, %607 : vector<64x96xf32>
    %cst_23 = arith.constant dense<0.000000e+00> : vector<6x96xf32>
    %609 = tpu.matmul %596, %608, %cst_23 {dimension_numbers = #tpu.dot_dimension_numbers<[1], [0], [0], [1], [0, 0, 1, 1], [], []>} : vector<6x64xf32>, vector<64x96xf32>, vector<6x96xf32> -> vector<6x96xf32>
    %610 = vector.broadcast %597 : vector<6x1xf32> to vector<6x96xf32>
    %611 = arith.addf %609, %610 : vector<6x96xf32>
    %c72_24 = arith.constant 72 : index
    %c0_25 = arith.constant 0 : index
    %612 = vector.load %arg3[%c72_24, %c0_25] : memref<182x96xf32, #tpu.memory_space<vmem>>, vector<8x96xf32>
    %613 = vector.extract_strided_slice %611 {offsets = [0, 0], sizes = [6, 8], strides = [1, 1]} : vector<6x96xf32> to vector<6x8xf32>
    %614 = vector.extract_strided_slice %611 {offsets = [0, 8], sizes = [6, 8], strides = [1, 1]} : vector<6x96xf32> to vector<6x8xf32>
    %615 = vector.extract_strided_slice %611 {offsets = [0, 16], sizes = [6, 8], strides = [1, 1]} : vector<6x96xf32> to vector<6x8xf32>
    %616 = vector.extract_strided_slice %611 {offsets = [0, 24], sizes = [6, 8], strides = [1, 1]} : vector<6x96xf32> to vector<6x8xf32>
    %617 = vector.extract_strided_slice %611 {offsets = [0, 32], sizes = [6, 8], strides = [1, 1]} : vector<6x96xf32> to vector<6x8xf32>
    %618 = vector.extract_strided_slice %611 {offsets = [0, 40], sizes = [6, 8], strides = [1, 1]} : vector<6x96xf32> to vector<6x8xf32>
    %619 = vector.extract_strided_slice %611 {offsets = [0, 48], sizes = [6, 8], strides = [1, 1]} : vector<6x96xf32> to vector<6x8xf32>
    %620 = vector.extract_strided_slice %611 {offsets = [0, 56], sizes = [6, 8], strides = [1, 1]} : vector<6x96xf32> to vector<6x8xf32>
    %621 = vector.extract_strided_slice %611 {offsets = [0, 64], sizes = [6, 8], strides = [1, 1]} : vector<6x96xf32> to vector<6x8xf32>
    %622 = vector.extract_strided_slice %611 {offsets = [0, 72], sizes = [6, 8], strides = [1, 1]} : vector<6x96xf32> to vector<6x8xf32>
    %623 = vector.extract_strided_slice %611 {offsets = [0, 80], sizes = [6, 8], strides = [1, 1]} : vector<6x96xf32> to vector<6x8xf32>
    %624 = vector.extract_strided_slice %611 {offsets = [0, 88], sizes = [6, 8], strides = [1, 1]} : vector<6x96xf32> to vector<6x8xf32>
    %625 = arith.maximumf %613, %614 : vector<6x8xf32>
    %626 = arith.maximumf %615, %616 : vector<6x8xf32>
    %627 = arith.maximumf %617, %618 : vector<6x8xf32>
    %628 = arith.maximumf %619, %620 : vector<6x8xf32>
    %629 = arith.maximumf %621, %622 : vector<6x8xf32>
    %630 = arith.maximumf %623, %624 : vector<6x8xf32>
    %631 = arith.maximumf %625, %626 : vector<6x8xf32>
    %632 = arith.maximumf %627, %628 : vector<6x8xf32>
    %633 = arith.maximumf %629, %630 : vector<6x8xf32>
    %634 = arith.maximumf %631, %632 : vector<6x8xf32>
    %635 = arith.maximumf %634, %633 : vector<6x8xf32>
    %cst_26 = arith.constant dense<0.000000e+00> : vector<6x96xf32>
    %636 = tpu.matmul %635, %612, %cst_26 {dimension_numbers = #tpu.dot_dimension_numbers<[1], [0], [0], [1], [0, 0, 1, 1], [], []>} : vector<6x8xf32>, vector<8x96xf32>, vector<6x96xf32> -> vector<6x96xf32>
    %637 = arith.subf %611, %636 : vector<6x96xf32>
    %638 = math.exp %637 : vector<6x96xf32>
    %639 = vector.extract_strided_slice %638 {offsets = [0, 0], sizes = [6, 8], strides = [1, 1]} : vector<6x96xf32> to vector<6x8xf32>
    %640 = vector.extract_strided_slice %638 {offsets = [0, 8], sizes = [6, 8], strides = [1, 1]} : vector<6x96xf32> to vector<6x8xf32>
    %641 = vector.extract_strided_slice %638 {offsets = [0, 16], sizes = [6, 8], strides = [1, 1]} : vector<6x96xf32> to vector<6x8xf32>
    %642 = vector.extract_strided_slice %638 {offsets = [0, 24], sizes = [6, 8], strides = [1, 1]} : vector<6x96xf32> to vector<6x8xf32>
    %643 = vector.extract_strided_slice %638 {offsets = [0, 32], sizes = [6, 8], strides = [1, 1]} : vector<6x96xf32> to vector<6x8xf32>
    %644 = vector.extract_strided_slice %638 {offsets = [0, 40], sizes = [6, 8], strides = [1, 1]} : vector<6x96xf32> to vector<6x8xf32>
    %645 = vector.extract_strided_slice %638 {offsets = [0, 48], sizes = [6, 8], strides = [1, 1]} : vector<6x96xf32> to vector<6x8xf32>
    %646 = vector.extract_strided_slice %638 {offsets = [0, 56], sizes = [6, 8], strides = [1, 1]} : vector<6x96xf32> to vector<6x8xf32>
    %647 = vector.extract_strided_slice %638 {offsets = [0, 64], sizes = [6, 8], strides = [1, 1]} : vector<6x96xf32> to vector<6x8xf32>
    %648 = vector.extract_strided_slice %638 {offsets = [0, 72], sizes = [6, 8], strides = [1, 1]} : vector<6x96xf32> to vector<6x8xf32>
    %649 = vector.extract_strided_slice %638 {offsets = [0, 80], sizes = [6, 8], strides = [1, 1]} : vector<6x96xf32> to vector<6x8xf32>
    %650 = vector.extract_strided_slice %638 {offsets = [0, 88], sizes = [6, 8], strides = [1, 1]} : vector<6x96xf32> to vector<6x8xf32>
    %651 = arith.addf %639, %640 : vector<6x8xf32>
    %652 = arith.addf %641, %642 : vector<6x8xf32>
    %653 = arith.addf %643, %644 : vector<6x8xf32>
    %654 = arith.addf %645, %646 : vector<6x8xf32>
    %655 = arith.addf %647, %648 : vector<6x8xf32>
    %656 = arith.addf %649, %650 : vector<6x8xf32>
    %657 = arith.addf %651, %652 : vector<6x8xf32>
    %658 = arith.addf %653, %654 : vector<6x8xf32>
    %659 = arith.addf %655, %656 : vector<6x8xf32>
    %660 = arith.addf %657, %658 : vector<6x8xf32>
    %661 = arith.addf %660, %659 : vector<6x8xf32>
    %cst_27 = arith.constant 1.000000e+00 : f32
    %662 = vector.broadcast %cst_27 : f32 to vector<6x8xf32>
    %663 = arith.divf %662, %661 : vector<6x8xf32>
    %cst_28 = arith.constant dense<0.000000e+00> : vector<6x96xf32>
    %664 = tpu.matmul %663, %612, %cst_28 {dimension_numbers = #tpu.dot_dimension_numbers<[1], [0], [0], [1], [0, 0, 1, 1], [], []>} : vector<6x8xf32>, vector<8x96xf32>, vector<6x96xf32> -> vector<6x96xf32>
    %665 = arith.mulf %638, %664 : vector<6x96xf32>
    %c0_29 = arith.constant 0 : index
    %c0_30 = arith.constant 0 : index
    %c0_31 = arith.constant 0 : index
    %666 = vector.load %arg4[%c0_29, %c0_30, %c0_31] : memref<1x6x96xf32, #tpu.memory_space<vmem>>, vector<1x6x96xf32>
    %667 = vector.shape_cast %666 : vector<1x6x96xf32> to vector<6x96xf32>
    %668 = vector.shape_cast %665 : vector<6x96xf32> to vector<1x6x96xf32>
    tpu.vector_store %arg4[%c0_29, %c0_30, %c0_31], %668 {strides = array<i32>} : memref<1x6x96xf32, #tpu.memory_space<vmem>>, vector<1x6x96xf32>,
    return
  }
  func.func @transform_0(%arg0: i32, %arg1: memref<120xf32, #tpu.memory_space<smem>>) -> (i32, i32, i32) {
    %c0_i32 = arith.constant 0 : i32
    %c0_i32_0 = arith.constant 0 : i32
    %c0_i32_1 = arith.constant 0 : i32
    return %arg0, %c0_i32, %c0_i32_0 : i32, i32, i32
  }
  func.func @transform_1(%arg0: i32, %arg1: memref<120xf32, #tpu.memory_space<smem>>) -> (i32, i32) {
    %c0_i32 = arith.constant 0 : i32
    %c0_i32_0 = arith.constant 0 : i32
    %c0_i32_1 = arith.constant 0 : i32
    return %c0_i32, %c0_i32_0 : i32, i32
  }
  func.func @transform_2(%arg0: i32, %arg1: memref<120xf32, #tpu.memory_space<smem>>) -> (i32, i32, i32) {
    %c0_i32 = arith.constant 0 : i32
    %c0_i32_0 = arith.constant 0 : i32
    %c0_i32_1 = arith.constant 0 : i32
    return %arg0, %c0_i32, %c0_i32_0 : i32, i32, i32
  }
}

</mosaic_0001>

<llo_original>
// kernel: tpu_custom_call.1
$region0: #{tpu_custom_call.1}
  #allocation0 [shape = 'u32[]', space=smem, size = 0x4, offset = 0x4, fixed_abs, tag = 'smem constant byte address 0x4 - core index']
  #allocation1 [shape = 'u32[72,128]{1,0:T(1,128)}', space=vmem, size = 0x9000, scoped, tag = 'internal scratch']
  #allocation2 [shape = 's32[1]{0}', space=sflag, size = 0x4, scoped, tag = 'scoped memory for tpu_custom_call.1']
  #allocation3 [shape = 'u8[512]{0}', space=smem, size = 0x200, scoped, tag = 'prefetched SMEM operand 0']
  %s0 = inlined_call_operand.vmem [shape: f32[120], index: 0, kind: input, shape index: {}]
  %s1 = inlined_call_operand.vmem [shape: f32[2,26,26], index: 1, kind: input, shape index: {}]
  %s2 = inlined_call_operand.hbm [shape: f32[182,96], index: 2, kind: input, shape index: {}]
  %s3 = inlined_call_operand.vmem [shape: f32[2,6,96], index: 3, kind: output, shape index: {}]
  %s4 = sld [smem:[#allocation0]]
  $region45: #{tpu_custom_call.1} parent=0
    _
  %s6 = ssub.s32 1, %s4
  %s7 = scalar_select 0, %s6, %s4
  %s9 = sshll.u32 %s0, 4
  %s10 = int_to_ptr.vmem [resolvable:$true] %s9
  %12 = dma.vmem_to_smem %s10, 16, [#allocation3], [#allocation2]
  %14 = dma.done [#allocation2], 16
  %15 = sfence
  $region1: #{tpu_custom_call.1} parent=0
    #allocation4 [shape = 'u8[94208]{0}', space=vmem, size = 0x17000, scoped, tag = 'input window, operand 2, single buffered']
    #allocation5 [shape = 's32[2]{0}', space=sflag, size = 0x8, scoped, tag = 'scoped memory for tpu_custom_call.1']
    %16 = vsyncpa [#allocation5], 0
    loop: start=0, step=1, limit=4
    $region2: #{tpu_custom_call.1} parent=1 // loop_pre_header
      _
    $region3: #{tpu_custom_call.1} parent=1 // loop_header
      %s18 = sphi 0, %s22
      %p19 = scmp.ge.s32.totalorder %s18, 4
      %s28 = sphi 0, %s30
      %s31 = sphi 0, %s28
      %s32 = sphi 0, %s31
      %s48 = sphi 0, %s32
      %s52 = sphi 0, %s52
      %s54 = sphi 0, %s52
      %s55 = sphi 0, %s54
      %s69 = sphi 0, %s55
      %s75 = sphi 0, %s77
      %s78 = sphi 0, %s75
      %s79 = sphi 0, %s78
      %s95 = sphi 0, %s79
    $region4: #{tpu_custom_call.1} parent=1 // loop_header_branch
      %21 = sbr.rel (%p19) target = $region8
    $region5: #{tpu_custom_call.1} parent=1 // loop_body
      %s23 = ssub.s32 %s18, 1
      %s24 = ssub.s32 %s18, 2
      %s25 = sadd.s32 %s18, 1
      %s26 = ssub.s32 %s18, %s25
      %p27 = scmp.eq.s32.totalorder %s26, 0
      %s29 = sadd.s32 %s28, 1
      %s30 = scalar_select %p27, %s28, %s29
      %p33 = pneg %p27
      %p34 = scmp.eq.s32.totalorder %s18, 1
      %p35 = por %p33, %p34
      %p36 = scmp.ne.s32.totalorder %s28, %s31
      %p37 = scmp.eq.s32.totalorder %s18, 0
      %p38 = por %p36, %p37
      %p39 = scmp.ne.s32.totalorder %s28, %s31
      %p40 = scmp.eq.s32.totalorder %s23, 1
      %p41 = por %p39, %p40
      %p42 = scmp.ne.s32.totalorder %s31, %s32
      %p43 = scmp.eq.s32.totalorder %s23, 0
      %p44 = por %p42, %p43
      %p45 = scmp.ne.s32.totalorder %s31, %s32
      %p46 = scmp.eq.s32.totalorder %s24, 1
      %p47 = por %p45, %p46
      %p49 = scmp.ne.s32.totalorder %s32, %s48
      %p50 = scmp.eq.s32.totalorder %s24, 0
      %p51 = por %p49, %p50
      %s53 = sadd.s32 %s52, 1
      %p56 = scmp.eq.s32.totalorder %s18, 1
      %p57 = scmp.ne.s32.totalorder %s52, %s54
      %p58 = scmp.eq.s32.totalorder %s18, 0
      %p59 = por %p57, %p58
      %p60 = scmp.ne.s32.totalorder %s52, %s54
      %p61 = scmp.eq.s32.totalorder %s23, 1
      %p62 = por %p60, %p61
      %p63 = scmp.ne.s32.totalorder %s54, %s55
      %p64 = scmp.eq.s32.totalorder %s23, 0
      %p65 = por %p63, %p64
      %p66 = scmp.ne.s32.totalorder %s54, %s55
      %p67 = scmp.eq.s32.totalorder %s24, 1
      %p68 = por %p66, %p67
      %p70 = scmp.ne.s32.totalorder %s55, %s69
      %p71 = scmp.eq.s32.totalorder %s24, 0
      %p72 = por %p70, %p71
      %s73 = ssub.s32 %s18, %s25
      %p74 = scmp.eq.s32.totalorder %s73, 0
      %s76 = sadd.s32 %s75, 1
      %s77 = scalar_select %p74, %s75, %s76
      %p80 = pneg %p74
      %p81 = scmp.eq.s32.totalorder %s18, 1
      %p82 = por %p80, %p81
      %p83 = scmp.ne.s32.totalorder %s75, %s78
      %p84 = scmp.eq.s32.totalorder %s18, 0
      %p85 = por %p83, %p84
      %p86 = scmp.ne.s32.totalorder %s75, %s78
      %p87 = scmp.eq.s32.totalorder %s23, 1
      %p88 = por %p86, %p87
      %p89 = scmp.ne.s32.totalorder %s78, %s79
      %p90 = scmp.eq.s32.totalorder %s23, 0
      %p91 = por %p89, %p90
      %p92 = scmp.ne.s32.totalorder %s78, %s79
      %p93 = scmp.eq.s32.totalorder %s24, 1
      %p94 = por %p92, %p93
      %p96 = scmp.ne.s32.totalorder %s79, %s95
      %p97 = scmp.eq.s32.totalorder %s24, 0
      %p98 = por %p96, %p97
      %p99 = scmp.le.s32.totalorder 1, %s18
      %p100 = scmp.lt.s32.totalorder %s18, 3
      %p101 = pnand %p99, %p100
      %p102 = pneg %p101
      // Predicated region
      $region9: #{tpu_custom_call.1} parent=5 // pred_check
        _
      $region10: #{tpu_custom_call.1} parent=5 // pred_check_branch
        %104 = sbr.rel (%p101) target = $region12
      $region11: #{tpu_custom_call.1} parent=5 // pred_region
        %s105 = ssub.s32 %s18, 1
        // Predicated region
        $region13: #{tpu_custom_call.1} parent=11 // pred_check
          %p106 = pneg %p65
        $region14: #{tpu_custom_call.1} parent=11 // pred_check_branch
          %108 = sbr.rel (%p106) target = $region16
        $region15: #{tpu_custom_call.1} parent=11 // pred_region
          %110 = vsyncadd [#allocation5], 0
          %s111 = sshll.u32 %s2, 4
          %s112 = int_to_ptr.hbm [resolvable:$true] %s111
          %s113 = sshll.u32 [#allocation4], 4
          %s114 = int_to_ptr.vmem [resolvable:$true] %s113
          %119 = dma.hbm_to_vmem [thread:$0]  %s112, 2944, %s114, [#allocation5], 128, 128, 8
        $region16: #{tpu_custom_call.1} parent=11 // pred_fallthru
          _
      $region12: #{tpu_custom_call.1} parent=5 // pred_fallthru
        _
      %p120 = scmp.lt.s32.totalorder %s18, 2
      // Predicated region
      $region17: #{tpu_custom_call.1} parent=5 // pred_check
        %p121 = pneg %p120
      $region18: #{tpu_custom_call.1} parent=5 // pred_check_branch
        %123 = sbr.rel (%p121) target = $region20
      $region19: #{tpu_custom_call.1} parent=5 // pred_region
        // Predicated region
        $region21: #{tpu_custom_call.1} parent=19 // pred_check
          %p124 = pneg %p38
        $region22: #{tpu_custom_call.1} parent=19 // pred_check_branch
          %126 = sbr.rel (%p124) target = $region24
        $region23: #{tpu_custom_call.1} parent=19 // pred_region
          %p127 = scmp.lt.s32.totalorder %s18, 1
          %s128 = scalar_select %p127, %s18, 1
          %s129 = smul.addr %s128, 4
          %s130 = smul.addr %s129, 8
          %s131 = scalar_lea.vmem %s1, %s130
        $region24: #{tpu_custom_call.1} parent=19 // pred_fallthru
          _
      $region20: #{tpu_custom_call.1} parent=5 // pred_fallthru
        _
      %p132 = scmp.le.s32.totalorder 1, %s18
      %p133 = scmp.lt.s32.totalorder %s18, 3
      %p134 = pnand %p132, %p133
      %p135 = pneg %p134
      // Predicated region
      $region25: #{tpu_custom_call.1} parent=5 // pred_check
        _
      $region26: #{tpu_custom_call.1} parent=5 // pred_check_branch
        %137 = sbr.rel (%p134) target = $region28
      $region27: #{tpu_custom_call.1} parent=5 // pred_region
        %s138 = ssub.s32 %s18, 1
        // Predicated region
        $region29: #{tpu_custom_call.1} parent=27 // pred_check
          %p139 = pneg %p65
        $region30: #{tpu_custom_call.1} parent=27 // pred_check_branch
          %141 = sbr.rel (%p139) target = $region32
        $region31: #{tpu_custom_call.1} parent=27 // pred_region
          %143 = dma.done [#allocation5], 2944
        $region32: #{tpu_custom_call.1} parent=27 // pred_fallthru
          _
        %p144 = scmp.lt.s32.totalorder %s23, 1
        %s145 = scalar_select %p144, %s23, 1
        %s146 = smul.addr %s145, 4
        %s147 = smul.addr %s146, 8
        %s148 = scalar_lea.vmem %s1, %s147
        %p149 = pneg %p44
        %p150 = pneg %p41
        %p151 = pneg %p65
        %p152 = pneg %p62
        %p153 = pneg %p91
        %p154 = pneg %p88
        %p155 = scmp.lt.s32.totalorder %s23, 1
        %s156 = scalar_select %p155, %s23, 1
        %s157 = smul.addr %s156, 8
        %s158 = scalar_lea.vmem %s3, %s157
        %p159 = scmp.lt.s32.totalorder %s23, 1
        %s160 = scalar_select %p159, %s23, 1
        %s161 = smul.addr %s160, 4
        %s162 = smul.addr %s161, 8
        %s163 = scalar_lea.vmem %s1, %s162
        %p164 = scmp.lt.s32.totalorder %s23, 1
        %s165 = scalar_select %p164, %s23, 1
        %s166 = smul.addr %s165, 8
        %s167 = scalar_lea.vmem %s3, %s166
        %v168 = vld [vmem:[%s163] sm:$0xff]
        %v169 = vld [vmem:[%s163 + $0x8] sm:$0xff]
        %v170 = vld [vmem:[%s163 + $0x10] sm:$0xff]
        %v171 = vld [vmem:[%s163 + $0x18] sm:$0x3]
        %v172 = vld [vmem:[#allocation4] sm:$0xff]
        %v173 = vld [vmem:[#allocation4 + $0x8] sm:$0xff]
        %v174 = vld [vmem:[#allocation4 + $0x10] sm:$0xff]
        %v175 = vld [vmem:[#allocation4 + $0x18] sm:$0xff]
        %v176 = vld [vmem:[#allocation4 + $0x20] sm:$0xff]
        %v177 = vld [vmem:[#allocation4 + $0x28] sm:$0xff]
        %v178 = vld [vmem:[#allocation4 + $0x30] sm:$0xff]
        %v179 = vld [vmem:[#allocation4 + $0x38] sm:$0xff]
        %v180 = vld [vmem:[#allocation4 + $0x40] sm:$0x3]
        %vm181 = vcmask 211968
        %v183 = vsel %vm181, %v168, 0
        %v186 = vsel %vm181, %v169, 0
        %v189 = vsel %vm181, %v170, 0
        %v192 = vsel %vm181, %v171, 0
        %vm194 = vcmask 1041408
        %v196 = vsel %vm194, %v180, 0
        %198 = vmatpush.msra.mxu0 0.0
        %199 = vmatpush.msra.mxu0 0.0
        %200 = vmatpush.msra.mxu0 0.0
        %201 = vmatpush.msra.mxu0 0.0
        %202 = vmatpush.msra.mxu0 0.0
        %203 = vmatpush.msra.mxu0 0.0
        %204 = vmatpush.msra.mxu0 0.0
        %205 = vmatpush.msra.mxu0 0.0
        %206 = vmatpush.msra.mxu0 0.0
        %207 = vmatpush.msra.mxu0 0.0
        %208 = vmatpush.msra.mxu0 0.0
        %209 = vmatpush.msra.mxu0 0.0
        %210 = vmatpush.msra.mxu0 %v196
        %211 = vmatpush.msra.mxu0 %v179
        %212 = vmatpush.msra.mxu0 %v178
        %213 = vmatpush.msra.mxu0 %v177
        %214 = vmatmul.f32.gmra.mxu0 %v183
        %v215 = vpop.f32.mrf.mxu0
        %v216 = vadd.f32 0.0, %v215
        %217 = vmatmul.f32.gmra.mxu0 %v186
        %v218 = vpop.f32.mrf.mxu0
        %v219 = vadd.f32 0.0, %v218
        %220 = vmatmul.f32.gmra.mxu0 %v189
        %v221 = vpop.f32.mrf.mxu0
        %v222 = vadd.f32 0.0, %v221
        %223 = vmatmul.f32.gmra.mxu0 %v192
        %v224 = vpop.f32.mrf.mxu0
        %v225 = vadd.f32 0.0, %v224
        %226 = vdwg.mxu0
        %v228 = vsel %vm181, %v172, 0
        %v231 = vsel %vm181, %v173, 0
        %v234 = vsel %vm181, %v174, 0
        %v237 = vsel %vm181, %v175, 0
        %v240 = vsel %vm181, %v176, 0
        %v243 = vsel %vm194, %v225, 0
        %245 = vmatpush.msra.mxu0 0.0
        %246 = vmatpush.msra.mxu0 0.0
        %247 = vmatpush.msra.mxu0 0.0
        %248 = vmatpush.msra.mxu0 0.0
        %249 = vmatpush.msra.mxu0 0.0
        %250 = vmatpush.msra.mxu0 0.0
        %251 = vmatpush.msra.mxu0 0.0
        %252 = vmatpush.msra.mxu0 0.0
        %253 = vmatpush.msra.mxu0 0.0
        %254 = vmatpush.msra.mxu0 0.0
        %255 = vmatpush.msra.mxu0 0.0
        %256 = vmatpush.msra.mxu0 0.0
        %257 = vmatpush.msra.mxu0 %v243
        %258 = vmatpush.msra.mxu0 %v222
        %259 = vmatpush.msra.mxu0 %v219
        %260 = vmatpush.msra.mxu0 %v216
        %261 = vmatmul.f32.gmra.mxu0 %v228
        %v262 = vpop.f32.mrf.mxu0
        %v263 = vadd.f32 0.0, %v262
        %264 = vmatmul.f32.gmra.mxu0 %v231
        %v265 = vpop.f32.mrf.mxu0
        %v266 = vadd.f32 0.0, %v265
        %267 = vmatmul.f32.gmra.mxu0 %v234
        %v268 = vpop.f32.mrf.mxu0
        %v269 = vadd.f32 0.0, %v268
        %270 = vmatmul.f32.gmra.mxu0 %v237
        %v271 = vpop.f32.mrf.mxu0
        %v272 = vadd.f32 0.0, %v271
        %273 = vmatmul.f32.gmra.mxu0 %v240
        %v274 = vpop.f32.mrf.mxu0
        %v275 = vadd.f32 0.0, %v274
        %276 = vdwg.mxu0
        %s277 = sld [smem:[#allocation3]]
        %v278 = vstv %s277
        %v279 = vmul.f32 %v278, %v263
        %v280 = vmul.f32 %v278, %v266
        %v281 = vmul.f32 %v278, %v269
        %s282 = sld [smem:[#allocation3 + $0x1]]
        %v283 = vstv %s282
        %v284 = vmul.f32 %v283, %v263
        %v285 = vmul.f32 %v283, %v266
        %v286 = vmul.f32 %v283, %v269
        %290 = vrot.lane.b32.xlu0 %v284, 104
        %v291 = vpop.permute.xlu0 %290
        %292 = vrot.lane.b32.xlu0 %v285, 104
        %v293 = vpop.permute.xlu0 %292
        %294 = vrot.lane.b32.xlu0 %v286, 104
        %v295 = vpop.permute.xlu0 %294
        %v299 = vadd.f32 %v279, %v291
        %v300 = vadd.f32 %v280, %v293
        %v301 = vadd.f32 %v281, %v295
        %s302 = sld [smem:[#allocation3 + $0x2]]
        %v303 = vstv %s302
        %v304 = vmul.f32 %v303, %v263
        %v305 = vmul.f32 %v303, %v266
        %v306 = vmul.f32 %v303, %v269
        %310 = vrot.lane.b32.xlu0 %v304, 80
        %v311 = vpop.permute.xlu0 %310
        %312 = vrot.lane.b32.xlu0 %v305, 80
        %v313 = vpop.permute.xlu0 %312
        %314 = vrot.lane.b32.xlu0 %v306, 80
        %v315 = vpop.permute.xlu0 %314
        %v319 = vadd.f32 %v299, %v311
        %v320 = vadd.f32 %v300, %v313
        %v321 = vadd.f32 %v301, %v315
        %s322 = sld [smem:[#allocation3 + $0x3]]
        %v323 = vstv %s322
        %v324 = vmul.f32 %v323, %v266
        %v325 = vmul.f32 %v323, %v269
        %v326 = vmul.f32 %v323, %v272
        %v327 = vadd.f32 %v319, %v324
        %v328 = vadd.f32 %v320, %v325
        %v329 = vadd.f32 %v321, %v326
        %s330 = sld [smem:[#allocation3 + $0x4]]
        %v331 = vstv %s330
        %v332 = vmul.f32 %v331, %v266
        %v333 = vmul.f32 %v331, %v269
        %v334 = vmul.f32 %v331, %v272
        %338 = vrot.lane.b32.xlu0 %v332, 104
        %v339 = vpop.permute.xlu0 %338
        %340 = vrot.lane.b32.xlu0 %v333, 104
        %v341 = vpop.permute.xlu0 %340
        %342 = vrot.lane.b32.xlu0 %v334, 104
        %v343 = vpop.permute.xlu0 %342
        %v347 = vadd.f32 %v327, %v339
        %v348 = vadd.f32 %v328, %v341
        %v349 = vadd.f32 %v329, %v343
        %s350 = sld [smem:[#allocation3 + $0x5]]
        %v351 = vstv %s350
        %v352 = vmul.f32 %v351, %v266
        %v353 = vmul.f32 %v351, %v269
        %v354 = vmul.f32 %v351, %v272
        %358 = vrot.lane.b32.xlu0 %v352, 80
        %v359 = vpop.permute.xlu0 %358
        %360 = vrot.lane.b32.xlu0 %v353, 80
        %v361 = vpop.permute.xlu0 %360
        %362 = vrot.lane.b32.xlu0 %v354, 80
        %v363 = vpop.permute.xlu0 %362
        %v367 = vadd.f32 %v347, %v359
        %v368 = vadd.f32 %v348, %v361
        %v369 = vadd.f32 %v349, %v363
        %s370 = sld [smem:[#allocation3 + $0x6]]
        %v371 = vstv %s370
        %v372 = vmul.f32 %v371, %v269
        %v373 = vmul.f32 %v371, %v272
        %v374 = vmul.f32 %v371, %v275
        %v375 = vadd.f32 %v367, %v372
        %v376 = vadd.f32 %v368, %v373
        %v377 = vadd.f32 %v369, %v374
        %s378 = sld [smem:[#allocation3 + $0x7]]
        %v379 = vstv %s378
        %v380 = vmul.f32 %v379, %v269
        %v381 = vmul.f32 %v379, %v272
        %v382 = vmul.f32 %v379, %v275
        %386 = vrot.lane.b32.xlu0 %v380, 104
        %v387 = vpop.permute.xlu0 %386
        %388 = vrot.lane.b32.xlu0 %v381, 104
        %v389 = vpop.permute.xlu0 %388
        %390 = vrot.lane.b32.xlu0 %v382, 104
        %v391 = vpop.permute.xlu0 %390
        %v395 = vadd.f32 %v375, %v387
        %v396 = vadd.f32 %v376, %v389
        %v397 = vadd.f32 %v377, %v391
        %s398 = sld [smem:[#allocation3 + $0x8]]
        %v399 = vstv %s398
        %v400 = vmul.f32 %v399, %v269
        %v401 = vmul.f32 %v399, %v272
        %v402 = vmul.f32 %v399, %v275
        %406 = vrot.lane.b32.xlu0 %v400, 80
        %v407 = vpop.permute.xlu0 %406
        %408 = vrot.lane.b32.xlu0 %v401, 80
        %v409 = vpop.permute.xlu0 %408
        %410 = vrot.lane.b32.xlu0 %v402, 80
        %v411 = vpop.permute.xlu0 %410
        %v415 = vadd.f32 %v395, %v407
        %v416 = vadd.f32 %v396, %v409
        %v417 = vadd.f32 %v397, %v411
        %421 = vrot.lane.b32.xlu0 %v415, 120
        %v422 = vpop.permute.xlu0 %421
        %423 = vrot.lane.b32.xlu0 %v416, 120
        %v424 = vpop.permute.xlu0 %423
        %425 = vrot.lane.b32.xlu0 %v417, 120
        %v426 = vpop.permute.xlu0 %425
        %v430 = vmax.f32 %v415, %v422
        %v431 = vmax.f32 %v416, %v424
        %v432 = vmax.f32 %v417, %v426
        %433 = vrot.lane.b32.xlu0 %v415, 112
        %v434 = vpop.permute.xlu0 %433
        %435 = vrot.lane.b32.xlu0 %v416, 112
        %v436 = vpop.permute.xlu0 %435
        %437 = vrot.lane.b32.xlu0 %v417, 112
        %v438 = vpop.permute.xlu0 %437
        %v442 = vmax.f32 %v430, %v434
        %v443 = vmax.f32 %v431, %v436
        %v444 = vmax.f32 %v432, %v438
        %v445 = vmax.f32 %v442, %v443
        %v446 = vmax.f32 %v445, %v444
        %s447 = sld [smem:[#allocation3 + $0x9]]
        %v448 = vstv %s447
        %v449 = vadd.f32 %v446, %v448
        %s450 = sld [smem:[#allocation3 + $0xa]]
        %v451 = vstv %s450
        %v452 = vmul.f32 %v451, %v263
        %v453 = vmul.f32 %v451, %v266
        %v454 = vmul.f32 %v451, %v269
        %s455 = sld [smem:[#allocation3 + $0xb]]
        %v456 = vstv %s455
        %v457 = vmul.f32 %v456, %v263
        %v458 = vmul.f32 %v456, %v266
        %v459 = vmul.f32 %v456, %v269
        %463 = vrot.lane.b32.xlu0 %v457, 104
        %v464 = vpop.permute.xlu0 %463
        %465 = vrot.lane.b32.xlu0 %v458, 104
        %v466 = vpop.permute.xlu0 %465
        %467 = vrot.lane.b32.xlu0 %v459, 104
        %v468 = vpop.permute.xlu0 %467
        %v472 = vadd.f32 %v452, %v464
        %v473 = vadd.f32 %v453, %v466
        %v474 = vadd.f32 %v454, %v468
        %s475 = sld [smem:[#allocation3 + $0xc]]
        %v476 = vstv %s475
        %v477 = vmul.f32 %v476, %v263
        %v478 = vmul.f32 %v476, %v266
        %v479 = vmul.f32 %v476, %v269
        %483 = vrot.lane.b32.xlu0 %v477, 80
        %v484 = vpop.permute.xlu0 %483
        %485 = vrot.lane.b32.xlu0 %v478, 80
        %v486 = vpop.permute.xlu0 %485
        %487 = vrot.lane.b32.xlu0 %v479, 80
        %v488 = vpop.permute.xlu0 %487
        %v492 = vadd.f32 %v472, %v484
        %v493 = vadd.f32 %v473, %v486
        %v494 = vadd.f32 %v474, %v488
        %s495 = sld [smem:[#allocation3 + $0xd]]
        %v496 = vstv %s495
        %v497 = vmul.f32 %v496, %v266
        %v498 = vmul.f32 %v496, %v269
        %v499 = vmul.f32 %v496, %v272
        %v500 = vadd.f32 %v492, %v497
        %v501 = vadd.f32 %v493, %v498
        %v502 = vadd.f32 %v494, %v499
        %s503 = sld [smem:[#allocation3 + $0xe]]
        %v504 = vstv %s503
        %v505 = vmul.f32 %v504, %v266
        %v506 = vmul.f32 %v504, %v269
        %v507 = vmul.f32 %v504, %v272
        %511 = vrot.lane.b32.xlu0 %v505, 104
        %v512 = vpop.permute.xlu0 %511
        %513 = vrot.lane.b32.xlu0 %v506, 104
        %v514 = vpop.permute.xlu0 %513
        %515 = vrot.lane.b32.xlu0 %v507, 104
        %v516 = vpop.permute.xlu0 %515
        %v520 = vadd.f32 %v500, %v512
        %v521 = vadd.f32 %v501, %v514
        %v522 = vadd.f32 %v502, %v516
        %s523 = sld [smem:[#allocation3 + $0xf]]
        %v524 = vstv %s523
        %v525 = vmul.f32 %v524, %v266
        %v526 = vmul.f32 %v524, %v269
        %v527 = vmul.f32 %v524, %v272
        %531 = vrot.lane.b32.xlu0 %v525, 80
        %v532 = vpop.permute.xlu0 %531
        %533 = vrot.lane.b32.xlu0 %v526, 80
        %v534 = vpop.permute.xlu0 %533
        %535 = vrot.lane.b32.xlu0 %v527, 80
        %v536 = vpop.permute.xlu0 %535
        %v540 = vadd.f32 %v520, %v532
        %v541 = vadd.f32 %v521, %v534
        %v542 = vadd.f32 %v522, %v536
        %s543 = sld [smem:[#allocation3 + $0x10]]
        %v544 = vstv %s543
        %v545 = vmul.f32 %v544, %v269
        %v546 = vmul.f32 %v544, %v272
        %v547 = vmul.f32 %v544, %v275
        %v548 = vadd.f32 %v540, %v545
        %v549 = vadd.f32 %v541, %v546
        %v550 = vadd.f32 %v542, %v547
        %s551 = sld [smem:[#allocation3 + $0x11]]
        %v552 = vstv %s551
        %v553 = vmul.f32 %v552, %v269
        %v554 = vmul.f32 %v552, %v272
        %v555 = vmul.f32 %v552, %v275
        %559 = vrot.lane.b32.xlu0 %v553, 104
        %v560 = vpop.permute.xlu0 %559
        %561 = vrot.lane.b32.xlu0 %v554, 104
        %v562 = vpop.permute.xlu0 %561
        %563 = vrot.lane.b32.xlu0 %v555, 104
        %v564 = vpop.permute.xlu0 %563
        %v568 = vadd.f32 %v548, %v560
        %v569 = vadd.f32 %v549, %v562
        %v570 = vadd.f32 %v550, %v564
        %s571 = sld [smem:[#allocation3 + $0x12]]
        %v572 = vstv %s571
        %v573 = vmul.f32 %v572, %v269
        %v574 = vmul.f32 %v572, %v272
        %v575 = vmul.f32 %v572, %v275
        %579 = vrot.lane.b32.xlu0 %v573, 80
        %v580 = vpop.permute.xlu0 %579
        %581 = vrot.lane.b32.xlu0 %v574, 80
        %v582 = vpop.permute.xlu0 %581
        %583 = vrot.lane.b32.xlu0 %v575, 80
        %v584 = vpop.permute.xlu0 %583
        %v588 = vadd.f32 %v568, %v580
        %v589 = vadd.f32 %v569, %v582
        %v590 = vadd.f32 %v570, %v584
        %594 = vrot.lane.b32.xlu0 %v588, 120
        %v595 = vpop.permute.xlu0 %594
        %596 = vrot.lane.b32.xlu0 %v589, 120
        %v597 = vpop.permute.xlu0 %596
        %598 = vrot.lane.b32.xlu0 %v590, 120
        %v599 = vpop.permute.xlu0 %598
        %v603 = vmax.f32 %v588, %v595
        %v604 = vmax.f32 %v589, %v597
        %v605 = vmax.f32 %v590, %v599
        %606 = vrot.lane.b32.xlu0 %v588, 112
        %v607 = vpop.permute.xlu0 %606
        %608 = vrot.lane.b32.xlu0 %v589, 112
        %v609 = vpop.permute.xlu0 %608
        %610 = vrot.lane.b32.xlu0 %v590, 112
        %v611 = vpop.permute.xlu0 %610
        %v615 = vmax.f32 %v603, %v607
        %v616 = vmax.f32 %v604, %v609
        %v617 = vmax.f32 %v605, %v611
        %v618 = vmax.f32 %v615, %v616
        %v619 = vmax.f32 %v618, %v617
        %s620 = sld [smem:[#allocation3 + $0x13]]
        %v621 = vstv %s620
        %v622 = vadd.f32 %v619, %v621
        %s623 = sld [smem:[#allocation3 + $0x14]]
        %v624 = vstv %s623
        %v625 = vmul.f32 %v624, %v263
        %v626 = vmul.f32 %v624, %v266
        %v627 = vmul.f32 %v624, %v269
        %s628 = sld [smem:[#allocation3 + $0x15]]
        %v629 = vstv %s628
        %v630 = vmul.f32 %v629, %v263
        %v631 = vmul.f32 %v629, %v266
        %v632 = vmul.f32 %v629, %v269
        %636 = vrot.lane.b32.xlu0 %v630, 104
        %v637 = vpop.permute.xlu0 %636
        %638 = vrot.lane.b32.xlu0 %v631, 104
        %v639 = vpop.permute.xlu0 %638
        %640 = vrot.lane.b32.xlu0 %v632, 104
        %v641 = vpop.permute.xlu0 %640
        %v645 = vadd.f32 %v625, %v637
        %v646 = vadd.f32 %v626, %v639
        %v647 = vadd.f32 %v627, %v641
        %s648 = sld [smem:[#allocation3 + $0x16]]
        %v649 = vstv %s648
        %v650 = vmul.f32 %v649, %v263
        %v651 = vmul.f32 %v649, %v266
        %v652 = vmul.f32 %v649, %v269
        %656 = vrot.lane.b32.xlu0 %v650, 80
        %v657 = vpop.permute.xlu0 %656
        %658 = vrot.lane.b32.xlu0 %v651, 80
        %v659 = vpop.permute.xlu0 %658
        %660 = vrot.lane.b32.xlu0 %v652, 80
        %v661 = vpop.permute.xlu0 %660
        %v665 = vadd.f32 %v645, %v657
        %v666 = vadd.f32 %v646, %v659
        %v667 = vadd.f32 %v647, %v661
        %s668 = sld [smem:[#allocation3 + $0x17]]
        %v669 = vstv %s668
        %v670 = vmul.f32 %v669, %v266
        %v671 = vmul.f32 %v669, %v269
        %v672 = vmul.f32 %v669, %v272
        %v673 = vadd.f32 %v665, %v670
        %v674 = vadd.f32 %v666, %v671
        %v675 = vadd.f32 %v667, %v672
        %s676 = sld [smem:[#allocation3 + $0x18]]
        %v677 = vstv %s676
        %v678 = vmul.f32 %v677, %v266
        %v679 = vmul.f32 %v677, %v269
        %v680 = vmul.f32 %v677, %v272
        %684 = vrot.lane.b32.xlu0 %v678, 104
        %v685 = vpop.permute.xlu0 %684
        %686 = vrot.lane.b32.xlu0 %v679, 104
        %v687 = vpop.permute.xlu0 %686
        %688 = vrot.lane.b32.xlu0 %v680, 104
        %v689 = vpop.permute.xlu0 %688
        %v693 = vadd.f32 %v673, %v685
        %v694 = vadd.f32 %v674, %v687
        %v695 = vadd.f32 %v675, %v689
        %s696 = sld [smem:[#allocation3 + $0x19]]
        %v697 = vstv %s696
        %v698 = vmul.f32 %v697, %v266
        %v699 = vmul.f32 %v697, %v269
        %v700 = vmul.f32 %v697, %v272
        %704 = vrot.lane.b32.xlu0 %v698, 80
        %v705 = vpop.permute.xlu0 %704
        %706 = vrot.lane.b32.xlu0 %v699, 80
        %v707 = vpop.permute.xlu0 %706
        %708 = vrot.lane.b32.xlu0 %v700, 80
        %v709 = vpop.permute.xlu0 %708
        %v713 = vadd.f32 %v693, %v705
        %v714 = vadd.f32 %v694, %v707
        %v715 = vadd.f32 %v695, %v709
        %s716 = sld [smem:[#allocation3 + $0x1a]]
        %v717 = vstv %s716
        %v718 = vmul.f32 %v717, %v269
        %v719 = vmul.f32 %v717, %v272
        %v720 = vmul.f32 %v717, %v275
        %v721 = vadd.f32 %v713, %v718
        %v722 = vadd.f32 %v714, %v719
        %v723 = vadd.f32 %v715, %v720
        %s724 = sld [smem:[#allocation3 + $0x1b]]
        %v725 = vstv %s724
        %v726 = vmul.f32 %v725, %v269
        %v727 = vmul.f32 %v725, %v272
        %v728 = vmul.f32 %v725, %v275
        %732 = vrot.lane.b32.xlu0 %v726, 104
        %v733 = vpop.permute.xlu0 %732
        %734 = vrot.lane.b32.xlu0 %v727, 104
        %v735 = vpop.permute.xlu0 %734
        %736 = vrot.lane.b32.xlu0 %v728, 104
        %v737 = vpop.permute.xlu0 %736
        %v741 = vadd.f32 %v721, %v733
        %v742 = vadd.f32 %v722, %v735
        %v743 = vadd.f32 %v723, %v737
        %s744 = sld [smem:[#allocation3 + $0x1c]]
        %v745 = vstv %s744
        %v746 = vmul.f32 %v745, %v269
        %v747 = vmul.f32 %v745, %v272
        %v748 = vmul.f32 %v745, %v275
        %752 = vrot.lane.b32.xlu0 %v746, 80
        %v753 = vpop.permute.xlu0 %752
        %754 = vrot.lane.b32.xlu0 %v747, 80
        %v755 = vpop.permute.xlu0 %754
        %756 = vrot.lane.b32.xlu0 %v748, 80
        %v757 = vpop.permute.xlu0 %756
        %v761 = vadd.f32 %v741, %v753
        %v762 = vadd.f32 %v742, %v755
        %v763 = vadd.f32 %v743, %v757
        %767 = vrot.lane.b32.xlu0 %v761, 120
        %v768 = vpop.permute.xlu0 %767
        %769 = vrot.lane.b32.xlu0 %v762, 120
        %v770 = vpop.permute.xlu0 %769
        %771 = vrot.lane.b32.xlu0 %v763, 120
        %v772 = vpop.permute.xlu0 %771
        %v776 = vmax.f32 %v761, %v768
        %v777 = vmax.f32 %v762, %v770
        %v778 = vmax.f32 %v763, %v772
        %779 = vrot.lane.b32.xlu0 %v761, 112
        %v780 = vpop.permute.xlu0 %779
        %781 = vrot.lane.b32.xlu0 %v762, 112
        %v782 = vpop.permute.xlu0 %781
        %783 = vrot.lane.b32.xlu0 %v763, 112
        %v784 = vpop.permute.xlu0 %783
        %v788 = vmax.f32 %v776, %v780
        %v789 = vmax.f32 %v777, %v782
        %v790 = vmax.f32 %v778, %v784
        %v791 = vmax.f32 %v788, %v789
        %v792 = vmax.f32 %v791, %v790
        %s793 = sld [smem:[#allocation3 + $0x1d]]
        %v794 = vstv %s793
        %v795 = vadd.f32 %v792, %v794
        %s796 = sld [smem:[#allocation3 + $0x1e]]
        %v797 = vstv %s796
        %v798 = vmul.f32 %v797, %v263
        %v799 = vmul.f32 %v797, %v266
        %v800 = vmul.f32 %v797, %v269
        %s801 = sld [smem:[#allocation3 + $0x1f]]
        %v802 = vstv %s801
        %v803 = vmul.f32 %v802, %v263
        %v804 = vmul.f32 %v802, %v266
        %v805 = vmul.f32 %v802, %v269
        %809 = vrot.lane.b32.xlu0 %v803, 104
        %v810 = vpop.permute.xlu0 %809
        %811 = vrot.lane.b32.xlu0 %v804, 104
        %v812 = vpop.permute.xlu0 %811
        %813 = vrot.lane.b32.xlu0 %v805, 104
        %v814 = vpop.permute.xlu0 %813
        %v818 = vadd.f32 %v798, %v810
        %v819 = vadd.f32 %v799, %v812
        %v820 = vadd.f32 %v800, %v814
        %s821 = sld [smem:[#allocation3 + $0x20]]
        %v822 = vstv %s821
        %v823 = vmul.f32 %v822, %v263
        %v824 = vmul.f32 %v822, %v266
        %v825 = vmul.f32 %v822, %v269
        %829 = vrot.lane.b32.xlu0 %v823, 80
        %v830 = vpop.permute.xlu0 %829
        %831 = vrot.lane.b32.xlu0 %v824, 80
        %v832 = vpop.permute.xlu0 %831
        %833 = vrot.lane.b32.xlu0 %v825, 80
        %v834 = vpop.permute.xlu0 %833
        %v838 = vadd.f32 %v818, %v830
        %v839 = vadd.f32 %v819, %v832
        %v840 = vadd.f32 %v820, %v834
        %s841 = sld [smem:[#allocation3 + $0x21]]
        %v842 = vstv %s841
        %v843 = vmul.f32 %v842, %v266
        %v844 = vmul.f32 %v842, %v269
        %v845 = vmul.f32 %v842, %v272
        %v846 = vadd.f32 %v838, %v843
        %v847 = vadd.f32 %v839, %v844
        %v848 = vadd.f32 %v840, %v845
        %s849 = sld [smem:[#allocation3 + $0x22]]
        %v850 = vstv %s849
        %v851 = vmul.f32 %v850, %v266
        %v852 = vmul.f32 %v850, %v269
        %v853 = vmul.f32 %v850, %v272
        %857 = vrot.lane.b32.xlu0 %v851, 104
        %v858 = vpop.permute.xlu0 %857
        %859 = vrot.lane.b32.xlu0 %v852, 104
        %v860 = vpop.permute.xlu0 %859
        %861 = vrot.lane.b32.xlu0 %v853, 104
        %v862 = vpop.permute.xlu0 %861
        %v866 = vadd.f32 %v846, %v858
        %v867 = vadd.f32 %v847, %v860
        %v868 = vadd.f32 %v848, %v862
        %s869 = sld [smem:[#allocation3 + $0x23]]
        %v870 = vstv %s869
        %v871 = vmul.f32 %v870, %v266
        %v872 = vmul.f32 %v870, %v269
        %v873 = vmul.f32 %v870, %v272
        %877 = vrot.lane.b32.xlu0 %v871, 80
        %v878 = vpop.permute.xlu0 %877
        %879 = vrot.lane.b32.xlu0 %v872, 80
        %v880 = vpop.permute.xlu0 %879
        %881 = vrot.lane.b32.xlu0 %v873, 80
        %v882 = vpop.permute.xlu0 %881
        %v886 = vadd.f32 %v866, %v878
        %v887 = vadd.f32 %v867, %v880
        %v888 = vadd.f32 %v868, %v882
        %s889 = sld [smem:[#allocation3 + $0x24]]
        %v890 = vstv %s889
        %v891 = vmul.f32 %v890, %v269
        %v892 = vmul.f32 %v890, %v272
        %v893 = vmul.f32 %v890, %v275
        %v894 = vadd.f32 %v886, %v891
        %v895 = vadd.f32 %v887, %v892
        %v896 = vadd.f32 %v888, %v893
        %s897 = sld [smem:[#allocation3 + $0x25]]
        %v898 = vstv %s897
        %v899 = vmul.f32 %v898, %v269
        %v900 = vmul.f32 %v898, %v272
        %v901 = vmul.f32 %v898, %v275
        %905 = vrot.lane.b32.xlu0 %v899, 104
        %v906 = vpop.permute.xlu0 %905
        %907 = vrot.lane.b32.xlu0 %v900, 104
        %v908 = vpop.permute.xlu0 %907
        %909 = vrot.lane.b32.xlu0 %v901, 104
        %v910 = vpop.permute.xlu0 %909
        %v914 = vadd.f32 %v894, %v906
        %v915 = vadd.f32 %v895, %v908
        %v916 = vadd.f32 %v896, %v910
        %s917 = sld [smem:[#allocation3 + $0x26]]
        %v918 = vstv %s917
        %v919 = vmul.f32 %v918, %v269
        %v920 = vmul.f32 %v918, %v272
        %v921 = vmul.f32 %v918, %v275
        %925 = vrot.lane.b32.xlu0 %v919, 80
        %v926 = vpop.permute.xlu0 %925
        %927 = vrot.lane.b32.xlu0 %v920, 80
        %v928 = vpop.permute.xlu0 %927
        %929 = vrot.lane.b32.xlu0 %v921, 80
        %v930 = vpop.permute.xlu0 %929
        %v934 = vadd.f32 %v914, %v926
        %v935 = vadd.f32 %v915, %v928
        %v936 = vadd.f32 %v916, %v930
        %940 = vrot.lane.b32.xlu0 %v934, 120
        %v941 = vpop.permute.xlu0 %940
        %942 = vrot.lane.b32.xlu0 %v935, 120
        %v943 = vpop.permute.xlu0 %942
        %944 = vrot.lane.b32.xlu0 %v936, 120
        %v945 = vpop.permute.xlu0 %944
        %v949 = vmax.f32 %v934, %v941
        %v950 = vmax.f32 %v935, %v943
        %v951 = vmax.f32 %v936, %v945
        %952 = vrot.lane.b32.xlu0 %v934, 112
        %v953 = vpop.permute.xlu0 %952
        %954 = vrot.lane.b32.xlu0 %v935, 112
        %v955 = vpop.permute.xlu0 %954
        %956 = vrot.lane.b32.xlu0 %v936, 112
        %v957 = vpop.permute.xlu0 %956
        %v961 = vmax.f32 %v949, %v953
        %v962 = vmax.f32 %v950, %v955
        %v963 = vmax.f32 %v951, %v957
        %v964 = vmax.f32 %v961, %v962
        %v965 = vmax.f32 %v964, %v963
        %s966 = sld [smem:[#allocation3 + $0x27]]
        %v967 = vstv %s966
        %v968 = vadd.f32 %v965, %v967
        %s969 = sld [smem:[#allocation3 + $0x28]]
        %v970 = vstv %s969
        %v971 = vmul.f32 %v970, %v263
        %v972 = vmul.f32 %v970, %v266
        %v973 = vmul.f32 %v970, %v269
        %s974 = sld [smem:[#allocation3 + $0x29]]
        %v975 = vstv %s974
        %v976 = vmul.f32 %v975, %v263
        %v977 = vmul.f32 %v975, %v266
        %v978 = vmul.f32 %v975, %v269
        %982 = vrot.lane.b32.xlu0 %v976, 104
        %v983 = vpop.permute.xlu0 %982
        %984 = vrot.lane.b32.xlu0 %v977, 104
        %v985 = vpop.permute.xlu0 %984
        %986 = vrot.lane.b32.xlu0 %v978, 104
        %v987 = vpop.permute.xlu0 %986
        %v991 = vadd.f32 %v971, %v983
        %v992 = vadd.f32 %v972, %v985
        %v993 = vadd.f32 %v973, %v987
        %s994 = sld [smem:[#allocation3 + $0x2a]]
        %v995 = vstv %s994
        %v996 = vmul.f32 %v995, %v263
        %v997 = vmul.f32 %v995, %v266
        %v998 = vmul.f32 %v995, %v269
        %1002 = vrot.lane.b32.xlu0 %v996, 80
        %v1003 = vpop.permute.xlu0 %1002
        %1004 = vrot.lane.b32.xlu0 %v997, 80
        %v1005 = vpop.permute.xlu0 %1004
        %1006 = vrot.lane.b32.xlu0 %v998, 80
        %v1007 = vpop.permute.xlu0 %1006
        %v1011 = vadd.f32 %v991, %v1003
        %v1012 = vadd.f32 %v992, %v1005
        %v1013 = vadd.f32 %v993, %v1007
        %s1014 = sld [smem:[#allocation3 + $0x2b]]
        %v1015 = vstv %s1014
        %v1016 = vmul.f32 %v1015, %v266
        %v1017 = vmul.f32 %v1015, %v269
        %v1018 = vmul.f32 %v1015, %v272
        %v1019 = vadd.f32 %v1011, %v1016
        %v1020 = vadd.f32 %v1012, %v1017
        %v1021 = vadd.f32 %v1013, %v1018
        %s1022 = sld [smem:[#allocation3 + $0x2c]]
        %v1023 = vstv %s1022
        %v1024 = vmul.f32 %v1023, %v266
        %v1025 = vmul.f32 %v1023, %v269
        %v1026 = vmul.f32 %v1023, %v272
        %1030 = vrot.lane.b32.xlu0 %v1024, 104
        %v1031 = vpop.permute.xlu0 %1030
        %1032 = vrot.lane.b32.xlu0 %v1025, 104
        %v1033 = vpop.permute.xlu0 %1032
        %1034 = vrot.lane.b32.xlu0 %v1026, 104
        %v1035 = vpop.permute.xlu0 %1034
        %v1039 = vadd.f32 %v1019, %v1031
        %v1040 = vadd.f32 %v1020, %v1033
        %v1041 = vadd.f32 %v1021, %v1035
        %s1042 = sld [smem:[#allocation3 + $0x2d]]
        %v1043 = vstv %s1042
        %v1044 = vmul.f32 %v1043, %v266
        %v1045 = vmul.f32 %v1043, %v269
        %v1046 = vmul.f32 %v1043, %v272
        %1050 = vrot.lane.b32.xlu0 %v1044, 80
        %v1051 = vpop.permute.xlu0 %1050
        %1052 = vrot.lane.b32.xlu0 %v1045, 80
        %v1053 = vpop.permute.xlu0 %1052
        %1054 = vrot.lane.b32.xlu0 %v1046, 80
        %v1055 = vpop.permute.xlu0 %1054
        %v1059 = vadd.f32 %v1039, %v1051
        %v1060 = vadd.f32 %v1040, %v1053
        %v1061 = vadd.f32 %v1041, %v1055
        %s1062 = sld [smem:[#allocation3 + $0x2e]]
        %v1063 = vstv %s1062
        %v1064 = vmul.f32 %v1063, %v269
        %v1065 = vmul.f32 %v1063, %v272
        %v1066 = vmul.f32 %v1063, %v275
        %v1067 = vadd.f32 %v1059, %v1064
        %v1068 = vadd.f32 %v1060, %v1065
        %v1069 = vadd.f32 %v1061, %v1066
        %s1070 = sld [smem:[#allocation3 + $0x2f]]
        %v1071 = vstv %s1070
        %v1072 = vmul.f32 %v1071, %v269
        %v1073 = vmul.f32 %v1071, %v272
        %v1074 = vmul.f32 %v1071, %v275
        %1078 = vrot.lane.b32.xlu0 %v1072, 104
        %v1079 = vpop.permute.xlu0 %1078
        %1080 = vrot.lane.b32.xlu0 %v1073, 104
        %v1081 = vpop.permute.xlu0 %1080
        %1082 = vrot.lane.b32.xlu0 %v1074, 104
        %v1083 = vpop.permute.xlu0 %1082
        %v1087 = vadd.f32 %v1067, %v1079
        %v1088 = vadd.f32 %v1068, %v1081
        %v1089 = vadd.f32 %v1069, %v1083
        %s1090 = sld [smem:[#allocation3 + $0x30]]
        %v1091 = vstv %s1090
        %v1092 = vmul.f32 %v1091, %v269
        %v1093 = vmul.f32 %v1091, %v272
        %v1094 = vmul.f32 %v1091, %v275
        %1098 = vrot.lane.b32.xlu0 %v1092, 80
        %v1099 = vpop.permute.xlu0 %1098
        %1100 = vrot.lane.b32.xlu0 %v1093, 80
        %v1101 = vpop.permute.xlu0 %1100
        %1102 = vrot.lane.b32.xlu0 %v1094, 80
        %v1103 = vpop.permute.xlu0 %1102
        %v1107 = vadd.f32 %v1087, %v1099
        %v1108 = vadd.f32 %v1088, %v1101
        %v1109 = vadd.f32 %v1089, %v1103
        %1113 = vrot.lane.b32.xlu0 %v1107, 120
        %v1114 = vpop.permute.xlu0 %1113
        %1115 = vrot.lane.b32.xlu0 %v1108, 120
        %v1116 = vpop.permute.xlu0 %1115
        %1117 = vrot.lane.b32.xlu0 %v1109, 120
        %v1118 = vpop.permute.xlu0 %1117
        %v1122 = vmax.f32 %v1107, %v1114
        %v1123 = vmax.f32 %v1108, %v1116
        %v1124 = vmax.f32 %v1109, %v1118
        %1125 = vrot.lane.b32.xlu0 %v1107, 112
        %v1126 = vpop.permute.xlu0 %1125
        %1127 = vrot.lane.b32.xlu0 %v1108, 112
        %v1128 = vpop.permute.xlu0 %1127
        %1129 = vrot.lane.b32.xlu0 %v1109, 112
        %v1130 = vpop.permute.xlu0 %1129
        %v1134 = vmax.f32 %v1122, %v1126
        %v1135 = vmax.f32 %v1123, %v1128
        %v1136 = vmax.f32 %v1124, %v1130
        %v1137 = vmax.f32 %v1134, %v1135
        %v1138 = vmax.f32 %v1137, %v1136
        %s1139 = sld [smem:[#allocation3 + $0x31]]
        %v1140 = vstv %s1139
        %v1141 = vadd.f32 %v1138, %v1140
        %s1142 = sld [smem:[#allocation3 + $0x32]]
        %v1143 = vstv %s1142
        %v1144 = vmul.f32 %v1143, %v263
        %v1145 = vmul.f32 %v1143, %v266
        %v1146 = vmul.f32 %v1143, %v269
        %s1147 = sld [smem:[#allocation3 + $0x33]]
        %v1148 = vstv %s1147
        %v1149 = vmul.f32 %v1148, %v263
        %v1150 = vmul.f32 %v1148, %v266
        %v1151 = vmul.f32 %v1148, %v269
        %1155 = vrot.lane.b32.xlu0 %v1149, 104
        %v1156 = vpop.permute.xlu0 %1155
        %1157 = vrot.lane.b32.xlu0 %v1150, 104
        %v1158 = vpop.permute.xlu0 %1157
        %1159 = vrot.lane.b32.xlu0 %v1151, 104
        %v1160 = vpop.permute.xlu0 %1159
        %v1164 = vadd.f32 %v1144, %v1156
        %v1165 = vadd.f32 %v1145, %v1158
        %v1166 = vadd.f32 %v1146, %v1160
        %s1167 = sld [smem:[#allocation3 + $0x34]]
        %v1168 = vstv %s1167
        %v1169 = vmul.f32 %v1168, %v263
        %v1170 = vmul.f32 %v1168, %v266
        %v1171 = vmul.f32 %v1168, %v269
        %1175 = vrot.lane.b32.xlu0 %v1169, 80
        %v1176 = vpop.permute.xlu0 %1175
        %1177 = vrot.lane.b32.xlu0 %v1170, 80
        %v1178 = vpop.permute.xlu0 %1177
        %1179 = vrot.lane.b32.xlu0 %v1171, 80
        %v1180 = vpop.permute.xlu0 %1179
        %v1184 = vadd.f32 %v1164, %v1176
        %v1185 = vadd.f32 %v1165, %v1178
        %v1186 = vadd.f32 %v1166, %v1180
        %s1187 = sld [smem:[#allocation3 + $0x35]]
        %v1188 = vstv %s1187
        %v1189 = vmul.f32 %v1188, %v266
        %v1190 = vmul.f32 %v1188, %v269
        %v1191 = vmul.f32 %v1188, %v272
        %v1192 = vadd.f32 %v1184, %v1189
        %v1193 = vadd.f32 %v1185, %v1190
        %v1194 = vadd.f32 %v1186, %v1191
        %s1195 = sld [smem:[#allocation3 + $0x36]]
        %v1196 = vstv %s1195
        %v1197 = vmul.f32 %v1196, %v266
        %v1198 = vmul.f32 %v1196, %v269
        %v1199 = vmul.f32 %v1196, %v272
        %1203 = vrot.lane.b32.xlu0 %v1197, 104
        %v1204 = vpop.permute.xlu0 %1203
        %1205 = vrot.lane.b32.xlu0 %v1198, 104
        %v1206 = vpop.permute.xlu0 %1205
        %1207 = vrot.lane.b32.xlu0 %v1199, 104
        %v1208 = vpop.permute.xlu0 %1207
        %v1212 = vadd.f32 %v1192, %v1204
        %v1213 = vadd.f32 %v1193, %v1206
        %v1214 = vadd.f32 %v1194, %v1208
        %s1215 = sld [smem:[#allocation3 + $0x37]]
        %v1216 = vstv %s1215
        %v1217 = vmul.f32 %v1216, %v266
        %v1218 = vmul.f32 %v1216, %v269
        %v1219 = vmul.f32 %v1216, %v272
        %1223 = vrot.lane.b32.xlu0 %v1217, 80
        %v1224 = vpop.permute.xlu0 %1223
        %1225 = vrot.lane.b32.xlu0 %v1218, 80
        %v1226 = vpop.permute.xlu0 %1225
        %1227 = vrot.lane.b32.xlu0 %v1219, 80
        %v1228 = vpop.permute.xlu0 %1227
        %v1232 = vadd.f32 %v1212, %v1224
        %v1233 = vadd.f32 %v1213, %v1226
        %v1234 = vadd.f32 %v1214, %v1228
        %s1235 = sld [smem:[#allocation3 + $0x38]]
        %v1236 = vstv %s1235
        %v1237 = vmul.f32 %v1236, %v269
        %v1238 = vmul.f32 %v1236, %v272
        %v1239 = vmul.f32 %v1236, %v275
        %v1240 = vadd.f32 %v1232, %v1237
        %v1241 = vadd.f32 %v1233, %v1238
        %v1242 = vadd.f32 %v1234, %v1239
        %s1243 = sld [smem:[#allocation3 + $0x39]]
        %v1244 = vstv %s1243
        %v1245 = vmul.f32 %v1244, %v269
        %v1246 = vmul.f32 %v1244, %v272
        %v1247 = vmul.f32 %v1244, %v275
        %1251 = vrot.lane.b32.xlu0 %v1245, 104
        %v1252 = vpop.permute.xlu0 %1251
        %1253 = vrot.lane.b32.xlu0 %v1246, 104
        %v1254 = vpop.permute.xlu0 %1253
        %1255 = vrot.lane.b32.xlu0 %v1247, 104
        %v1256 = vpop.permute.xlu0 %1255
        %v1260 = vadd.f32 %v1240, %v1252
        %v1261 = vadd.f32 %v1241, %v1254
        %v1262 = vadd.f32 %v1242, %v1256
        %s1263 = sld [smem:[#allocation3 + $0x3a]]
        %v1264 = vstv %s1263
        %v1265 = vmul.f32 %v1264, %v269
        %v1266 = vmul.f32 %v1264, %v272
        %v1267 = vmul.f32 %v1264, %v275
        %1271 = vrot.lane.b32.xlu0 %v1265, 80
        %v1272 = vpop.permute.xlu0 %1271
        %1273 = vrot.lane.b32.xlu0 %v1266, 80
        %v1274 = vpop.permute.xlu0 %1273
        %1275 = vrot.lane.b32.xlu0 %v1267, 80
        %v1276 = vpop.permute.xlu0 %1275
        %v1280 = vadd.f32 %v1260, %v1272
        %v1281 = vadd.f32 %v1261, %v1274
        %v1282 = vadd.f32 %v1262, %v1276
        %1286 = vrot.lane.b32.xlu0 %v1280, 120
        %v1287 = vpop.permute.xlu0 %1286
        %1288 = vrot.lane.b32.xlu0 %v1281, 120
        %v1289 = vpop.permute.xlu0 %1288
        %1290 = vrot.lane.b32.xlu0 %v1282, 120
        %v1291 = vpop.permute.xlu0 %1290
        %v1295 = vmax.f32 %v1280, %v1287
        %v1296 = vmax.f32 %v1281, %v1289
        %v1297 = vmax.f32 %v1282, %v1291
        %1298 = vrot.lane.b32.xlu0 %v1280, 112
        %v1299 = vpop.permute.xlu0 %1298
        %1300 = vrot.lane.b32.xlu0 %v1281, 112
        %v1301 = vpop.permute.xlu0 %1300
        %1302 = vrot.lane.b32.xlu0 %v1282, 112
        %v1303 = vpop.permute.xlu0 %1302
        %v1307 = vmax.f32 %v1295, %v1299
        %v1308 = vmax.f32 %v1296, %v1301
        %v1309 = vmax.f32 %v1297, %v1303
        %v1310 = vmax.f32 %v1307, %v1308
        %v1311 = vmax.f32 %v1310, %v1309
        %s1312 = sld [smem:[#allocation3 + $0x3b]]
        %v1313 = vstv %s1312
        %v1314 = vadd.f32 %v1311, %v1313
        %s1315 = sld [smem:[#allocation3 + $0x3c]]
        %v1316 = vstv %s1315
        %v1317 = vmul.f32 %v1316, %v263
        %v1318 = vmul.f32 %v1316, %v266
        %v1319 = vmul.f32 %v1316, %v269
        %s1320 = sld [smem:[#allocation3 + $0x3d]]
        %v1321 = vstv %s1320
        %v1322 = vmul.f32 %v1321, %v263
        %v1323 = vmul.f32 %v1321, %v266
        %v1324 = vmul.f32 %v1321, %v269
        %1328 = vrot.lane.b32.xlu0 %v1322, 104
        %v1329 = vpop.permute.xlu0 %1328
        %1330 = vrot.lane.b32.xlu0 %v1323, 104
        %v1331 = vpop.permute.xlu0 %1330
        %1332 = vrot.lane.b32.xlu0 %v1324, 104
        %v1333 = vpop.permute.xlu0 %1332
        %v1337 = vadd.f32 %v1317, %v1329
        %v1338 = vadd.f32 %v1318, %v1331
        %v1339 = vadd.f32 %v1319, %v1333
        %s1340 = sld [smem:[#allocation3 + $0x3e]]
        %v1341 = vstv %s1340
        %v1342 = vmul.f32 %v1341, %v263
        %v1343 = vmul.f32 %v1341, %v266
        %v1344 = vmul.f32 %v1341, %v269
        %1348 = vrot.lane.b32.xlu0 %v1342, 80
        %v1349 = vpop.permute.xlu0 %1348
        %1350 = vrot.lane.b32.xlu0 %v1343, 80
        %v1351 = vpop.permute.xlu0 %1350
        %1352 = vrot.lane.b32.xlu0 %v1344, 80
        %v1353 = vpop.permute.xlu0 %1352
        %v1357 = vadd.f32 %v1337, %v1349
        %v1358 = vadd.f32 %v1338, %v1351
        %v1359 = vadd.f32 %v1339, %v1353
        %s1360 = sld [smem:[#allocation3 + $0x3f]]
        %v1361 = vstv %s1360
        %v1362 = vmul.f32 %v1361, %v266
        %v1363 = vmul.f32 %v1361, %v269
        %v1364 = vmul.f32 %v1361, %v272
        %v1365 = vadd.f32 %v1357, %v1362
        %v1366 = vadd.f32 %v1358, %v1363
        %v1367 = vadd.f32 %v1359, %v1364
        %s1368 = sld [smem:[#allocation3 + $0x40]]
        %v1369 = vstv %s1368
        %v1370 = vmul.f32 %v1369, %v266
        %v1371 = vmul.f32 %v1369, %v269
        %v1372 = vmul.f32 %v1369, %v272
        %1376 = vrot.lane.b32.xlu0 %v1370, 104
        %v1377 = vpop.permute.xlu0 %1376
        %1378 = vrot.lane.b32.xlu0 %v1371, 104
        %v1379 = vpop.permute.xlu0 %1378
        %1380 = vrot.lane.b32.xlu0 %v1372, 104
        %v1381 = vpop.permute.xlu0 %1380
        %v1385 = vadd.f32 %v1365, %v1377
        %v1386 = vadd.f32 %v1366, %v1379
        %v1387 = vadd.f32 %v1367, %v1381
        %s1388 = sld [smem:[#allocation3 + $0x41]]
        %v1389 = vstv %s1388
        %v1390 = vmul.f32 %v1389, %v266
        %v1391 = vmul.f32 %v1389, %v269
        %v1392 = vmul.f32 %v1389, %v272
        %1396 = vrot.lane.b32.xlu0 %v1390, 80
        %v1397 = vpop.permute.xlu0 %1396
        %1398 = vrot.lane.b32.xlu0 %v1391, 80
        %v1399 = vpop.permute.xlu0 %1398
        %1400 = vrot.lane.b32.xlu0 %v1392, 80
        %v1401 = vpop.permute.xlu0 %1400
        %v1405 = vadd.f32 %v1385, %v1397
        %v1406 = vadd.f32 %v1386, %v1399
        %v1407 = vadd.f32 %v1387, %v1401
        %s1408 = sld [smem:[#allocation3 + $0x42]]
        %v1409 = vstv %s1408
        %v1410 = vmul.f32 %v1409, %v269
        %v1411 = vmul.f32 %v1409, %v272
        %v1412 = vmul.f32 %v1409, %v275
        %v1413 = vadd.f32 %v1405, %v1410
        %v1414 = vadd.f32 %v1406, %v1411
        %v1415 = vadd.f32 %v1407, %v1412
        %s1416 = sld [smem:[#allocation3 + $0x43]]
        %v1417 = vstv %s1416
        %v1418 = vmul.f32 %v1417, %v269
        %v1419 = vmul.f32 %v1417, %v272
        %v1420 = vmul.f32 %v1417, %v275
        %1424 = vrot.lane.b32.xlu0 %v1418, 104
        %v1425 = vpop.permute.xlu0 %1424
        %1426 = vrot.lane.b32.xlu0 %v1419, 104
        %v1427 = vpop.permute.xlu0 %1426
        %1428 = vrot.lane.b32.xlu0 %v1420, 104
        %v1429 = vpop.permute.xlu0 %1428
        %v1433 = vadd.f32 %v1413, %v1425
        %v1434 = vadd.f32 %v1414, %v1427
        %v1435 = vadd.f32 %v1415, %v1429
        %s1436 = sld [smem:[#allocation3 + $0x44]]
        %v1437 = vstv %s1436
        %v1438 = vmul.f32 %v1437, %v269
        %v1439 = vmul.f32 %v1437, %v272
        %v1440 = vmul.f32 %v1437, %v275
        %1444 = vrot.lane.b32.xlu0 %v1438, 80
        %v1445 = vpop.permute.xlu0 %1444
        %1446 = vrot.lane.b32.xlu0 %v1439, 80
        %v1447 = vpop.permute.xlu0 %1446
        %1448 = vrot.lane.b32.xlu0 %v1440, 80
        %v1449 = vpop.permute.xlu0 %1448
        %v1453 = vadd.f32 %v1433, %v1445
        %v1454 = vadd.f32 %v1434, %v1447
        %v1455 = vadd.f32 %v1435, %v1449
        %1459 = vrot.lane.b32.xlu0 %v1453, 120
        %v1460 = vpop.permute.xlu0 %1459
        %1461 = vrot.lane.b32.xlu0 %v1454, 120
        %v1462 = vpop.permute.xlu0 %1461
        %1463 = vrot.lane.b32.xlu0 %v1455, 120
        %v1464 = vpop.permute.xlu0 %1463
        %v1468 = vmax.f32 %v1453, %v1460
        %v1469 = vmax.f32 %v1454, %v1462
        %v1470 = vmax.f32 %v1455, %v1464
        %1471 = vrot.lane.b32.xlu0 %v1453, 112
        %v1472 = vpop.permute.xlu0 %1471
        %1473 = vrot.lane.b32.xlu0 %v1454, 112
        %v1474 = vpop.permute.xlu0 %1473
        %1475 = vrot.lane.b32.xlu0 %v1455, 112
        %v1476 = vpop.permute.xlu0 %1475
        %v1480 = vmax.f32 %v1468, %v1472
        %v1481 = vmax.f32 %v1469, %v1474
        %v1482 = vmax.f32 %v1470, %v1476
        %v1483 = vmax.f32 %v1480, %v1481
        %v1484 = vmax.f32 %v1483, %v1482
        %s1485 = sld [smem:[#allocation3 + $0x45]]
        %v1486 = vstv %s1485
        %v1487 = vadd.f32 %v1484, %v1486
        %s1488 = sld [smem:[#allocation3 + $0x46]]
        %v1489 = vstv %s1488
        %v1490 = vmul.f32 %v1489, %v263
        %v1491 = vmul.f32 %v1489, %v266
        %v1492 = vmul.f32 %v1489, %v269
        %s1493 = sld [smem:[#allocation3 + $0x47]]
        %v1494 = vstv %s1493
        %v1495 = vmul.f32 %v1494, %v263
        %v1496 = vmul.f32 %v1494, %v266
        %v1497 = vmul.f32 %v1494, %v269
        %1501 = vrot.lane.b32.xlu0 %v1495, 104
        %v1502 = vpop.permute.xlu0 %1501
        %1503 = vrot.lane.b32.xlu0 %v1496, 104
        %v1504 = vpop.permute.xlu0 %1503
        %1505 = vrot.lane.b32.xlu0 %v1497, 104
        %v1506 = vpop.permute.xlu0 %1505
        %v1510 = vadd.f32 %v1490, %v1502
        %v1511 = vadd.f32 %v1491, %v1504
        %v1512 = vadd.f32 %v1492, %v1506
        %s1513 = sld [smem:[#allocation3 + $0x48]]
        %v1514 = vstv %s1513
        %v1515 = vmul.f32 %v1514, %v263
        %v1516 = vmul.f32 %v1514, %v266
        %v1517 = vmul.f32 %v1514, %v269
        %1521 = vrot.lane.b32.xlu0 %v1515, 80
        %v1522 = vpop.permute.xlu0 %1521
        %1523 = vrot.lane.b32.xlu0 %v1516, 80
        %v1524 = vpop.permute.xlu0 %1523
        %1525 = vrot.lane.b32.xlu0 %v1517, 80
        %v1526 = vpop.permute.xlu0 %1525
        %v1530 = vadd.f32 %v1510, %v1522
        %v1531 = vadd.f32 %v1511, %v1524
        %v1532 = vadd.f32 %v1512, %v1526
        %s1533 = sld [smem:[#allocation3 + $0x49]]
        %v1534 = vstv %s1533
        %v1535 = vmul.f32 %v1534, %v266
        %v1536 = vmul.f32 %v1534, %v269
        %v1537 = vmul.f32 %v1534, %v272
        %v1538 = vadd.f32 %v1530, %v1535
        %v1539 = vadd.f32 %v1531, %v1536
        %v1540 = vadd.f32 %v1532, %v1537
        %s1541 = sld [smem:[#allocation3 + $0x4a]]
        %v1542 = vstv %s1541
        %v1543 = vmul.f32 %v1542, %v266
        %v1544 = vmul.f32 %v1542, %v269
        %v1545 = vmul.f32 %v1542, %v272
        %1549 = vrot.lane.b32.xlu0 %v1543, 104
        %v1550 = vpop.permute.xlu0 %1549
        %1551 = vrot.lane.b32.xlu0 %v1544, 104
        %v1552 = vpop.permute.xlu0 %1551
        %1553 = vrot.lane.b32.xlu0 %v1545, 104
        %v1554 = vpop.permute.xlu0 %1553
        %v1558 = vadd.f32 %v1538, %v1550
        %v1559 = vadd.f32 %v1539, %v1552
        %v1560 = vadd.f32 %v1540, %v1554
        %s1561 = sld [smem:[#allocation3 + $0x4b]]
        %v1562 = vstv %s1561
        %v1563 = vmul.f32 %v1562, %v266
        %v1564 = vmul.f32 %v1562, %v269
        %v1565 = vmul.f32 %v1562, %v272
        %1569 = vrot.lane.b32.xlu0 %v1563, 80
        %v1570 = vpop.permute.xlu0 %1569
        %1571 = vrot.lane.b32.xlu0 %v1564, 80
        %v1572 = vpop.permute.xlu0 %1571
        %1573 = vrot.lane.b32.xlu0 %v1565, 80
        %v1574 = vpop.permute.xlu0 %1573
        %v1578 = vadd.f32 %v1558, %v1570
        %v1579 = vadd.f32 %v1559, %v1572
        %v1580 = vadd.f32 %v1560, %v1574
        %s1581 = sld [smem:[#allocation3 + $0x4c]]
        %v1582 = vstv %s1581
        %v1583 = vmul.f32 %v1582, %v269
        %v1584 = vmul.f32 %v1582, %v272
        %v1585 = vmul.f32 %v1582, %v275
        %v1586 = vadd.f32 %v1578, %v1583
        %v1587 = vadd.f32 %v1579, %v1584
        %v1588 = vadd.f32 %v1580, %v1585
        %s1589 = sld [smem:[#allocation3 + $0x4d]]
        %v1590 = vstv %s1589
        %v1591 = vmul.f32 %v1590, %v269
        %v1592 = vmul.f32 %v1590, %v272
        %v1593 = vmul.f32 %v1590, %v275
        %1597 = vrot.lane.b32.xlu0 %v1591, 104
        %v1598 = vpop.permute.xlu0 %1597
        %1599 = vrot.lane.b32.xlu0 %v1592, 104
        %v1600 = vpop.permute.xlu0 %1599
        %1601 = vrot.lane.b32.xlu0 %v1593, 104
        %v1602 = vpop.permute.xlu0 %1601
        %v1606 = vadd.f32 %v1586, %v1598
        %v1607 = vadd.f32 %v1587, %v1600
        %v1608 = vadd.f32 %v1588, %v1602
        %s1609 = sld [smem:[#allocation3 + $0x4e]]
        %v1610 = vstv %s1609
        %v1611 = vmul.f32 %v1610, %v269
        %v1612 = vmul.f32 %v1610, %v272
        %v1613 = vmul.f32 %v1610, %v275
        %1617 = vrot.lane.b32.xlu0 %v1611, 80
        %v1618 = vpop.permute.xlu0 %1617
        %1619 = vrot.lane.b32.xlu0 %v1612, 80
        %v1620 = vpop.permute.xlu0 %1619
        %1621 = vrot.lane.b32.xlu0 %v1613, 80
        %v1622 = vpop.permute.xlu0 %1621
        %v1626 = vadd.f32 %v1606, %v1618
        %v1627 = vadd.f32 %v1607, %v1620
        %v1628 = vadd.f32 %v1608, %v1622
        %1632 = vrot.lane.b32.xlu0 %v1626, 120
        %v1633 = vpop.permute.xlu0 %1632
        %1634 = vrot.lane.b32.xlu0 %v1627, 120
        %v1635 = vpop.permute.xlu0 %1634
        %1636 = vrot.lane.b32.xlu0 %v1628, 120
        %v1637 = vpop.permute.xlu0 %1636
        %v1641 = vmax.f32 %v1626, %v1633
        %v1642 = vmax.f32 %v1627, %v1635
        %v1643 = vmax.f32 %v1628, %v1637
        %1644 = vrot.lane.b32.xlu0 %v1626, 112
        %v1645 = vpop.permute.xlu0 %1644
        %1646 = vrot.lane.b32.xlu0 %v1627, 112
        %v1647 = vpop.permute.xlu0 %1646
        %1648 = vrot.lane.b32.xlu0 %v1628, 112
        %v1649 = vpop.permute.xlu0 %1648
        %v1653 = vmax.f32 %v1641, %v1645
        %v1654 = vmax.f32 %v1642, %v1647
        %v1655 = vmax.f32 %v1643, %v1649
        %v1656 = vmax.f32 %v1653, %v1654
        %v1657 = vmax.f32 %v1656, %v1655
        %s1658 = sld [smem:[#allocation3 + $0x4f]]
        %v1659 = vstv %s1658
        %v1660 = vadd.f32 %v1657, %v1659
        %s1661 = sld [smem:[#allocation3 + $0x50]]
        %v1662 = vstv %s1661
        %v1663 = vmul.f32 %v1662, %v263
        %v1664 = vmul.f32 %v1662, %v266
        %v1665 = vmul.f32 %v1662, %v269
        %s1666 = sld [smem:[#allocation3 + $0x51]]
        %v1667 = vstv %s1666
        %v1668 = vmul.f32 %v1667, %v263
        %v1669 = vmul.f32 %v1667, %v266
        %v1670 = vmul.f32 %v1667, %v269
        %1674 = vrot.lane.b32.xlu0 %v1668, 104
        %v1675 = vpop.permute.xlu0 %1674
        %1676 = vrot.lane.b32.xlu0 %v1669, 104
        %v1677 = vpop.permute.xlu0 %1676
        %1678 = vrot.lane.b32.xlu0 %v1670, 104
        %v1679 = vpop.permute.xlu0 %1678
        %v1683 = vadd.f32 %v1663, %v1675
        %v1684 = vadd.f32 %v1664, %v1677
        %v1685 = vadd.f32 %v1665, %v1679
        %s1686 = sld [smem:[#allocation3 + $0x52]]
        %v1687 = vstv %s1686
        %v1688 = vmul.f32 %v1687, %v263
        %v1689 = vmul.f32 %v1687, %v266
        %v1690 = vmul.f32 %v1687, %v269
        %1694 = vrot.lane.b32.xlu0 %v1688, 80
        %v1695 = vpop.permute.xlu0 %1694
        %1696 = vrot.lane.b32.xlu0 %v1689, 80
        %v1697 = vpop.permute.xlu0 %1696
        %1698 = vrot.lane.b32.xlu0 %v1690, 80
        %v1699 = vpop.permute.xlu0 %1698
        %v1703 = vadd.f32 %v1683, %v1695
        %v1704 = vadd.f32 %v1684, %v1697
        %v1705 = vadd.f32 %v1685, %v1699
        %s1706 = sld [smem:[#allocation3 + $0x53]]
        %v1707 = vstv %s1706
        %v1708 = vmul.f32 %v1707, %v266
        %v1709 = vmul.f32 %v1707, %v269
        %v1710 = vmul.f32 %v1707, %v272
        %v1711 = vadd.f32 %v1703, %v1708
        %v1712 = vadd.f32 %v1704, %v1709
        %v1713 = vadd.f32 %v1705, %v1710
        %s1714 = sld [smem:[#allocation3 + $0x54]]
        %v1715 = vstv %s1714
        %v1716 = vmul.f32 %v1715, %v266
        %v1717 = vmul.f32 %v1715, %v269
        %v1718 = vmul.f32 %v1715, %v272
        %1722 = vrot.lane.b32.xlu0 %v1716, 104
        %v1723 = vpop.permute.xlu0 %1722
        %1724 = vrot.lane.b32.xlu0 %v1717, 104
        %v1725 = vpop.permute.xlu0 %1724
        %1726 = vrot.lane.b32.xlu0 %v1718, 104
        %v1727 = vpop.permute.xlu0 %1726
        %v1731 = vadd.f32 %v1711, %v1723
        %v1732 = vadd.f32 %v1712, %v1725
        %v1733 = vadd.f32 %v1713, %v1727
        %s1734 = sld [smem:[#allocation3 + $0x55]]
        %v1735 = vstv %s1734
        %v1736 = vmul.f32 %v1735, %v266
        %v1737 = vmul.f32 %v1735, %v269
        %v1738 = vmul.f32 %v1735, %v272
        %1742 = vrot.lane.b32.xlu0 %v1736, 80
        %v1743 = vpop.permute.xlu0 %1742
        %1744 = vrot.lane.b32.xlu0 %v1737, 80
        %v1745 = vpop.permute.xlu0 %1744
        %1746 = vrot.lane.b32.xlu0 %v1738, 80
        %v1747 = vpop.permute.xlu0 %1746
        %v1751 = vadd.f32 %v1731, %v1743
        %v1752 = vadd.f32 %v1732, %v1745
        %v1753 = vadd.f32 %v1733, %v1747
        %s1754 = sld [smem:[#allocation3 + $0x56]]
        %v1755 = vstv %s1754
        %v1756 = vmul.f32 %v1755, %v269
        %v1757 = vmul.f32 %v1755, %v272
        %v1758 = vmul.f32 %v1755, %v275
        %v1759 = vadd.f32 %v1751, %v1756
        %v1760 = vadd.f32 %v1752, %v1757
        %v1761 = vadd.f32 %v1753, %v1758
        %s1762 = sld [smem:[#allocation3 + $0x57]]
        %v1763 = vstv %s1762
        %v1764 = vmul.f32 %v1763, %v269
        %v1765 = vmul.f32 %v1763, %v272
        %v1766 = vmul.f32 %v1763, %v275
        %1770 = vrot.lane.b32.xlu0 %v1764, 104
        %v1771 = vpop.permute.xlu0 %1770
        %1772 = vrot.lane.b32.xlu0 %v1765, 104
        %v1773 = vpop.permute.xlu0 %1772
        %1774 = vrot.lane.b32.xlu0 %v1766, 104
        %v1775 = vpop.permute.xlu0 %1774
        %v1779 = vadd.f32 %v1759, %v1771
        %v1780 = vadd.f32 %v1760, %v1773
        %v1781 = vadd.f32 %v1761, %v1775
        %s1782 = sld [smem:[#allocation3 + $0x58]]
        %v1783 = vstv %s1782
        %v1784 = vmul.f32 %v1783, %v269
        %v1785 = vmul.f32 %v1783, %v272
        %v1786 = vmul.f32 %v1783, %v275
        %1790 = vrot.lane.b32.xlu0 %v1784, 80
        %v1791 = vpop.permute.xlu0 %1790
        %1792 = vrot.lane.b32.xlu0 %v1785, 80
        %v1793 = vpop.permute.xlu0 %1792
        %1794 = vrot.lane.b32.xlu0 %v1786, 80
        %v1795 = vpop.permute.xlu0 %1794
        %v1799 = vadd.f32 %v1779, %v1791
        %v1800 = vadd.f32 %v1780, %v1793
        %v1801 = vadd.f32 %v1781, %v1795
        %1805 = vrot.lane.b32.xlu0 %v1799, 120
        %v1806 = vpop.permute.xlu0 %1805
        %1807 = vrot.lane.b32.xlu0 %v1800, 120
        %v1808 = vpop.permute.xlu0 %1807
        %1809 = vrot.lane.b32.xlu0 %v1801, 120
        %v1810 = vpop.permute.xlu0 %1809
        %v1814 = vmax.f32 %v1799, %v1806
        %v1815 = vmax.f32 %v1800, %v1808
        %v1816 = vmax.f32 %v1801, %v1810
        %1817 = vrot.lane.b32.xlu0 %v1799, 112
        %v1818 = vpop.permute.xlu0 %1817
        %1819 = vrot.lane.b32.xlu0 %v1800, 112
        %v1820 = vpop.permute.xlu0 %1819
        %1821 = vrot.lane.b32.xlu0 %v1801, 112
        %v1822 = vpop.permute.xlu0 %1821
        %v1826 = vmax.f32 %v1814, %v1818
        %v1827 = vmax.f32 %v1815, %v1820
        %v1828 = vmax.f32 %v1816, %v1822
        %v1829 = vmax.f32 %v1826, %v1827
        %v1830 = vmax.f32 %v1829, %v1828
        %s1831 = sld [smem:[#allocation3 + $0x59]]
        %v1832 = vstv %s1831
        %v1833 = vadd.f32 %v1830, %v1832
        %s1834 = sld [smem:[#allocation3 + $0x5a]]
        %v1835 = vstv %s1834
        %v1836 = vmul.f32 %v1835, %v263
        %v1837 = vmul.f32 %v1835, %v266
        %v1838 = vmul.f32 %v1835, %v269
        %s1839 = sld [smem:[#allocation3 + $0x5b]]
        %v1840 = vstv %s1839
        %v1841 = vmul.f32 %v1840, %v263
        %v1842 = vmul.f32 %v1840, %v266
        %v1843 = vmul.f32 %v1840, %v269
        %1847 = vrot.lane.b32.xlu0 %v1841, 104
        %v1848 = vpop.permute.xlu0 %1847
        %1849 = vrot.lane.b32.xlu0 %v1842, 104
        %v1850 = vpop.permute.xlu0 %1849
        %1851 = vrot.lane.b32.xlu0 %v1843, 104
        %v1852 = vpop.permute.xlu0 %1851
        %v1856 = vadd.f32 %v1836, %v1848
        %v1857 = vadd.f32 %v1837, %v1850
        %v1858 = vadd.f32 %v1838, %v1852
        %s1859 = sld [smem:[#allocation3 + $0x5c]]
        %v1860 = vstv %s1859
        %v1861 = vmul.f32 %v1860, %v263
        %v1862 = vmul.f32 %v1860, %v266
        %v1863 = vmul.f32 %v1860, %v269
        %1867 = vrot.lane.b32.xlu0 %v1861, 80
        %v1868 = vpop.permute.xlu0 %1867
        %1869 = vrot.lane.b32.xlu0 %v1862, 80
        %v1870 = vpop.permute.xlu0 %1869
        %1871 = vrot.lane.b32.xlu0 %v1863, 80
        %v1872 = vpop.permute.xlu0 %1871
        %v1876 = vadd.f32 %v1856, %v1868
        %v1877 = vadd.f32 %v1857, %v1870
        %v1878 = vadd.f32 %v1858, %v1872
        %s1879 = sld [smem:[#allocation3 + $0x5d]]
        %v1880 = vstv %s1879
        %v1881 = vmul.f32 %v1880, %v266
        %v1882 = vmul.f32 %v1880, %v269
        %v1883 = vmul.f32 %v1880, %v272
        %v1884 = vadd.f32 %v1876, %v1881
        %v1885 = vadd.f32 %v1877, %v1882
        %v1886 = vadd.f32 %v1878, %v1883
        %s1887 = sld [smem:[#allocation3 + $0x5e]]
        %v1888 = vstv %s1887
        %v1889 = vmul.f32 %v1888, %v266
        %v1890 = vmul.f32 %v1888, %v269
        %v1891 = vmul.f32 %v1888, %v272
        %1895 = vrot.lane.b32.xlu0 %v1889, 104
        %v1896 = vpop.permute.xlu0 %1895
        %1897 = vrot.lane.b32.xlu0 %v1890, 104
        %v1898 = vpop.permute.xlu0 %1897
        %1899 = vrot.lane.b32.xlu0 %v1891, 104
        %v1900 = vpop.permute.xlu0 %1899
        %v1904 = vadd.f32 %v1884, %v1896
        %v1905 = vadd.f32 %v1885, %v1898
        %v1906 = vadd.f32 %v1886, %v1900
        %s1907 = sld [smem:[#allocation3 + $0x5f]]
        %v1908 = vstv %s1907
        %v1909 = vmul.f32 %v1908, %v266
        %v1910 = vmul.f32 %v1908, %v269
        %v1911 = vmul.f32 %v1908, %v272
        %1915 = vrot.lane.b32.xlu0 %v1909, 80
        %v1916 = vpop.permute.xlu0 %1915
        %1917 = vrot.lane.b32.xlu0 %v1910, 80
        %v1918 = vpop.permute.xlu0 %1917
        %1919 = vrot.lane.b32.xlu0 %v1911, 80
        %v1920 = vpop.permute.xlu0 %1919
        %v1924 = vadd.f32 %v1904, %v1916
        %v1925 = vadd.f32 %v1905, %v1918
        %v1926 = vadd.f32 %v1906, %v1920
        %s1927 = sld [smem:[#allocation3 + $0x60]]
        %v1928 = vstv %s1927
        %v1929 = vmul.f32 %v1928, %v269
        %v1930 = vmul.f32 %v1928, %v272
        %v1931 = vmul.f32 %v1928, %v275
        %v1932 = vadd.f32 %v1924, %v1929
        %v1933 = vadd.f32 %v1925, %v1930
        %v1934 = vadd.f32 %v1926, %v1931
        %s1935 = sld [smem:[#allocation3 + $0x61]]
        %v1936 = vstv %s1935
        %v1937 = vmul.f32 %v1936, %v269
        %v1938 = vmul.f32 %v1936, %v272
        %v1939 = vmul.f32 %v1936, %v275
        %1943 = vrot.lane.b32.xlu0 %v1937, 104
        %v1944 = vpop.permute.xlu0 %1943
        %1945 = vrot.lane.b32.xlu0 %v1938, 104
        %v1946 = vpop.permute.xlu0 %1945
        %1947 = vrot.lane.b32.xlu0 %v1939, 104
        %v1948 = vpop.permute.xlu0 %1947
        %v1952 = vadd.f32 %v1932, %v1944
        %v1953 = vadd.f32 %v1933, %v1946
        %v1954 = vadd.f32 %v1934, %v1948
        %s1955 = sld [smem:[#allocation3 + $0x62]]
        %v1956 = vstv %s1955
        %v1957 = vmul.f32 %v1956, %v269
        %v1958 = vmul.f32 %v1956, %v272
        %v1959 = vmul.f32 %v1956, %v275
        %1963 = vrot.lane.b32.xlu0 %v1957, 80
        %v1964 = vpop.permute.xlu0 %1963
        %1965 = vrot.lane.b32.xlu0 %v1958, 80
        %v1966 = vpop.permute.xlu0 %1965
        %1967 = vrot.lane.b32.xlu0 %v1959, 80
        %v1968 = vpop.permute.xlu0 %1967
        %v1972 = vadd.f32 %v1952, %v1964
        %v1973 = vadd.f32 %v1953, %v1966
        %v1974 = vadd.f32 %v1954, %v1968
        %1978 = vrot.lane.b32.xlu0 %v1972, 120
        %v1979 = vpop.permute.xlu0 %1978
        %1980 = vrot.lane.b32.xlu0 %v1973, 120
        %v1981 = vpop.permute.xlu0 %1980
        %1982 = vrot.lane.b32.xlu0 %v1974, 120
        %v1983 = vpop.permute.xlu0 %1982
        %v1987 = vmax.f32 %v1972, %v1979
        %v1988 = vmax.f32 %v1973, %v1981
        %v1989 = vmax.f32 %v1974, %v1983
        %1990 = vrot.lane.b32.xlu0 %v1972, 112
        %v1991 = vpop.permute.xlu0 %1990
        %1992 = vrot.lane.b32.xlu0 %v1973, 112
        %v1993 = vpop.permute.xlu0 %1992
        %1994 = vrot.lane.b32.xlu0 %v1974, 112
        %v1995 = vpop.permute.xlu0 %1994
        %v1999 = vmax.f32 %v1987, %v1991
        %v2000 = vmax.f32 %v1988, %v1993
        %v2001 = vmax.f32 %v1989, %v1995
        %v2002 = vmax.f32 %v1999, %v2000
        %v2003 = vmax.f32 %v2002, %v2001
        %s2004 = sld [smem:[#allocation3 + $0x63]]
        %v2005 = vstv %s2004
        %v2006 = vadd.f32 %v2003, %v2005
        %s2007 = sld [smem:[#allocation3 + $0x64]]
        %v2008 = vstv %s2007
        %v2009 = vmul.f32 %v2008, %v263
        %v2010 = vmul.f32 %v2008, %v266
        %v2011 = vmul.f32 %v2008, %v269
        %s2012 = sld [smem:[#allocation3 + $0x65]]
        %v2013 = vstv %s2012
        %v2014 = vmul.f32 %v2013, %v263
        %v2015 = vmul.f32 %v2013, %v266
        %v2016 = vmul.f32 %v2013, %v269
        %2020 = vrot.lane.b32.xlu0 %v2014, 104
        %v2021 = vpop.permute.xlu0 %2020
        %2022 = vrot.lane.b32.xlu0 %v2015, 104
        %v2023 = vpop.permute.xlu0 %2022
        %2024 = vrot.lane.b32.xlu0 %v2016, 104
        %v2025 = vpop.permute.xlu0 %2024
        %v2029 = vadd.f32 %v2009, %v2021
        %v2030 = vadd.f32 %v2010, %v2023
        %v2031 = vadd.f32 %v2011, %v2025
        %s2032 = sld [smem:[#allocation3 + $0x66]]
        %v2033 = vstv %s2032
        %v2034 = vmul.f32 %v2033, %v263
        %v2035 = vmul.f32 %v2033, %v266
        %v2036 = vmul.f32 %v2033, %v269
        %2040 = vrot.lane.b32.xlu0 %v2034, 80
        %v2041 = vpop.permute.xlu0 %2040
        %2042 = vrot.lane.b32.xlu0 %v2035, 80
        %v2043 = vpop.permute.xlu0 %2042
        %2044 = vrot.lane.b32.xlu0 %v2036, 80
        %v2045 = vpop.permute.xlu0 %2044
        %v2049 = vadd.f32 %v2029, %v2041
        %v2050 = vadd.f32 %v2030, %v2043
        %v2051 = vadd.f32 %v2031, %v2045
        %s2052 = sld [smem:[#allocation3 + $0x67]]
        %v2053 = vstv %s2052
        %v2054 = vmul.f32 %v2053, %v266
        %v2055 = vmul.f32 %v2053, %v269
        %v2056 = vmul.f32 %v2053, %v272
        %v2057 = vadd.f32 %v2049, %v2054
        %v2058 = vadd.f32 %v2050, %v2055
        %v2059 = vadd.f32 %v2051, %v2056
        %s2060 = sld [smem:[#allocation3 + $0x68]]
        %v2061 = vstv %s2060
        %v2062 = vmul.f32 %v2061, %v266
        %v2063 = vmul.f32 %v2061, %v269
        %v2064 = vmul.f32 %v2061, %v272
        %2068 = vrot.lane.b32.xlu0 %v2062, 104
        %v2069 = vpop.permute.xlu0 %2068
        %2070 = vrot.lane.b32.xlu0 %v2063, 104
        %v2071 = vpop.permute.xlu0 %2070
        %2072 = vrot.lane.b32.xlu0 %v2064, 104
        %v2073 = vpop.permute.xlu0 %2072
        %v2077 = vadd.f32 %v2057, %v2069
        %v2078 = vadd.f32 %v2058, %v2071
        %v2079 = vadd.f32 %v2059, %v2073
        %s2080 = sld [smem:[#allocation3 + $0x69]]
        %v2081 = vstv %s2080
        %v2082 = vmul.f32 %v2081, %v266
        %v2083 = vmul.f32 %v2081, %v269
        %v2084 = vmul.f32 %v2081, %v272
        %2088 = vrot.lane.b32.xlu0 %v2082, 80
        %v2089 = vpop.permute.xlu0 %2088
        %2090 = vrot.lane.b32.xlu0 %v2083, 80
        %v2091 = vpop.permute.xlu0 %2090
        %2092 = vrot.lane.b32.xlu0 %v2084, 80
        %v2093 = vpop.permute.xlu0 %2092
        %v2097 = vadd.f32 %v2077, %v2089
        %v2098 = vadd.f32 %v2078, %v2091
        %v2099 = vadd.f32 %v2079, %v2093
        %s2100 = sld [smem:[#allocation3 + $0x6a]]
        %v2101 = vstv %s2100
        %v2102 = vmul.f32 %v2101, %v269
        %v2103 = vmul.f32 %v2101, %v272
        %v2104 = vmul.f32 %v2101, %v275
        %v2105 = vadd.f32 %v2097, %v2102
        %v2106 = vadd.f32 %v2098, %v2103
        %v2107 = vadd.f32 %v2099, %v2104
        %s2108 = sld [smem:[#allocation3 + $0x6b]]
        %v2109 = vstv %s2108
        %v2110 = vmul.f32 %v2109, %v269
        %v2111 = vmul.f32 %v2109, %v272
        %v2112 = vmul.f32 %v2109, %v275
        %2116 = vrot.lane.b32.xlu0 %v2110, 104
        %v2117 = vpop.permute.xlu0 %2116
        %2118 = vrot.lane.b32.xlu0 %v2111, 104
        %v2119 = vpop.permute.xlu0 %2118
        %2120 = vrot.lane.b32.xlu0 %v2112, 104
        %v2121 = vpop.permute.xlu0 %2120
        %v2125 = vadd.f32 %v2105, %v2117
        %v2126 = vadd.f32 %v2106, %v2119
        %v2127 = vadd.f32 %v2107, %v2121
        %s2128 = sld [smem:[#allocation3 + $0x6c]]
        %v2129 = vstv %s2128
        %v2130 = vmul.f32 %v2129, %v269
        %v2131 = vmul.f32 %v2129, %v272
        %v2132 = vmul.f32 %v2129, %v275
        %2136 = vrot.lane.b32.xlu0 %v2130, 80
        %v2137 = vpop.permute.xlu0 %2136
        %2138 = vrot.lane.b32.xlu0 %v2131, 80
        %v2139 = vpop.permute.xlu0 %2138
        %2140 = vrot.lane.b32.xlu0 %v2132, 80
        %v2141 = vpop.permute.xlu0 %2140
        %v2145 = vadd.f32 %v2125, %v2137
        %v2146 = vadd.f32 %v2126, %v2139
        %v2147 = vadd.f32 %v2127, %v2141
        %2151 = vrot.lane.b32.xlu0 %v2145, 120
        %v2152 = vpop.permute.xlu0 %2151
        %2153 = vrot.lane.b32.xlu0 %v2146, 120
        %v2154 = vpop.permute.xlu0 %2153
        %2155 = vrot.lane.b32.xlu0 %v2147, 120
        %v2156 = vpop.permute.xlu0 %2155
        %v2160 = vmax.f32 %v2145, %v2152
        %v2161 = vmax.f32 %v2146, %v2154
        %v2162 = vmax.f32 %v2147, %v2156
        %2163 = vrot.lane.b32.xlu0 %v2145, 112
        %v2164 = vpop.permute.xlu0 %2163
        %2165 = vrot.lane.b32.xlu0 %v2146, 112
        %v2166 = vpop.permute.xlu0 %2165
        %2167 = vrot.lane.b32.xlu0 %v2147, 112
        %v2168 = vpop.permute.xlu0 %2167
        %v2172 = vmax.f32 %v2160, %v2164
        %v2173 = vmax.f32 %v2161, %v2166
        %v2174 = vmax.f32 %v2162, %v2168
        %v2175 = vmax.f32 %v2172, %v2173
        %v2176 = vmax.f32 %v2175, %v2174
        %s2177 = sld [smem:[#allocation3 + $0x6d]]
        %v2178 = vstv %s2177
        %v2179 = vadd.f32 %v2176, %v2178
        %s2180 = sld [smem:[#allocation3 + $0x6e]]
        %v2181 = vstv %s2180
        %v2182 = vmul.f32 %v2181, %v263
        %v2183 = vmul.f32 %v2181, %v266
        %v2184 = vmul.f32 %v2181, %v269
        %s2185 = sld [smem:[#allocation3 + $0x6f]]
        %v2186 = vstv %s2185
        %v2187 = vmul.f32 %v2186, %v263
        %v2188 = vmul.f32 %v2186, %v266
        %v2189 = vmul.f32 %v2186, %v269
        %2193 = vrot.lane.b32.xlu0 %v2187, 104
        %v2194 = vpop.permute.xlu0 %2193
        %2195 = vrot.lane.b32.xlu0 %v2188, 104
        %v2196 = vpop.permute.xlu0 %2195
        %2197 = vrot.lane.b32.xlu0 %v2189, 104
        %v2198 = vpop.permute.xlu0 %2197
        %v2202 = vadd.f32 %v2182, %v2194
        %v2203 = vadd.f32 %v2183, %v2196
        %v2204 = vadd.f32 %v2184, %v2198
        %s2205 = sld [smem:[#allocation3 + $0x70]]
        %v2206 = vstv %s2205
        %v2207 = vmul.f32 %v2206, %v263
        %v2208 = vmul.f32 %v2206, %v266
        %v2209 = vmul.f32 %v2206, %v269
        %2213 = vrot.lane.b32.xlu0 %v2207, 80
        %v2214 = vpop.permute.xlu0 %2213
        %2215 = vrot.lane.b32.xlu0 %v2208, 80
        %v2216 = vpop.permute.xlu0 %2215
        %2217 = vrot.lane.b32.xlu0 %v2209, 80
        %v2218 = vpop.permute.xlu0 %2217
        %v2222 = vadd.f32 %v2202, %v2214
        %v2223 = vadd.f32 %v2203, %v2216
        %v2224 = vadd.f32 %v2204, %v2218
        %s2225 = sld [smem:[#allocation3 + $0x71]]
        %v2226 = vstv %s2225
        %v2227 = vmul.f32 %v2226, %v266
        %v2228 = vmul.f32 %v2226, %v269
        %v2229 = vmul.f32 %v2226, %v272
        %v2230 = vadd.f32 %v2222, %v2227
        %v2231 = vadd.f32 %v2223, %v2228
        %v2232 = vadd.f32 %v2224, %v2229
        %s2233 = sld [smem:[#allocation3 + $0x72]]
        %v2234 = vstv %s2233
        %v2235 = vmul.f32 %v2234, %v266
        %v2236 = vmul.f32 %v2234, %v269
        %v2237 = vmul.f32 %v2234, %v272
        %2241 = vrot.lane.b32.xlu0 %v2235, 104
        %v2242 = vpop.permute.xlu0 %2241
        %2243 = vrot.lane.b32.xlu0 %v2236, 104
        %v2244 = vpop.permute.xlu0 %2243
        %2245 = vrot.lane.b32.xlu0 %v2237, 104
        %v2246 = vpop.permute.xlu0 %2245
        %v2250 = vadd.f32 %v2230, %v2242
        %v2251 = vadd.f32 %v2231, %v2244
        %v2252 = vadd.f32 %v2232, %v2246
        %s2253 = sld [smem:[#allocation3 + $0x73]]
        %v2254 = vstv %s2253
        %v2255 = vmul.f32 %v2254, %v266
        %v2256 = vmul.f32 %v2254, %v269
        %v2257 = vmul.f32 %v2254, %v272
        %2261 = vrot.lane.b32.xlu0 %v2255, 80
        %v2262 = vpop.permute.xlu0 %2261
        %2263 = vrot.lane.b32.xlu0 %v2256, 80
        %v2264 = vpop.permute.xlu0 %2263
        %2265 = vrot.lane.b32.xlu0 %v2257, 80
        %v2266 = vpop.permute.xlu0 %2265
        %v2270 = vadd.f32 %v2250, %v2262
        %v2271 = vadd.f32 %v2251, %v2264
        %v2272 = vadd.f32 %v2252, %v2266
        %s2273 = sld [smem:[#allocation3 + $0x74]]
        %v2274 = vstv %s2273
        %v2275 = vmul.f32 %v2274, %v269
        %v2276 = vmul.f32 %v2274, %v272
        %v2277 = vmul.f32 %v2274, %v275
        %v2278 = vadd.f32 %v2270, %v2275
        %v2279 = vadd.f32 %v2271, %v2276
        %v2280 = vadd.f32 %v2272, %v2277
        %s2281 = sld [smem:[#allocation3 + $0x75]]
        %v2282 = vstv %s2281
        %v2283 = vmul.f32 %v2282, %v269
        %v2284 = vmul.f32 %v2282, %v272
        %v2285 = vmul.f32 %v2282, %v275
        %2289 = vrot.lane.b32.xlu0 %v2283, 104
        %v2290 = vpop.permute.xlu0 %2289
        %2291 = vrot.lane.b32.xlu0 %v2284, 104
        %v2292 = vpop.permute.xlu0 %2291
        %2293 = vrot.lane.b32.xlu0 %v2285, 104
        %v2294 = vpop.permute.xlu0 %2293
        %v2298 = vadd.f32 %v2278, %v2290
        %v2299 = vadd.f32 %v2279, %v2292
        %v2300 = vadd.f32 %v2280, %v2294
        %s2301 = sld [smem:[#allocation3 + $0x76]]
        %v2302 = vstv %s2301
        %v2303 = vmul.f32 %v2302, %v269
        %v2304 = vmul.f32 %v2302, %v272
        %v2305 = vmul.f32 %v2302, %v275
        %2309 = vrot.lane.b32.xlu0 %v2303, 80
        %v2310 = vpop.permute.xlu0 %2309
        %2311 = vrot.lane.b32.xlu0 %v2304, 80
        %v2312 = vpop.permute.xlu0 %2311
        %2313 = vrot.lane.b32.xlu0 %v2305, 80
        %v2314 = vpop.permute.xlu0 %2313
        %v2318 = vadd.f32 %v2298, %v2310
        %v2319 = vadd.f32 %v2299, %v2312
        %v2320 = vadd.f32 %v2300, %v2314
        %2324 = vrot.lane.b32.xlu0 %v2318, 120
        %v2325 = vpop.permute.xlu0 %2324
        %2326 = vrot.lane.b32.xlu0 %v2319, 120
        %v2327 = vpop.permute.xlu0 %2326
        %2328 = vrot.lane.b32.xlu0 %v2320, 120
        %v2329 = vpop.permute.xlu0 %2328
        %v2333 = vmax.f32 %v2318, %v2325
        %v2334 = vmax.f32 %v2319, %v2327
        %v2335 = vmax.f32 %v2320, %v2329
        %2336 = vrot.lane.b32.xlu0 %v2318, 112
        %v2337 = vpop.permute.xlu0 %2336
        %2338 = vrot.lane.b32.xlu0 %v2319, 112
        %v2339 = vpop.permute.xlu0 %2338
        %2340 = vrot.lane.b32.xlu0 %v2320, 112
        %v2341 = vpop.permute.xlu0 %2340
        %v2345 = vmax.f32 %v2333, %v2337
        %v2346 = vmax.f32 %v2334, %v2339
        %v2347 = vmax.f32 %v2335, %v2341
        %v2348 = vmax.f32 %v2345, %v2346
        %v2349 = vmax.f32 %v2348, %v2347
        %s2350 = sld [smem:[#allocation3 + $0x77]]
        %v2351 = vstv %s2350
        %v2352 = vadd.f32 %v2349, %v2351
        %v2353 = vld [vmem:[#allocation4 + $0x50] sm:$0xff]
        %v2354 = vld [vmem:[#allocation4 + $0x58] sm:$0xff]
        %v2355 = vld [vmem:[#allocation4 + $0x60] sm:$0xff]
        %v2356 = vld [vmem:[#allocation4 + $0x68] sm:$0xff]
        %v2357 = vld [vmem:[#allocation4 + $0x70] sm:$0xff]
        %v2358 = vld [vmem:[#allocation4 + $0x78] sm:$0xff]
        %v2359 = vld [vmem:[#allocation4 + $0x80] sm:$0xff]
        %v2360 = vld [vmem:[#allocation4 + $0x88] sm:$0xff]
        %v2361 = vld [vmem:[#allocation4 + $0x90] sm:$0xff]
        %v2362 = vld [vmem:[#allocation4 + $0x98] sm:$0xff]
        %v2363 = vld [vmem:[#allocation4 + $0xa0] sm:$0xff]
        %v2364 = vld [vmem:[#allocation4 + $0xa8] sm:$0xff]
        %v2365 = vld [vmem:[#allocation4 + $0xb0] sm:$0x3f]
        %2367 = vset.pattern.permute.xlu0 8
        %2368 = vperm.xlu0 %2367, %v2353
        %v2369 = vpop.permute.xlu0 %2368
        %2372 = vset.pattern.permute.xlu0 8
        %2373 = vperm.xlu0 %2372, %v2354
        %v2374 = vpop.permute.xlu0 %2373
        %2377 = vset.pattern.permute.xlu0 8
        %2378 = vperm.xlu0 %2377, %v2355
        %v2379 = vpop.permute.xlu0 %2378
        %2382 = vset.pattern.permute.xlu0 8
        %2383 = vperm.xlu0 %2382, %v2356
        %v2384 = vpop.permute.xlu0 %2383
        %vm2386 = vcmask 64512
        %v2387 = vsel %vm2386, %v2353, 0
        %v2389 = vsel %vm2386, %v2354, 0
        %v2391 = vsel %vm2386, %v2355, 0
        %v2393 = vsel %vm2386, %v2356, 0
        %v2396 = vsel %vm2386, %v449, 0
        %v2399 = vsel %vm2386, %v622, 0
        %v2402 = vsel %vm2386, %v795, 0
        %v2405 = vsel %vm2386, %v968, 0
        %v2408 = vsel %vm2386, %v1141, 0
        %v2411 = vsel %vm2386, %v1314, 0
        %v2414 = vsel %vm2386, %v1487, 0
        %v2417 = vsel %vm2386, %v1660, 0
        %v2420 = vsel %vm2386, %v1833, 0
        %v2423 = vsel %vm2386, %v2006, 0
        %v2426 = vsel %vm2386, %v2179, 0
        %v2429 = vsel %vm2386, %v2352, 0
        %2431 = vmatpush.xpose.msra.mxu0 0.0
        %2432 = vmatpush.xpose.msra.mxu0 0.0
        %2433 = vmatpush.xpose.msra.mxu0 0.0
        %2434 = vmatpush.xpose.msra.mxu0 0.0
        %2435 = vmatpush.xpose.msra.mxu0 %v2429
        %2436 = vmatpush.xpose.msra.mxu0 %v2426
        %2437 = vmatpush.xpose.msra.mxu0 %v2423
        %2438 = vmatpush.xpose.msra.mxu0 %v2420
        %2439 = vmatpush.xpose.msra.mxu0 %v2417
        %2440 = vmatpush.xpose.msra.mxu0 %v2414
        %2441 = vmatpush.xpose.msra.mxu0 %v2411
        %2442 = vmatpush.xpose.msra.mxu0 %v2408
        %2443 = vmatpush.xpose.msra.mxu0 %v2405
        %2444 = vmatpush.xpose.msra.mxu0 %v2402
        %2445 = vmatpush.xpose.msra.mxu0 %v2399
        %2446 = vmatpush.xpose.msra.mxu0 %v2396
        %2447 = vmatmul.f32.gmra.mxu0 %v2387
        %v2448 = vpop.f32.mrf.mxu0
        %v2449 = vadd.f32 %v2369, %v2448
        %2450 = vmatmul.f32.gmra.mxu0 %v2389
        %v2451 = vpop.f32.mrf.mxu0
        %v2452 = vadd.f32 %v2374, %v2451
        %2453 = vmatmul.f32.gmra.mxu0 %v2391
        %v2454 = vpop.f32.mrf.mxu0
        %v2455 = vadd.f32 %v2379, %v2454
        %2456 = vmatmul.f32.gmra.mxu0 %v2393
        %v2457 = vpop.f32.mrf.mxu0
        %v2458 = vadd.f32 %v2384, %v2457
        %2459 = vdwg.mxu0
        %v2460 = vmax.f32 %v2449, 0.0
        %v2461 = vmax.f32 %v2452, 0.0
        %v2462 = vmax.f32 %v2455, 0.0
        %v2463 = vmax.f32 %v2458, 0.0
        %2465 = vset.pattern.permute.xlu0 32
        %2466 = vperm.xlu0 %2465, %v2357
        %v2467 = vpop.permute.xlu0 %2466
        %2470 = vset.pattern.permute.xlu0 32
        %2471 = vperm.xlu0 %2470, %v2358
        %v2472 = vpop.permute.xlu0 %2471
        %2475 = vset.pattern.permute.xlu0 32
        %2476 = vperm.xlu0 %2475, %v2359
        %v2477 = vpop.permute.xlu0 %2476
        %2480 = vset.pattern.permute.xlu0 32
        %2481 = vperm.xlu0 %2480, %v2360
        %v2482 = vpop.permute.xlu0 %2481
        %2485 = vset.pattern.permute.xlu0 32
        %2486 = vperm.xlu0 %2485, %v2361
        %v2487 = vpop.permute.xlu0 %2486
        %2490 = vset.pattern.permute.xlu0 32
        %2491 = vperm.xlu0 %2490, %v2362
        %v2492 = vpop.permute.xlu0 %2491
        %2495 = vset.pattern.permute.xlu0 32
        %2496 = vperm.xlu0 %2495, %v2363
        %v2497 = vpop.permute.xlu0 %2496
        %2500 = vset.pattern.permute.xlu0 32
        %2501 = vperm.xlu0 %2500, %v2364
        %v2502 = vpop.permute.xlu0 %2501
        %vm2504 = vcmask 261120
        %v2505 = vsel %vm2504, %v2357, 0
        %v2507 = vsel %vm2504, %v2358, 0
        %v2509 = vsel %vm2504, %v2359, 0
        %v2511 = vsel %vm2504, %v2360, 0
        %v2513 = vsel %vm2504, %v2361, 0
        %v2515 = vsel %vm2504, %v2362, 0
        %v2517 = vsel %vm2504, %v2363, 0
        %v2519 = vsel %vm2504, %v2364, 0
        %2521 = vmatpush.msra.mxu0 0.0
        %2522 = vmatpush.msra.mxu0 0.0
        %2523 = vmatpush.msra.mxu0 0.0
        %2524 = vmatpush.msra.mxu0 0.0
        %2525 = vmatpush.msra.mxu0 0.0
        %2526 = vmatpush.msra.mxu0 0.0
        %2527 = vmatpush.msra.mxu0 0.0
        %2528 = vmatpush.msra.mxu0 0.0
        %2529 = vmatpush.msra.mxu0 0.0
        %2530 = vmatpush.msra.mxu0 0.0
        %2531 = vmatpush.msra.mxu0 0.0
        %2532 = vmatpush.msra.mxu0 0.0
        %2533 = vmatpush.msra.mxu0 %v2463
        %2534 = vmatpush.msra.mxu0 %v2462
        %2535 = vmatpush.msra.mxu0 %v2461
        %2536 = vmatpush.msra.mxu0 %v2460
        %2537 = vmatmul.f32.gmra.mxu0 %v2505
        %v2538 = vpop.f32.mrf.mxu0
        %v2539 = vadd.f32 %v2467, %v2538
        %2540 = vmatmul.f32.gmra.mxu0 %v2507
        %v2541 = vpop.f32.mrf.mxu0
        %v2542 = vadd.f32 %v2472, %v2541
        %2543 = vmatmul.f32.gmra.mxu0 %v2509
        %v2544 = vpop.f32.mrf.mxu0
        %v2545 = vadd.f32 %v2477, %v2544
        %2546 = vmatmul.f32.gmra.mxu0 %v2511
        %v2547 = vpop.f32.mrf.mxu0
        %v2548 = vadd.f32 %v2482, %v2547
        %2549 = vmatmul.f32.gmra.mxu0 %v2513
        %v2550 = vpop.f32.mrf.mxu0
        %v2551 = vadd.f32 %v2487, %v2550
        %2552 = vmatmul.f32.gmra.mxu0 %v2515
        %v2553 = vpop.f32.mrf.mxu0
        %v2554 = vadd.f32 %v2492, %v2553
        %2555 = vmatmul.f32.gmra.mxu0 %v2517
        %v2556 = vpop.f32.mrf.mxu0
        %v2557 = vadd.f32 %v2497, %v2556
        %2558 = vmatmul.f32.gmra.mxu0 %v2519
        %v2559 = vpop.f32.mrf.mxu0
        %v2560 = vadd.f32 %v2502, %v2559
        %2561 = vdwg.mxu0
        %v2562 = vmax.f32 %v2539, 0.0
        %v2563 = vmax.f32 %v2542, 0.0
        %v2564 = vmax.f32 %v2545, 0.0
        %v2565 = vmax.f32 %v2548, 0.0
        %v2566 = vmax.f32 %v2551, 0.0
        %v2567 = vmax.f32 %v2554, 0.0
        %v2568 = vmax.f32 %v2557, 0.0
        %v2569 = vmax.f32 %v2560, 0.0
        %2571 = vset.pattern.permute.xlu0 64
        %2572 = vperm.xlu0 %2571, %v2365
        %v2573 = vpop.permute.xlu0 %2572
        %vm2575 = vcmask 523264
        %v2576 = vsel %vm2575, %v2365, 0
        %2578 = vmatpush.msra.mxu0 0.0
        %2579 = vmatpush.msra.mxu0 0.0
        %2580 = vmatpush.msra.mxu0 0.0
        %2581 = vmatpush.msra.mxu0 0.0
        %2582 = vmatpush.msra.mxu0 0.0
        %2583 = vmatpush.msra.mxu0 0.0
        %2584 = vmatpush.msra.mxu0 0.0
        %2585 = vmatpush.msra.mxu0 0.0
        %2586 = vmatpush.msra.mxu0 %v2569
        %2587 = vmatpush.msra.mxu0 %v2568
        %2588 = vmatpush.msra.mxu0 %v2567
        %2589 = vmatpush.msra.mxu0 %v2566
        %2590 = vmatpush.msra.mxu0 %v2565
        %2591 = vmatpush.msra.mxu0 %v2564
        %2592 = vmatpush.msra.mxu0 %v2563
        %2593 = vmatpush.msra.mxu0 %v2562
        %2594 = vmatmul.f32.gmra.mxu0 %v2576
        %v2595 = vpop.f32.mrf.mxu0
        %v2596 = vadd.f32 %v2573, %v2595
        %2597 = vdwg.mxu0
        %v2598 = vld [vmem:[#allocation4 + $0x48] sm:$0xff]
        %2600 = vrot.lane.b32.xlu0 %v2596, 120
        %v2601 = vpop.permute.xlu0 %2600
        %v2603 = vmax.f32 %v2596, %v2601
        %2605 = vrot.lane.b32.xlu0 %v2603, 112
        %v2606 = vpop.permute.xlu0 %2605
        %v2608 = vmax.f32 %v2603, %v2606
        %2610 = vrot.lane.b32.xlu0 %v2608, 96
        %v2611 = vpop.permute.xlu0 %2610
        %v2613 = vmax.f32 %v2608, %v2611
        %2614 = vrot.lane.b32.xlu0 %v2608, 64
        %v2615 = vpop.permute.xlu0 %2614
        %v2617 = vmax.f32 %v2613, %v2615
        %v2619 = vsel %vm2386, %v2617, 0
        %2621 = vmatpush.msra.mxu0 0.0
        %2622 = vmatpush.msra.mxu0 0.0
        %2623 = vmatpush.msra.mxu0 0.0
        %2624 = vmatpush.msra.mxu0 0.0
        %2625 = vmatpush.msra.mxu0 0.0
        %2626 = vmatpush.msra.mxu0 0.0
        %2627 = vmatpush.msra.mxu0 0.0
        %2628 = vmatpush.msra.mxu0 0.0
        %2629 = vmatpush.msra.mxu0 0.0
        %2630 = vmatpush.msra.mxu0 0.0
        %2631 = vmatpush.msra.mxu0 0.0
        %2632 = vmatpush.msra.mxu0 0.0
        %2633 = vmatpush.msra.mxu0 0.0
        %2634 = vmatpush.msra.mxu0 0.0
        %2635 = vmatpush.msra.mxu0 0.0
        %2636 = vmatpush.msra.mxu0 %v2598
        %2637 = vmatmul.f32.gmra.mxu0 %v2619
        %v2638 = vpop.f32.mrf.mxu0
        %v2639 = vadd.f32 0.0, %v2638
        %2640 = vdwg.mxu0
        %v2641 = vsub.f32 %v2596, %v2639
        %v2642 = vmul.f32 %v2641, 1.442695
        %v2643 = vpow.pop %v2642
        %2645 = vrot.lane.b32.xlu0 %v2643, 120
        %v2646 = vpop.permute.xlu0 %2645
        %v2648 = vadd.f32 %v2643, %v2646
        %2650 = vrot.lane.b32.xlu0 %v2648, 112
        %v2651 = vpop.permute.xlu0 %2650
        %v2653 = vadd.f32 %v2648, %v2651
        %2655 = vrot.lane.b32.xlu0 %v2653, 96
        %v2656 = vpop.permute.xlu0 %2655
        %v2658 = vadd.f32 %v2653, %v2656
        %2659 = vrot.lane.b32.xlu0 %v2653, 64
        %v2660 = vpop.permute.xlu0 %2659
        %v2662 = vadd.f32 %v2658, %v2660
        %v2663 = vrcp.pop %v2662
        %v2664 = vmul.f32 %v2662, %v2663
        %v2665 = vsub.f32 1.0, %v2664
        %v2666 = vmul.f32 %v2663, %v2665
        %v2667 = vadd.f32 %v2663, %v2666
        %vm2668 = vweird.f32 %v2662
        %vm2669 = vweird.f32 %v2663
        %vm2670 = vmor %vm2668, %vm2669
        %v2671 = vsel %vm2670, %v2663, %v2667
        %v2672 = vand.u32 2147483647, %v2662
        %vm2673 = vcmp.eq.f32.partialorder %v2672, 8.507059e+37
        %v2674 = vand.u32 %v2662, 2147483648
        %v2675 = vor.u32 1.1754944e-38, %v2674
        %v2676 = vsel %vm2673, %v2675, %v2671
        %v2677 = vmul.f32 1.0, %v2676
        %v2679 = vsel %vm2386, %v2677, 0
        %2681 = vmatpush.msra.mxu0 0.0
        %2682 = vmatpush.msra.mxu0 0.0
        %2683 = vmatpush.msra.mxu0 0.0
        %2684 = vmatpush.msra.mxu0 0.0
        %2685 = vmatpush.msra.mxu0 0.0
        %2686 = vmatpush.msra.mxu0 0.0
        %2687 = vmatpush.msra.mxu0 0.0
        %2688 = vmatpush.msra.mxu0 0.0
        %2689 = vmatpush.msra.mxu0 0.0
        %2690 = vmatpush.msra.mxu0 0.0
        %2691 = vmatpush.msra.mxu0 0.0
        %2692 = vmatpush.msra.mxu0 0.0
        %2693 = vmatpush.msra.mxu0 0.0
        %2694 = vmatpush.msra.mxu0 0.0
        %2695 = vmatpush.msra.mxu0 0.0
        %2696 = vmatpush.msra.mxu0 %v2598
        %2697 = vmatmul.f32.gmra.mxu0 %v2679
        %v2698 = vpop.f32.mrf.mxu0
        %v2699 = vadd.f32 0.0, %v2698
        %2700 = vdwg.mxu0
        %v2701 = vmul.f32 %v2643, %v2699
        %vm2702 = vcmask 783360
        %2703 = vst.msk [vmem:[%s167] sm:$0x3f] %vm2702, %v2701
        %p2704 = scmp.lt.s32.totalorder %s23, 1
        %s2705 = scalar_select %p2704, %s23, 1
        %s2706 = smul.addr %s2705, 8
        %s2707 = scalar_lea.vmem %s3, %s2706
        // Predicated region
        $region33: #{tpu_custom_call.1} parent=27 // pred_check
          %p2708 = pneg %p88
        $region34: #{tpu_custom_call.1} parent=27 // pred_check_branch
          %2710 = sbr.rel (%p2708) target = $region36
        $region35: #{tpu_custom_call.1} parent=27 // pred_region
          _
        $region36: #{tpu_custom_call.1} parent=27 // pred_fallthru
          _
      $region28: #{tpu_custom_call.1} parent=5 // pred_fallthru
        _
      %p2711 = scmp.le.s32.totalorder 2, %s18
      // Predicated region
      $region37: #{tpu_custom_call.1} parent=5 // pred_check
        %p2712 = pneg %p2711
      $region38: #{tpu_custom_call.1} parent=5 // pred_check_branch
        %2714 = sbr.rel (%p2712) target = $region40
      $region39: #{tpu_custom_call.1} parent=5 // pred_region
        %s2715 = ssub.s32 %s18, 2
        // Predicated region
        $region41: #{tpu_custom_call.1} parent=39 // pred_check
          %p2716 = pneg %p94
        $region42: #{tpu_custom_call.1} parent=39 // pred_check_branch
          %2718 = sbr.rel (%p2716) target = $region44
        $region43: #{tpu_custom_call.1} parent=39 // pred_region
          %p2719 = scmp.lt.s32.totalorder %s24, 1
          %s2720 = scalar_select %p2719, %s24, 1
          %s2721 = smul.addr %s2720, 8
          %s2722 = scalar_lea.vmem %s3, %s2721
        $region44: #{tpu_custom_call.1} parent=39 // pred_fallthru
          _
      $region40: #{tpu_custom_call.1} parent=5 // pred_fallthru
        _
    $region6: #{tpu_custom_call.1} parent=1 // loop_footer
      %s22 = sadd.s32 1, %s18
    $region7: #{tpu_custom_call.1} parent=1 // loop_footer_branch
      %17 = sbr.rel target = $region3
    $region8: #{tpu_custom_call.1} parent=1 // loop_exit
      _
    %2723 = vsyncpa [#allocation5], 1
    %s2724 = scalar_lea.sflag [#allocation5], 1
    %2725 = vsyncpa %s2724, 1

</llo_original>
